<compile_context>
chip_gen: v7x
topology: tpu7x:2x2x1
jax: 0.10.0
libtpu: 0.0.40
codegen_flags: <defaults>
</compile_context>

<pallas_src>
from functools import partial
import math

import jax
import jax.numpy as jnp
from jax.experimental import pallas as pl
from jax.experimental.pallas import tpu as pltpu


def temporal_attn_kernel(x_ref, wqkv_ref, wp_ref, bp_ref, madd_ref, o_ref,
                         *, heads, head_dim, bw, t, scale, causal):
    C = heads * head_dim
    rows = bw * t

    x = x_ref[...]                                                     # (rows, C)

    # One large-M QKV projection (qkv_bias=False); scale folded into q once.
    qkv = jnp.dot(x, wqkv_ref[...], preferred_element_type=jnp.float32)  # (rows, 3C)
    q = (qkv[:, 0:C] * scale).reshape(bw, t, C)
    k = qkv[:, C:2 * C].reshape(bw, t, C)
    v = qkv[:, 2 * C:3 * C].reshape(bw, t, C)

    # Hoisted: additive causal mask broadcast is emitted once, not per head
    # (JAX does not CSE broadcast_in_dim inside the static unroll).
    madd = madd_ref[...][None, :, :]                                   # (1, T, T)

    heads_out = []
    for h in range(heads):                                             # static unroll
        lo = h * head_dim
        qh = q[:, :, lo:lo + head_dim]                                 # (bw, t, d)
        kh = k[:, :, lo:lo + head_dim]
        vh = v[:, :, lo:lo + head_dim]

        s = jnp.einsum('btd,bsd->bts', qh, kh,
                       preferred_element_type=jnp.float32)             # (bw, t, t)
        if causal:
            s = s + madd
            m = jnp.max(s, axis=-1, keepdims=True)
            e = jnp.exp(s - m)
            s = e * pl.reciprocal(jnp.sum(e, axis=-1, keepdims=True), approx=False)
            # Reference applies a SECOND, unconditional softmax after the
            # causal one (reproduced exactly).  Its inputs are probabilities
            # in [0,1], so the max-shift is redundant (shift invariance).
            e2 = jnp.exp(s)
        else:
            e2 = jnp.exp(s - jnp.max(s, axis=-1, keepdims=True))
        # approx=False keeps the f32 self-check tight (approx=True would route
        # the divide to the EUP but loosens numerics beyond 2e-5).
        p = e2 * pl.reciprocal(jnp.sum(e2, axis=-1, keepdims=True), approx=False)

        oh = jnp.einsum('bts,bsd->btd', p, vh,
                        preferred_element_type=jnp.float32)            # (bw, t, d)
        heads_out.append(oh.reshape(rows, head_dim))

    # Head concat along lanes + ONE K=C output projection
    # (replaces 8 separate K=head_dim MXU pushes of the previous version).
    ocat = jnp.concatenate(heads_out, axis=-1)                         # (rows, C)
    y = jnp.dot(ocat, wp_ref[...], preferred_element_type=jnp.float32)
    y = y + bp_ref[...].astype(jnp.float32)                            # proj bias
    o_ref[...] = y.astype(o_ref.dtype)


def temporal_attention(x, wqkv, wp, bp, mask, *, heads, window_size,
                       causal=True, block_windows=512):
    """x: (B_prev, T_prev, C). wqkv: (C, 3C), wp: (C, C), bp: (C,), mask: (ws, ws)."""
    B_prev, T_prev, C = x.shape
    T = window_size
    assert C % heads == 0
    assert (B_prev * T_prev) % T == 0
    head_dim = C // heads
    scale = head_dim ** -0.5

    nw = (B_prev * T_prev) // T                                        # total windows

    # Block sizing: the kernel is HBM / per-step-overhead bound at small C, so
    # blocks should be O(0.5-2 MiB) of x traffic; measured tiling data puts
    # ~64 KiB blocks around ~30% of HBM roofline while 0.5-1 MiB blocks reach
    # ~85%+ (per-step overhead ~0.35 us dwarfs the DMA otherwise).
    step = 8 // math.gcd(T, 8)                       # keep BW*T a sublane multiple
    # Rough per-window f32 VMEM footprint (x, qkv, q/k/v, scores, head outs,
    # concat, y, and the double-buffered in/out blocks).
    bytes_per_window = 4 * (T * C * 12 + 2 * heads * T * T + 4 * T * C)
    vmem_budget = 24 * 1024 * 1024                   # intermediates budget (v7x-safe)
    bw_cap = max(step, vmem_budget // max(bytes_per_window, 1))
    bw_req = min(block_windows, nw, bw_cap)
    if nw > step:
        # Keep at least 2 grid blocks so the "parallel" axis can be split
        # across both TensorCores on v7x (a single block would idle one core).
        bw_req = min(bw_req, -(-nw // 2))
    BW = max(step, (bw_req // step) * step)
    n_blocks = pl.cdiv(nw, BW)
    nw_pad = n_blocks * BW

    xf = x.reshape(nw * T, C)
    if nw_pad != nw:                                                   # pad whole windows
        xf = jnp.pad(xf, ((0, (nw_pad - nw) * T), (0, 0)))

    # Additive mask (NaN-proof; exp(-1e9 - max) flushes to exactly 0 in f32,
    # matching the reference's masked_fill(-inf) path after the exp).
    mask_add = jnp.where(mask == 0.0, jnp.float32(-1e9), jnp.float32(0.0))
    bp2 = bp.reshape(1, C)

    kernel = partial(temporal_attn_kernel, heads=heads, head_dim=head_dim,
                     bw=BW, t=T, scale=scale, causal=causal)

    out = pl.pallas_call(
        kernel,
        out_shape=jax.ShapeDtypeStruct((nw_pad * T, C), x.dtype),
        grid_spec=pltpu.PrefetchScalarGridSpec(
            num_scalar_prefetch=0,
            grid=(n_blocks,),
            in_specs=[
                pl.BlockSpec((BW * T, C), lambda b: (b, 0)),           # x block (BW windows)
                pl.BlockSpec((C, 3 * C), lambda b: (0, 0)),            # Wqkv (resident)
                pl.BlockSpec((C, C), lambda b: (0, 0)),                # Wproj (resident)
                pl.BlockSpec((1, C), lambda b: (0, 0)),                # proj bias
                pl.BlockSpec((T, T), lambda b: (0, 0)),                # additive causal mask
            ],
            out_specs=pl.BlockSpec((BW * T, C), lambda b: (b, 0)),
        ),
        compiler_params=pltpu.CompilerParams(
            dimension_semantics=("parallel",),                         # shard blocks across TCs
            vmem_limit_bytes=48 * 1024 * 1024),                        # <= v7x 64 MiB VMEM
    )(xf, wqkv, wp, bp2, mask_add)

    out = out[: nw * T]
    return out.reshape(B_prev, T_prev, C)


def temporal_attention_ref(x, wqkv, wp, bp, mask, *, heads, window_size, causal=True):
    """Pure-JAX reference mirroring the PyTorch forward."""
    B_prev, T_prev, C = x.shape
    head_dim = C // heads
    scale = head_dim ** -0.5
    xw = x.reshape(-1, window_size, C)
    B, T, _ = xw.shape

    qkv = xw @ wqkv
    qkv = qkv.reshape(B, T, 3, heads, head_dim).transpose(2, 0, 3, 1, 4)
    q, k, v = qkv[0], qkv[1], qkv[2]

    attn = jnp.einsum('bhtd,bhsd->bhts', q, k) * scale
    if causal:
        attn = jnp.where(mask == 0.0, -jnp.inf, attn)
        attn = jax.nn.softmax(attn, axis=-1)
    attn = jax.nn.softmax(attn, axis=-1)

    out = jnp.einsum('bhts,bhsd->bhtd', attn, v)
    out = out.transpose(0, 2, 1, 3).reshape(B, T, C)
    y = out @ wp + bp
    return y.reshape(B_prev, T_prev, C)


if __name__ == "__main__":
    dim = 32
    heads = 8
    window_size = 8

    key = jax.random.PRNGKey(0)
    k_x, k_wqkv, k_wp, k_bp, k_x2, k_x3 = jax.random.split(key, 6)

    # nn.Linear shapes: qkv (3C, C), proj (C, C) + bias; stored pre-transposed (in, out).
    wqkv = jax.random.normal(k_wqkv, (dim, 3 * dim), dtype=jnp.float32) * 0.05
    wp = jax.random.normal(k_wp, (dim, dim), dtype=jnp.float32) * 0.05
    bp = jax.random.normal(k_bp, (dim,), dtype=jnp.float32) * 0.05
    mask = jnp.tril(jnp.ones((window_size, window_size), dtype=jnp.float32))

    # Test 1: small shapes (4 windows -> BW=2, 2 blocks, no padding).
    x1 = jax.random.normal(k_x, (2, 16, dim), dtype=jnp.float32)
    y1 = temporal_attention(x1, wqkv, wp, bp, mask,
                            heads=heads, window_size=window_size, causal=True)
    y1 = jax.block_until_ready(y1)
    y1_ref = temporal_attention_ref(x1, wqkv, wp, bp, mask,
                                    heads=heads, window_size=window_size, causal=True)
    assert y1.shape == x1.shape
    assert jnp.allclose(y1, y1_ref, atol=2e-5, rtol=2e-5), "test1: mismatch vs JAX reference"

    # Test 2: multi-block grid with window padding (20 windows, BW=8 -> 3 blocks).
    x2 = jax.random.normal(k_x2, (2, 80, dim), dtype=jnp.float32)
    y2 = temporal_attention(x2, wqkv, wp, bp, mask, heads=heads,
                            window_size=window_size, causal=True, block_windows=8)
    y2 = jax.block_until_ready(y2)
    y2_ref = temporal_attention_ref(x2, wqkv, wp, bp, mask,
                                    heads=heads, window_size=window_size, causal=True)
    assert y2.shape == x2.shape
    assert jnp.allclose(y2, y2_ref, atol=2e-5, rtol=2e-5), "test2: mismatch vs JAX reference"

    # Test 3: default (large) blocks: 512 windows -> BW=256 (capped for 2 TCs), 2 blocks.
    x3 = jax.random.normal(k_x3, (4, 1024, dim), dtype=jnp.float32)
    y3 = temporal_attention(x3, wqkv, wp, bp, mask,
                            heads=heads, window_size=window_size, causal=True)
    y3 = jax.block_until_ready(y3)
    y3_ref = temporal_attention_ref(x3, wqkv, wp, bp, mask,
                                    heads=heads, window_size=window_size, causal=True)
    assert y3.shape == x3.shape
    assert jnp.allclose(y3, y3_ref, atol=2e-5, rtol=2e-5), "test3: mismatch vs JAX reference"

    # Test 4: non-causal path (single softmax with max-shift).
    y4 = temporal_attention(x1, wqkv, wp, bp, mask,
                            heads=heads, window_size=window_size, causal=False)
    y4 = jax.block_until_ready(y4)
    y4_ref = temporal_attention_ref(x1, wqkv, wp, bp, mask,
                                    heads=heads, window_size=window_size, causal=False)
    assert jnp.allclose(y4, y4_ref, atol=2e-5, rtol=2e-5), "test4: mismatch vs JAX reference"

    # TODO(synk): attn_drop / proj_drop (nn.Dropout, default p=0.0) are eval identities.
    print("KERNEL_OK")
</pallas_src>

<mosaic_0001>
module attributes {stable_mosaic.version = 11 : i64} {
  func.func @temporal_attn_kernel(%arg0: i32, %arg1: memref<16x32xf32, #tpu.memory_space<vmem>>, %arg2: memref<32x96xf32, #tpu.memory_space<vmem>>, %arg3: memref<32x32xf32, #tpu.memory_space<vmem>>, %arg4: memref<1x32xf32, #tpu.memory_space<vmem>>, %arg5: memref<8x8xf32, #tpu.memory_space<vmem>>, %arg6: memref<16x32xf32, #tpu.memory_space<vmem>>) attributes {dimension_semantics = [#tpu.dimension_semantics<parallel>], iteration_bounds = array<i64: 2>, scalar_prefetch = 0 : i64, scratch_operands = 0 : i64, tpu.core_type = #tpu.core_type<tc>, window_params = [{transform_indices = @transform_0, window_bounds = array<i64: 16, 32>}, {pipeline_mode = #tpu.pipeline_mode<synchronous>, transform_indices = @transform_1, window_bounds = array<i64: 32, 96>}, {pipeline_mode = #tpu.pipeline_mode<synchronous>, transform_indices = @transform_2, window_bounds = array<i64: 32, 32>}, {pipeline_mode = #tpu.pipeline_mode<synchronous>, transform_indices = @transform_3, window_bounds = array<i64: 1, 32>}, {pipeline_mode = #tpu.pipeline_mode<synchronous>, transform_indices = @transform_4, window_bounds = array<i64: 8, 8>}, {transform_indices = @transform_5, window_bounds = array<i64: 16, 32>}]} {
    %c0 = arith.constant 0 : index
    %c0_0 = arith.constant 0 : index
    %0 = vector.load %arg1[%c0, %c0_0] : memref<16x32xf32, #tpu.memory_space<vmem>>, vector<16x32xf32>
    %c0_1 = arith.constant 0 : index
    %c0_2 = arith.constant 0 : index
    %1 = vector.load %arg2[%c0_1, %c0_2] : memref<32x96xf32, #tpu.memory_space<vmem>>, vector<32x96xf32>
    %cst = arith.constant dense<0.000000e+00> : vector<16x96xf32>
    %2 = tpu.matmul %0, %1, %cst {dimension_numbers = #tpu.dot_dimension_numbers<[1], [0], [0], [1], [0, 0, 1, 1], [], []>} : vector<16x32xf32>, vector<32x96xf32>, vector<16x96xf32> -> vector<16x96xf32>
    %3 = vector.extract_strided_slice %2 {offsets = [0, 0], sizes = [16, 32], strides = [1, 1]} : vector<16x96xf32> to vector<16x32xf32>
    %cst_3 = arith.constant 5.000000e-01 : f32
    %4 = vector.broadcast %cst_3 : f32 to vector<16x32xf32>
    %5 = arith.mulf %3, %4 : vector<16x32xf32>
    %6 = vector.shape_cast %5 : vector<16x32xf32> to vector<2x8x32xf32>
    %7 = vector.extract_strided_slice %2 {offsets = [0, 32], sizes = [16, 32], strides = [1, 1]} : vector<16x96xf32> to vector<16x32xf32>
    %8 = vector.shape_cast %7 : vector<16x32xf32> to vector<2x8x32xf32>
    %9 = vector.extract_strided_slice %2 {offsets = [0, 64], sizes = [16, 32], strides = [1, 1]} : vector<16x96xf32> to vector<16x32xf32>
    %10 = vector.shape_cast %9 : vector<16x32xf32> to vector<2x8x32xf32>
    %c0_4 = arith.constant 0 : index
    %c0_5 = arith.constant 0 : index
    %11 = vector.load %arg5[%c0_4, %c0_5] : memref<8x8xf32, #tpu.memory_space<vmem>>, vector<8x8xf32>
    %12 = vector.shape_cast %11 : vector<8x8xf32> to vector<1x8x8xf32>
    %13 = vector.extract_strided_slice %6 {offsets = [0, 0, 0], sizes = [2, 8, 4], strides = [1, 1, 1]} : vector<2x8x32xf32> to vector<2x8x4xf32>
    %14 = vector.extract_strided_slice %8 {offsets = [0, 0, 0], sizes = [2, 8, 4], strides = [1, 1, 1]} : vector<2x8x32xf32> to vector<2x8x4xf32>
    %15 = vector.extract_strided_slice %10 {offsets = [0, 0, 0], sizes = [2, 8, 4], strides = [1, 1, 1]} : vector<2x8x32xf32> to vector<2x8x4xf32>
    "tpu.trace_start"() <{level = 10 : i32, message = "btd,bsd->bts"}> : () -> ()
    %cst_6 = arith.constant dense<0.000000e+00> : vector<2x8x8xf32>
    %16 = tpu.matmul %13, %14, %cst_6 {dimension_numbers = #tpu.dot_dimension_numbers<[2], [2], [1], [1], [0, 0, 0, 1, 1, 1], [0], [0]>} : vector<2x8x4xf32>, vector<2x8x4xf32>, vector<2x8x8xf32> -> vector<2x8x8xf32>
    "tpu.trace_stop"() : () -> ()
    %17 = vector.broadcast %12 : vector<1x8x8xf32> to vector<2x8x8xf32>
    %18 = arith.addf %16, %17 : vector<2x8x8xf32>
    %cst_7 = arith.constant dense<0xFF800000> : vector<2x8xf32>
    %19 = vector.multi_reduction <maximumf>, %18, %cst_7 [2] : vector<2x8x8xf32> to vector<2x8xf32>
    %20 = vector.shape_cast %19 : vector<2x8xf32> to vector<2x8x1xf32>
    %21 = vector.broadcast %20 : vector<2x8x1xf32> to vector<2x8x8xf32>
    %22 = arith.subf %18, %21 : vector<2x8x8xf32>
    %23 = math.exp %22 : vector<2x8x8xf32>
    %cst_8 = arith.constant dense<0.000000e+00> : vector<2x8xf32>
    %24 = vector.multi_reduction <add>, %23, %cst_8 [2] : vector<2x8x8xf32> to vector<2x8xf32>
    %25 = vector.shape_cast %24 : vector<2x8xf32> to vector<2x8x1xf32>
    %26 = tpu.reciprocal %25 : vector<2x8x1xf32> -> vector<2x8x1xf32>
    %27 = vector.broadcast %26 : vector<2x8x1xf32> to vector<2x8x8xf32>
    %28 = arith.mulf %23, %27 : vector<2x8x8xf32>
    %29 = math.exp %28 : vector<2x8x8xf32>
    %cst_9 = arith.constant dense<0.000000e+00> : vector<2x8xf32>
    %30 = vector.multi_reduction <add>, %29, %cst_9 [2] : vector<2x8x8xf32> to vector<2x8xf32>
    %31 = vector.shape_cast %30 : vector<2x8xf32> to vector<2x8x1xf32>
    %32 = tpu.reciprocal %31 : vector<2x8x1xf32> -> vector<2x8x1xf32>
    %33 = vector.broadcast %32 : vector<2x8x1xf32> to vector<2x8x8xf32>
    %34 = arith.mulf %29, %33 : vector<2x8x8xf32>
    "tpu.trace_start"() <{level = 10 : i32, message = "bts,bsd->btd"}> : () -> ()
    %cst_10 = arith.constant dense<0.000000e+00> : vector<2x8x4xf32>
    %35 = tpu.matmul %34, %15, %cst_10 {dimension_numbers = #tpu.dot_dimension_numbers<[2], [1], [1], [2], [0, 0, 0, 1, 1, 2], [0], [0]>} : vector<2x8x8xf32>, vector<2x8x4xf32>, vector<2x8x4xf32> -> vector<2x8x4xf32>
    "tpu.trace_stop"() : () -> ()
    %36 = vector.shape_cast %35 : vector<2x8x4xf32> to vector<16x4xf32>
    %37 = vector.extract_strided_slice %6 {offsets = [0, 0, 4], sizes = [2, 8, 4], strides = [1, 1, 1]} : vector<2x8x32xf32> to vector<2x8x4xf32>
    %38 = vector.extract_strided_slice %8 {offsets = [0, 0, 4], sizes = [2, 8, 4], strides = [1, 1, 1]} : vector<2x8x32xf32> to vector<2x8x4xf32>
    %39 = vector.extract_strided_slice %10 {offsets = [0, 0, 4], sizes = [2, 8, 4], strides = [1, 1, 1]} : vector<2x8x32xf32> to vector<2x8x4xf32>
    "tpu.trace_start"() <{level = 10 : i32, message = "btd,bsd->bts"}> : () -> ()
    %cst_11 = arith.constant dense<0.000000e+00> : vector<2x8x8xf32>
    %40 = tpu.matmul %37, %38, %cst_11 {dimension_numbers = #tpu.dot_dimension_numbers<[2], [2], [1], [1], [0, 0, 0, 1, 1, 1], [0], [0]>} : vector<2x8x4xf32>, vector<2x8x4xf32>, vector<2x8x8xf32> -> vector<2x8x8xf32>
    "tpu.trace_stop"() : () -> ()
    %41 = vector.broadcast %12 : vector<1x8x8xf32> to vector<2x8x8xf32>
    %42 = arith.addf %40, %41 : vector<2x8x8xf32>
    %cst_12 = arith.constant dense<0xFF800000> : vector<2x8xf32>
    %43 = vector.multi_reduction <maximumf>, %42, %cst_12 [2] : vector<2x8x8xf32> to vector<2x8xf32>
    %44 = vector.shape_cast %43 : vector<2x8xf32> to vector<2x8x1xf32>
    %45 = vector.broadcast %44 : vector<2x8x1xf32> to vector<2x8x8xf32>
    %46 = arith.subf %42, %45 : vector<2x8x8xf32>
    %47 = math.exp %46 : vector<2x8x8xf32>
    %cst_13 = arith.constant dense<0.000000e+00> : vector<2x8xf32>
    %48 = vector.multi_reduction <add>, %47, %cst_13 [2] : vector<2x8x8xf32> to vector<2x8xf32>
    %49 = vector.shape_cast %48 : vector<2x8xf32> to vector<2x8x1xf32>
    %50 = tpu.reciprocal %49 : vector<2x8x1xf32> -> vector<2x8x1xf32>
    %51 = vector.broadcast %50 : vector<2x8x1xf32> to vector<2x8x8xf32>
    %52 = arith.mulf %47, %51 : vector<2x8x8xf32>
    %53 = math.exp %52 : vector<2x8x8xf32>
    %cst_14 = arith.constant dense<0.000000e+00> : vector<2x8xf32>
    %54 = vector.multi_reduction <add>, %53, %cst_14 [2] : vector<2x8x8xf32> to vector<2x8xf32>
    %55 = vector.shape_cast %54 : vector<2x8xf32> to vector<2x8x1xf32>
    %56 = tpu.reciprocal %55 : vector<2x8x1xf32> -> vector<2x8x1xf32>
    %57 = vector.broadcast %56 : vector<2x8x1xf32> to vector<2x8x8xf32>
    %58 = arith.mulf %53, %57 : vector<2x8x8xf32>
    "tpu.trace_start"() <{level = 10 : i32, message = "bts,bsd->btd"}> : () -> ()
    %cst_15 = arith.constant dense<0.000000e+00> : vector<2x8x4xf32>
    %59 = tpu.matmul %58, %39, %cst_15 {dimension_numbers = #tpu.dot_dimension_numbers<[2], [1], [1], [2], [0, 0, 0, 1, 1, 2], [0], [0]>} : vector<2x8x8xf32>, vector<2x8x4xf32>, vector<2x8x4xf32> -> vector<2x8x4xf32>
    "tpu.trace_stop"() : () -> ()
    %60 = vector.shape_cast %59 : vector<2x8x4xf32> to vector<16x4xf32>
    %61 = vector.extract_strided_slice %6 {offsets = [0, 0, 8], sizes = [2, 8, 4], strides = [1, 1, 1]} : vector<2x8x32xf32> to vector<2x8x4xf32>
    %62 = vector.extract_strided_slice %8 {offsets = [0, 0, 8], sizes = [2, 8, 4], strides = [1, 1, 1]} : vector<2x8x32xf32> to vector<2x8x4xf32>
    %63 = vector.extract_strided_slice %10 {offsets = [0, 0, 8], sizes = [2, 8, 4], strides = [1, 1, 1]} : vector<2x8x32xf32> to vector<2x8x4xf32>
    "tpu.trace_start"() <{level = 10 : i32, message = "btd,bsd->bts"}> : () -> ()
    %cst_16 = arith.constant dense<0.000000e+00> : vector<2x8x8xf32>
    %64 = tpu.matmul %61, %62, %cst_16 {dimension_numbers = #tpu.dot_dimension_numbers<[2], [2], [1], [1], [0, 0, 0, 1, 1, 1], [0], [0]>} : vector<2x8x4xf32>, vector<2x8x4xf32>, vector<2x8x8xf32> -> vector<2x8x8xf32>
    "tpu.trace_stop"() : () -> ()
    %65 = vector.broadcast %12 : vector<1x8x8xf32> to vector<2x8x8xf32>
    %66 = arith.addf %64, %65 : vector<2x8x8xf32>
    %cst_17 = arith.constant dense<0xFF800000> : vector<2x8xf32>
    %67 = vector.multi_reduction <maximumf>, %66, %cst_17 [2] : vector<2x8x8xf32> to vector<2x8xf32>
    %68 = vector.shape_cast %67 : vector<2x8xf32> to vector<2x8x1xf32>
    %69 = vector.broadcast %68 : vector<2x8x1xf32> to vector<2x8x8xf32>
    %70 = arith.subf %66, %69 : vector<2x8x8xf32>
    %71 = math.exp %70 : vector<2x8x8xf32>
    %cst_18 = arith.constant dense<0.000000e+00> : vector<2x8xf32>
    %72 = vector.multi_reduction <add>, %71, %cst_18 [2] : vector<2x8x8xf32> to vector<2x8xf32>
    %73 = vector.shape_cast %72 : vector<2x8xf32> to vector<2x8x1xf32>
    %74 = tpu.reciprocal %73 : vector<2x8x1xf32> -> vector<2x8x1xf32>
    %75 = vector.broadcast %74 : vector<2x8x1xf32> to vector<2x8x8xf32>
    %76 = arith.mulf %71, %75 : vector<2x8x8xf32>
    %77 = math.exp %76 : vector<2x8x8xf32>
    %cst_19 = arith.constant dense<0.000000e+00> : vector<2x8xf32>
    %78 = vector.multi_reduction <add>, %77, %cst_19 [2] : vector<2x8x8xf32> to vector<2x8xf32>
    %79 = vector.shape_cast %78 : vector<2x8xf32> to vector<2x8x1xf32>
    %80 = tpu.reciprocal %79 : vector<2x8x1xf32> -> vector<2x8x1xf32>
    %81 = vector.broadcast %80 : vector<2x8x1xf32> to vector<2x8x8xf32>
    %82 = arith.mulf %77, %81 : vector<2x8x8xf32>
    "tpu.trace_start"() <{level = 10 : i32, message = "bts,bsd->btd"}> : () -> ()
    %cst_20 = arith.constant dense<0.000000e+00> : vector<2x8x4xf32>
    %83 = tpu.matmul %82, %63, %cst_20 {dimension_numbers = #tpu.dot_dimension_numbers<[2], [1], [1], [2], [0, 0, 0, 1, 1, 2], [0], [0]>} : vector<2x8x8xf32>, vector<2x8x4xf32>, vector<2x8x4xf32> -> vector<2x8x4xf32>
    "tpu.trace_stop"() : () -> ()
    %84 = vector.shape_cast %83 : vector<2x8x4xf32> to vector<16x4xf32>
    %85 = vector.extract_strided_slice %6 {offsets = [0, 0, 12], sizes = [2, 8, 4], strides = [1, 1, 1]} : vector<2x8x32xf32> to vector<2x8x4xf32>
    %86 = vector.extract_strided_slice %8 {offsets = [0, 0, 12], sizes = [2, 8, 4], strides = [1, 1, 1]} : vector<2x8x32xf32> to vector<2x8x4xf32>
    %87 = vector.extract_strided_slice %10 {offsets = [0, 0, 12], sizes = [2, 8, 4], strides = [1, 1, 1]} : vector<2x8x32xf32> to vector<2x8x4xf32>
    "tpu.trace_start"() <{level = 10 : i32, message = "btd,bsd->bts"}> : () -> ()
    %cst_21 = arith.constant dense<0.000000e+00> : vector<2x8x8xf32>
    %88 = tpu.matmul %85, %86, %cst_21 {dimension_numbers = #tpu.dot_dimension_numbers<[2], [2], [1], [1], [0, 0, 0, 1, 1, 1], [0], [0]>} : vector<2x8x4xf32>, vector<2x8x4xf32>, vector<2x8x8xf32> -> vector<2x8x8xf32>
    "tpu.trace_stop"() : () -> ()
    %89 = vector.broadcast %12 : vector<1x8x8xf32> to vector<2x8x8xf32>
    %90 = arith.addf %88, %89 : vector<2x8x8xf32>
    %cst_22 = arith.constant dense<0xFF800000> : vector<2x8xf32>
    %91 = vector.multi_reduction <maximumf>, %90, %cst_22 [2] : vector<2x8x8xf32> to vector<2x8xf32>
    %92 = vector.shape_cast %91 : vector<2x8xf32> to vector<2x8x1xf32>
    %93 = vector.broadcast %92 : vector<2x8x1xf32> to vector<2x8x8xf32>
    %94 = arith.subf %90, %93 : vector<2x8x8xf32>
    %95 = math.exp %94 : vector<2x8x8xf32>
    %cst_23 = arith.constant dense<0.000000e+00> : vector<2x8xf32>
    %96 = vector.multi_reduction <add>, %95, %cst_23 [2] : vector<2x8x8xf32> to vector<2x8xf32>
    %97 = vector.shape_cast %96 : vector<2x8xf32> to vector<2x8x1xf32>
    %98 = tpu.reciprocal %97 : vector<2x8x1xf32> -> vector<2x8x1xf32>
    %99 = vector.broadcast %98 : vector<2x8x1xf32> to vector<2x8x8xf32>
    %100 = arith.mulf %95, %99 : vector<2x8x8xf32>
    %101 = math.exp %100 : vector<2x8x8xf32>
    %cst_24 = arith.constant dense<0.000000e+00> : vector<2x8xf32>
    %102 = vector.multi_reduction <add>, %101, %cst_24 [2] : vector<2x8x8xf32> to vector<2x8xf32>
    %103 = vector.shape_cast %102 : vector<2x8xf32> to vector<2x8x1xf32>
    %104 = tpu.reciprocal %103 : vector<2x8x1xf32> -> vector<2x8x1xf32>
    %105 = vector.broadcast %104 : vector<2x8x1xf32> to vector<2x8x8xf32>
    %106 = arith.mulf %101, %105 : vector<2x8x8xf32>
    "tpu.trace_start"() <{level = 10 : i32, message = "bts,bsd->btd"}> : () -> ()
    %cst_25 = arith.constant dense<0.000000e+00> : vector<2x8x4xf32>
    %107 = tpu.matmul %106, %87, %cst_25 {dimension_numbers = #tpu.dot_dimension_numbers<[2], [1], [1], [2], [0, 0, 0, 1, 1, 2], [0], [0]>} : vector<2x8x8xf32>, vector<2x8x4xf32>, vector<2x8x4xf32> -> vector<2x8x4xf32>
    "tpu.trace_stop"() : () -> ()
    %108 = vector.shape_cast %107 : vector<2x8x4xf32> to vector<16x4xf32>
    %109 = vector.extract_strided_slice %6 {offsets = [0, 0, 16], sizes = [2, 8, 4], strides = [1, 1, 1]} : vector<2x8x32xf32> to vector<2x8x4xf32>
    %110 = vector.extract_strided_slice %8 {offsets = [0, 0, 16], sizes = [2, 8, 4], strides = [1, 1, 1]} : vector<2x8x32xf32> to vector<2x8x4xf32>
    %111 = vector.extract_strided_slice %10 {offsets = [0, 0, 16], sizes = [2, 8, 4], strides = [1, 1, 1]} : vector<2x8x32xf32> to vector<2x8x4xf32>
    "tpu.trace_start"() <{level = 10 : i32, message = "btd,bsd->bts"}> : () -> ()
    %cst_26 = arith.constant dense<0.000000e+00> : vector<2x8x8xf32>
    %112 = tpu.matmul %109, %110, %cst_26 {dimension_numbers = #tpu.dot_dimension_numbers<[2], [2], [1], [1], [0, 0, 0, 1, 1, 1], [0], [0]>} : vector<2x8x4xf32>, vector<2x8x4xf32>, vector<2x8x8xf32> -> vector<2x8x8xf32>
    "tpu.trace_stop"() : () -> ()
    %113 = vector.broadcast %12 : vector<1x8x8xf32> to vector<2x8x8xf32>
    %114 = arith.addf %112, %113 : vector<2x8x8xf32>
    %cst_27 = arith.constant dense<0xFF800000> : vector<2x8xf32>
    %115 = vector.multi_reduction <maximumf>, %114, %cst_27 [2] : vector<2x8x8xf32> to vector<2x8xf32>
    %116 = vector.shape_cast %115 : vector<2x8xf32> to vector<2x8x1xf32>
    %117 = vector.broadcast %116 : vector<2x8x1xf32> to vector<2x8x8xf32>
    %118 = arith.subf %114, %117 : vector<2x8x8xf32>
    %119 = math.exp %118 : vector<2x8x8xf32>
    %cst_28 = arith.constant dense<0.000000e+00> : vector<2x8xf32>
    %120 = vector.multi_reduction <add>, %119, %cst_28 [2] : vector<2x8x8xf32> to vector<2x8xf32>
    %121 = vector.shape_cast %120 : vector<2x8xf32> to vector<2x8x1xf32>
    %122 = tpu.reciprocal %121 : vector<2x8x1xf32> -> vector<2x8x1xf32>
    %123 = vector.broadcast %122 : vector<2x8x1xf32> to vector<2x8x8xf32>
    %124 = arith.mulf %119, %123 : vector<2x8x8xf32>
    %125 = math.exp %124 : vector<2x8x8xf32>
    %cst_29 = arith.constant dense<0.000000e+00> : vector<2x8xf32>
    %126 = vector.multi_reduction <add>, %125, %cst_29 [2] : vector<2x8x8xf32> to vector<2x8xf32>
    %127 = vector.shape_cast %126 : vector<2x8xf32> to vector<2x8x1xf32>
    %128 = tpu.reciprocal %127 : vector<2x8x1xf32> -> vector<2x8x1xf32>
    %129 = vector.broadcast %128 : vector<2x8x1xf32> to vector<2x8x8xf32>
    %130 = arith.mulf %125, %129 : vector<2x8x8xf32>
    "tpu.trace_start"() <{level = 10 : i32, message = "bts,bsd->btd"}> : () -> ()
    %cst_30 = arith.constant dense<0.000000e+00> : vector<2x8x4xf32>
    %131 = tpu.matmul %130, %111, %cst_30 {dimension_numbers = #tpu.dot_dimension_numbers<[2], [1], [1], [2], [0, 0, 0, 1, 1, 2], [0], [0]>} : vector<2x8x8xf32>, vector<2x8x4xf32>, vector<2x8x4xf32> -> vector<2x8x4xf32>
    "tpu.trace_stop"() : () -> ()
    %132 = vector.shape_cast %131 : vector<2x8x4xf32> to vector<16x4xf32>
    %133 = vector.extract_strided_slice %6 {offsets = [0, 0, 20], sizes = [2, 8, 4], strides = [1, 1, 1]} : vector<2x8x32xf32> to vector<2x8x4xf32>
    %134 = vector.extract_strided_slice %8 {offsets = [0, 0, 20], sizes = [2, 8, 4], strides = [1, 1, 1]} : vector<2x8x32xf32> to vector<2x8x4xf32>
    %135 = vector.extract_strided_slice %10 {offsets = [0, 0, 20], sizes = [2, 8, 4], strides = [1, 1, 1]} : vector<2x8x32xf32> to vector<2x8x4xf32>
    "tpu.trace_start"() <{level = 10 : i32, message = "btd,bsd->bts"}> : () -> ()
    %cst_31 = arith.constant dense<0.000000e+00> : vector<2x8x8xf32>
    %136 = tpu.matmul %133, %134, %cst_31 {dimension_numbers = #tpu.dot_dimension_numbers<[2], [2], [1], [1], [0, 0, 0, 1, 1, 1], [0], [0]>} : vector<2x8x4xf32>, vector<2x8x4xf32>, vector<2x8x8xf32> -> vector<2x8x8xf32>
    "tpu.trace_stop"() : () -> ()
    %137 = vector.broadcast %12 : vector<1x8x8xf32> to vector<2x8x8xf32>
    %138 = arith.addf %136, %137 : vector<2x8x8xf32>
    %cst_32 = arith.constant dense<0xFF800000> : vector<2x8xf32>
    %139 = vector.multi_reduction <maximumf>, %138, %cst_32 [2] : vector<2x8x8xf32> to vector<2x8xf32>
    %140 = vector.shape_cast %139 : vector<2x8xf32> to vector<2x8x1xf32>
    %141 = vector.broadcast %140 : vector<2x8x1xf32> to vector<2x8x8xf32>
    %142 = arith.subf %138, %141 : vector<2x8x8xf32>
    %143 = math.exp %142 : vector<2x8x8xf32>
    %cst_33 = arith.constant dense<0.000000e+00> : vector<2x8xf32>
    %144 = vector.multi_reduction <add>, %143, %cst_33 [2] : vector<2x8x8xf32> to vector<2x8xf32>
    %145 = vector.shape_cast %144 : vector<2x8xf32> to vector<2x8x1xf32>
    %146 = tpu.reciprocal %145 : vector<2x8x1xf32> -> vector<2x8x1xf32>
    %147 = vector.broadcast %146 : vector<2x8x1xf32> to vector<2x8x8xf32>
    %148 = arith.mulf %143, %147 : vector<2x8x8xf32>
    %149 = math.exp %148 : vector<2x8x8xf32>
    %cst_34 = arith.constant dense<0.000000e+00> : vector<2x8xf32>
    %150 = vector.multi_reduction <add>, %149, %cst_34 [2] : vector<2x8x8xf32> to vector<2x8xf32>
    %151 = vector.shape_cast %150 : vector<2x8xf32> to vector<2x8x1xf32>
    %152 = tpu.reciprocal %151 : vector<2x8x1xf32> -> vector<2x8x1xf32>
    %153 = vector.broadcast %152 : vector<2x8x1xf32> to vector<2x8x8xf32>
    %154 = arith.mulf %149, %153 : vector<2x8x8xf32>
    "tpu.trace_start"() <{level = 10 : i32, message = "bts,bsd->btd"}> : () -> ()
    %cst_35 = arith.constant dense<0.000000e+00> : vector<2x8x4xf32>
    %155 = tpu.matmul %154, %135, %cst_35 {dimension_numbers = #tpu.dot_dimension_numbers<[2], [1], [1], [2], [0, 0, 0, 1, 1, 2], [0], [0]>} : vector<2x8x8xf32>, vector<2x8x4xf32>, vector<2x8x4xf32> -> vector<2x8x4xf32>
    "tpu.trace_stop"() : () -> ()
    %156 = vector.shape_cast %155 : vector<2x8x4xf32> to vector<16x4xf32>
    %157 = vector.extract_strided_slice %6 {offsets = [0, 0, 24], sizes = [2, 8, 4], strides = [1, 1, 1]} : vector<2x8x32xf32> to vector<2x8x4xf32>
    %158 = vector.extract_strided_slice %8 {offsets = [0, 0, 24], sizes = [2, 8, 4], strides = [1, 1, 1]} : vector<2x8x32xf32> to vector<2x8x4xf32>
    %159 = vector.extract_strided_slice %10 {offsets = [0, 0, 24], sizes = [2, 8, 4], strides = [1, 1, 1]} : vector<2x8x32xf32> to vector<2x8x4xf32>
    "tpu.trace_start"() <{level = 10 : i32, message = "btd,bsd->bts"}> : () -> ()
    %cst_36 = arith.constant dense<0.000000e+00> : vector<2x8x8xf32>
    %160 = tpu.matmul %157, %158, %cst_36 {dimension_numbers = #tpu.dot_dimension_numbers<[2], [2], [1], [1], [0, 0, 0, 1, 1, 1], [0], [0]>} : vector<2x8x4xf32>, vector<2x8x4xf32>, vector<2x8x8xf32> -> vector<2x8x8xf32>
    "tpu.trace_stop"() : () -> ()
    %161 = vector.broadcast %12 : vector<1x8x8xf32> to vector<2x8x8xf32>
    %162 = arith.addf %160, %161 : vector<2x8x8xf32>
    %cst_37 = arith.constant dense<0xFF800000> : vector<2x8xf32>
    %163 = vector.multi_reduction <maximumf>, %162, %cst_37 [2] : vector<2x8x8xf32> to vector<2x8xf32>
    %164 = vector.shape_cast %163 : vector<2x8xf32> to vector<2x8x1xf32>
    %165 = vector.broadcast %164 : vector<2x8x1xf32> to vector<2x8x8xf32>
    %166 = arith.subf %162, %165 : vector<2x8x8xf32>
    %167 = math.exp %166 : vector<2x8x8xf32>
    %cst_38 = arith.constant dense<0.000000e+00> : vector<2x8xf32>
    %168 = vector.multi_reduction <add>, %167, %cst_38 [2] : vector<2x8x8xf32> to vector<2x8xf32>
    %169 = vector.shape_cast %168 : vector<2x8xf32> to vector<2x8x1xf32>
    %170 = tpu.reciprocal %169 : vector<2x8x1xf32> -> vector<2x8x1xf32>
    %171 = vector.broadcast %170 : vector<2x8x1xf32> to vector<2x8x8xf32>
    %172 = arith.mulf %167, %171 : vector<2x8x8xf32>
    %173 = math.exp %172 : vector<2x8x8xf32>
    %cst_39 = arith.constant dense<0.000000e+00> : vector<2x8xf32>
    %174 = vector.multi_reduction <add>, %173, %cst_39 [2] : vector<2x8x8xf32> to vector<2x8xf32>
    %175 = vector.shape_cast %174 : vector<2x8xf32> to vector<2x8x1xf32>
    %176 = tpu.reciprocal %175 : vector<2x8x1xf32> -> vector<2x8x1xf32>
    %177 = vector.broadcast %176 : vector<2x8x1xf32> to vector<2x8x8xf32>
    %178 = arith.mulf %173, %177 : vector<2x8x8xf32>
    "tpu.trace_start"() <{level = 10 : i32, message = "bts,bsd->btd"}> : () -> ()
    %cst_40 = arith.constant dense<0.000000e+00> : vector<2x8x4xf32>
    %179 = tpu.matmul %178, %159, %cst_40 {dimension_numbers = #tpu.dot_dimension_numbers<[2], [1], [1], [2], [0, 0, 0, 1, 1, 2], [0], [0]>} : vector<2x8x8xf32>, vector<2x8x4xf32>, vector<2x8x4xf32> -> vector<2x8x4xf32>
    "tpu.trace_stop"() : () -> ()
    %180 = vector.shape_cast %179 : vector<2x8x4xf32> to vector<16x4xf32>
    %181 = vector.extract_strided_slice %6 {offsets = [0, 0, 28], sizes = [2, 8, 4], strides = [1, 1, 1]} : vector<2x8x32xf32> to vector<2x8x4xf32>
    %182 = vector.extract_strided_slice %8 {offsets = [0, 0, 28], sizes = [2, 8, 4], strides = [1, 1, 1]} : vector<2x8x32xf32> to vector<2x8x4xf32>
    %183 = vector.extract_strided_slice %10 {offsets = [0, 0, 28], sizes = [2, 8, 4], strides = [1, 1, 1]} : vector<2x8x32xf32> to vector<2x8x4xf32>
    "tpu.trace_start"() <{level = 10 : i32, message = "btd,bsd->bts"}> : () -> ()
    %cst_41 = arith.constant dense<0.000000e+00> : vector<2x8x8xf32>
    %184 = tpu.matmul %181, %182, %cst_41 {dimension_numbers = #tpu.dot_dimension_numbers<[2], [2], [1], [1], [0, 0, 0, 1, 1, 1], [0], [0]>} : vector<2x8x4xf32>, vector<2x8x4xf32>, vector<2x8x8xf32> -> vector<2x8x8xf32>
    "tpu.trace_stop"() : () -> ()
    %185 = vector.broadcast %12 : vector<1x8x8xf32> to vector<2x8x8xf32>
    %186 = arith.addf %184, %185 : vector<2x8x8xf32>
    %cst_42 = arith.constant dense<0xFF800000> : vector<2x8xf32>
    %187 = vector.multi_reduction <maximumf>, %186, %cst_42 [2] : vector<2x8x8xf32> to vector<2x8xf32>
    %188 = vector.shape_cast %187 : vector<2x8xf32> to vector<2x8x1xf32>
    %189 = vector.broadcast %188 : vector<2x8x1xf32> to vector<2x8x8xf32>
    %190 = arith.subf %186, %189 : vector<2x8x8xf32>
    %191 = math.exp %190 : vector<2x8x8xf32>
    %cst_43 = arith.constant dense<0.000000e+00> : vector<2x8xf32>
    %192 = vector.multi_reduction <add>, %191, %cst_43 [2] : vector<2x8x8xf32> to vector<2x8xf32>
    %193 = vector.shape_cast %192 : vector<2x8xf32> to vector<2x8x1xf32>
    %194 = tpu.reciprocal %193 : vector<2x8x1xf32> -> vector<2x8x1xf32>
    %195 = vector.broadcast %194 : vector<2x8x1xf32> to vector<2x8x8xf32>
    %196 = arith.mulf %191, %195 : vector<2x8x8xf32>
    %197 = math.exp %196 : vector<2x8x8xf32>
    %cst_44 = arith.constant dense<0.000000e+00> : vector<2x8xf32>
    %198 = vector.multi_reduction <add>, %197, %cst_44 [2] : vector<2x8x8xf32> to vector<2x8xf32>
    %199 = vector.shape_cast %198 : vector<2x8xf32> to vector<2x8x1xf32>
    %200 = tpu.reciprocal %199 : vector<2x8x1xf32> -> vector<2x8x1xf32>
    %201 = vector.broadcast %200 : vector<2x8x1xf32> to vector<2x8x8xf32>
    %202 = arith.mulf %197, %201 : vector<2x8x8xf32>
    "tpu.trace_start"() <{level = 10 : i32, message = "bts,bsd->btd"}> : () -> ()
    %cst_45 = arith.constant dense<0.000000e+00> : vector<2x8x4xf32>
    %203 = tpu.matmul %202, %183, %cst_45 {dimension_numbers = #tpu.dot_dimension_numbers<[2], [1], [1], [2], [0, 0, 0, 1, 1, 2], [0], [0]>} : vector<2x8x8xf32>, vector<2x8x4xf32>, vector<2x8x4xf32> -> vector<2x8x4xf32>
    "tpu.trace_stop"() : () -> ()
    %204 = vector.shape_cast %203 : vector<2x8x4xf32> to vector<16x4xf32>
    %205 = tpu.concatenate %36, %60, %84, %108, %132, %156, %180, %204 in 1 : vector<16x4xf32>, vector<16x4xf32>, vector<16x4xf32>, vector<16x4xf32>, vector<16x4xf32>, vector<16x4xf32>, vector<16x4xf32>, vector<16x4xf32> -> vector<16x32xf32>
    %c0_46 = arith.constant 0 : index
    %c0_47 = arith.constant 0 : index
    %206 = vector.load %arg3[%c0_46, %c0_47] : memref<32x32xf32, #tpu.memory_space<vmem>>, vector<32x32xf32>
    %cst_48 = arith.constant dense<0.000000e+00> : vector<16x32xf32>
    %207 = tpu.matmul %205, %206, %cst_48 {dimension_numbers = #tpu.dot_dimension_numbers<[1], [0], [0], [1], [0, 0, 1, 1], [], []>} : vector<16x32xf32>, vector<32x32xf32>, vector<16x32xf32> -> vector<16x32xf32>
    %c0_49 = arith.constant 0 : index
    %c0_50 = arith.constant 0 : index
    %208 = vector.load %arg4[%c0_49, %c0_50] : memref<1x32xf32, #tpu.memory_space<vmem>>, vector<1x32xf32>
    %209 = vector.broadcast %208 : vector<1x32xf32> to vector<16x32xf32>
    %210 = arith.addf %207, %209 : vector<16x32xf32>
    %c0_51 = arith.constant 0 : index
    %c0_52 = arith.constant 0 : index
    %211 = vector.load %arg6[%c0_51, %c0_52] : memref<16x32xf32, #tpu.memory_space<vmem>>, vector<16x32xf32>
    tpu.vector_store %arg6[%c0_51, %c0_52], %210 {strides = array<i32>} : memref<16x32xf32, #tpu.memory_space<vmem>>, vector<16x32xf32>,
    return
  }
  func.func @transform_0(%arg0: i32) -> (i32, i32) {
    %c0_i32 = arith.constant 0 : i32
    %c0_i32_0 = arith.constant 0 : i32
    return %arg0, %c0_i32 : i32, i32
  }
  func.func @transform_1(%arg0: i32) -> (i32, i32) {
    %c0_i32 = arith.constant 0 : i32
    %c0_i32_0 = arith.constant 0 : i32
    %c0_i32_1 = arith.constant 0 : i32
    return %c0_i32, %c0_i32_0 : i32, i32
  }
  func.func @transform_2(%arg0: i32) -> (i32, i32) {
    %c0_i32 = arith.constant 0 : i32
    %c0_i32_0 = arith.constant 0 : i32
    %c0_i32_1 = arith.constant 0 : i32
    return %c0_i32, %c0_i32_0 : i32, i32
  }
  func.func @transform_3(%arg0: i32) -> (i32, i32) {
    %c0_i32 = arith.constant 0 : i32
    %c0_i32_0 = arith.constant 0 : i32
    %c0_i32_1 = arith.constant 0 : i32
    return %c0_i32, %c0_i32_0 : i32, i32
  }
  func.func @transform_4(%arg0: i32) -> (i32, i32) {
    %c0_i32 = arith.constant 0 : i32
    %c0_i32_0 = arith.constant 0 : i32
    %c0_i32_1 = arith.constant 0 : i32
    return %c0_i32, %c0_i32_0 : i32, i32
  }
  func.func @transform_5(%arg0: i32) -> (i32, i32) {
    %c0_i32 = arith.constant 0 : i32
    %c0_i32_0 = arith.constant 0 : i32
    return %arg0, %c0_i32 : i32, i32
  }
}

</mosaic_0001>

<llo_original>
// kernel: tpu_custom_call.1
$region0: #{tpu_custom_call.1}
  #allocation0 [shape = 'u32[]', space=smem, size = 0x4, offset = 0x4, fixed_abs, tag = 'smem constant byte address 0x4 - core index']
  #allocation1 [shape = 'u32[144,128]{1,0:T(1,128)}', space=vmem, size = 0x12000, scoped, tag = 'internal scratch']
  %s0 = inlined_call_operand.hbm [shape: f32[32,32], index: 0, kind: input, shape index: {}]
  %s1 = inlined_call_operand.hbm [shape: f32[32,96], index: 1, kind: input, shape index: {}]
  %s2 = inlined_call_operand.hbm [shape: f32[32,32], index: 2, kind: input, shape index: {}]
  %s3 = inlined_call_operand.vmem [shape: f32[1,32], index: 3, kind: input, shape index: {}]
  %s4 = inlined_call_operand.vmem [shape: f32[8,8], index: 4, kind: input, shape index: {}]
  %s5 = inlined_call_operand.hbm [shape: f32[32,32], index: 5, kind: output, shape index: {}]
  %s6 = sld [smem:[#allocation0]]
  $region65: #{tpu_custom_call.1} parent=0
    _
  %s8 = ssub.s32 1, %s6
  %s9 = scalar_select 0, %s8, %s6
  $region1: #{tpu_custom_call.1} parent=0
    #allocation2 [shape = 'u8[16384]{0}', space=vmem, size = 0x4000, scoped, tag = 'input window, operand 0']
    #allocation3 [shape = 's32[2]{0}', space=sflag, size = 0x8, scoped, tag = 'scoped memory for tpu_custom_call.1']
    #allocation4 [shape = 's32[2]{0}', space=sflag, size = 0x8, scoped, tag = 'scoped memory for tpu_custom_call.1']
    #allocation5 [shape = 'u8[16384]{0}', space=vmem, size = 0x4000, scoped, tag = 'input window, operand 1, single buffered']
    #allocation6 [shape = 's32[1]{0}', space=sflag, size = 0x4, scoped, tag = 'scoped memory for tpu_custom_call.1']
    #allocation7 [shape = 'u8[16384]{0}', space=vmem, size = 0x4000, scoped, tag = 'input window, operand 2, single buffered']
    #allocation8 [shape = 'u8[16384]{0}', space=vmem, size = 0x4000, scoped, tag = 'output window, operand 0']
    %10 = vsyncpa [#allocation3], 0
    %s11 = scalar_lea.sflag [#allocation3], 1
    %12 = vsyncpa %s11, 0
    %13 = vsyncpa [#allocation6], 0
    %14 = vsyncpa [#allocation4], 0
    %s15 = scalar_lea.sflag [#allocation4], 1
    %16 = vsyncpa %s15, 0
    loop: start=0, step=1, limit=4
    $region2: #{tpu_custom_call.1} parent=1 // loop_pre_header
      _
    $region3: #{tpu_custom_call.1} parent=1 // loop_header
      %s18 = sphi 0, %s22
      %p19 = scmp.ge.s32.totalorder %s18, 4
      %s28 = sphi 0, %s30
      %s31 = sphi 0, %s28
      %s32 = sphi 0, %s31
      %s48 = sphi 0, %s32
      %s52 = sphi 0, %s52
      %s54 = sphi 0, %s52
      %s55 = sphi 0, %s54
      %s69 = sphi 0, %s55
      %s73 = sphi 0, %s73
      %s75 = sphi 0, %s73
      %s76 = sphi 0, %s75
      %s90 = sphi 0, %s76
      %s94 = sphi 0, %s94
      %s96 = sphi 0, %s94
      %s97 = sphi 0, %s96
      %s111 = sphi 0, %s97
      %s115 = sphi 0, %s115
      %s117 = sphi 0, %s115
      %s118 = sphi 0, %s117
      %s132 = sphi 0, %s118
      %s138 = sphi 0, %s140
      %s141 = sphi 0, %s138
      %s142 = sphi 0, %s141
      %s158 = sphi 0, %s142
    $region4: #{tpu_custom_call.1} parent=1 // loop_header_branch
      %21 = sbr.rel (%p19) target = $region8
    $region5: #{tpu_custom_call.1} parent=1 // loop_body
      %s23 = ssub.s32 %s18, 1
      %s24 = ssub.s32 %s18, 2
      %s25 = sadd.s32 %s18, 1
      %s26 = ssub.s32 %s18, %s25
      %p27 = scmp.eq.s32.totalorder %s26, 0
      %s29 = sadd.s32 %s28, 1
      %s30 = scalar_select %p27, %s28, %s29
      %p33 = pneg %p27
      %p34 = scmp.eq.s32.totalorder %s18, 1
      %p35 = por %p33, %p34
      %p36 = scmp.ne.s32.totalorder %s28, %s31
      %p37 = scmp.eq.s32.totalorder %s18, 0
      %p38 = por %p36, %p37
      %p39 = scmp.ne.s32.totalorder %s28, %s31
      %p40 = scmp.eq.s32.totalorder %s23, 1
      %p41 = por %p39, %p40
      %p42 = scmp.ne.s32.totalorder %s31, %s32
      %p43 = scmp.eq.s32.totalorder %s23, 0
      %p44 = por %p42, %p43
      %p45 = scmp.ne.s32.totalorder %s31, %s32
      %p46 = scmp.eq.s32.totalorder %s24, 1
      %p47 = por %p45, %p46
      %p49 = scmp.ne.s32.totalorder %s32, %s48
      %p50 = scmp.eq.s32.totalorder %s24, 0
      %p51 = por %p49, %p50
      %s53 = sadd.s32 %s52, 1
      %p56 = scmp.eq.s32.totalorder %s18, 1
      %p57 = scmp.ne.s32.totalorder %s52, %s54
      %p58 = scmp.eq.s32.totalorder %s18, 0
      %p59 = por %p57, %p58
      %p60 = scmp.ne.s32.totalorder %s52, %s54
      %p61 = scmp.eq.s32.totalorder %s23, 1
      %p62 = por %p60, %p61
      %p63 = scmp.ne.s32.totalorder %s54, %s55
      %p64 = scmp.eq.s32.totalorder %s23, 0
      %p65 = por %p63, %p64
      %p66 = scmp.ne.s32.totalorder %s54, %s55
      %p67 = scmp.eq.s32.totalorder %s24, 1
      %p68 = por %p66, %p67
      %p70 = scmp.ne.s32.totalorder %s55, %s69
      %p71 = scmp.eq.s32.totalorder %s24, 0
      %p72 = por %p70, %p71
      %s74 = sadd.s32 %s73, 1
      %p77 = scmp.eq.s32.totalorder %s18, 1
      %p78 = scmp.ne.s32.totalorder %s73, %s75
      %p79 = scmp.eq.s32.totalorder %s18, 0
      %p80 = por %p78, %p79
      %p81 = scmp.ne.s32.totalorder %s73, %s75
      %p82 = scmp.eq.s32.totalorder %s23, 1
      %p83 = por %p81, %p82
      %p84 = scmp.ne.s32.totalorder %s75, %s76
      %p85 = scmp.eq.s32.totalorder %s23, 0
      %p86 = por %p84, %p85
      %p87 = scmp.ne.s32.totalorder %s75, %s76
      %p88 = scmp.eq.s32.totalorder %s24, 1
      %p89 = por %p87, %p88
      %p91 = scmp.ne.s32.totalorder %s76, %s90
      %p92 = scmp.eq.s32.totalorder %s24, 0
      %p93 = por %p91, %p92
      %s95 = sadd.s32 %s94, 1
      %p98 = scmp.eq.s32.totalorder %s18, 1
      %p99 = scmp.ne.s32.totalorder %s94, %s96
      %p100 = scmp.eq.s32.totalorder %s18, 0
      %p101 = por %p99, %p100
      %p102 = scmp.ne.s32.totalorder %s94, %s96
      %p103 = scmp.eq.s32.totalorder %s23, 1
      %p104 = por %p102, %p103
      %p105 = scmp.ne.s32.totalorder %s96, %s97
      %p106 = scmp.eq.s32.totalorder %s23, 0
      %p107 = por %p105, %p106
      %p108 = scmp.ne.s32.totalorder %s96, %s97
      %p109 = scmp.eq.s32.totalorder %s24, 1
      %p110 = por %p108, %p109
      %p112 = scmp.ne.s32.totalorder %s97, %s111
      %p113 = scmp.eq.s32.totalorder %s24, 0
      %p114 = por %p112, %p113
      %s116 = sadd.s32 %s115, 1
      %p119 = scmp.eq.s32.totalorder %s18, 1
      %p120 = scmp.ne.s32.totalorder %s115, %s117
      %p121 = scmp.eq.s32.totalorder %s18, 0
      %p122 = por %p120, %p121
      %p123 = scmp.ne.s32.totalorder %s115, %s117
      %p124 = scmp.eq.s32.totalorder %s23, 1
      %p125 = por %p123, %p124
      %p126 = scmp.ne.s32.totalorder %s117, %s118
      %p127 = scmp.eq.s32.totalorder %s23, 0
      %p128 = por %p126, %p127
      %p129 = scmp.ne.s32.totalorder %s117, %s118
      %p130 = scmp.eq.s32.totalorder %s24, 1
      %p131 = por %p129, %p130
      %p133 = scmp.ne.s32.totalorder %s118, %s132
      %p134 = scmp.eq.s32.totalorder %s24, 0
      %p135 = por %p133, %p134
      %s136 = ssub.s32 %s18, %s25
      %p137 = scmp.eq.s32.totalorder %s136, 0
      %s139 = sadd.s32 %s138, 1
      %s140 = scalar_select %p137, %s138, %s139
      %p143 = pneg %p137
      %p144 = scmp.eq.s32.totalorder %s18, 1
      %p145 = por %p143, %p144
      %p146 = scmp.ne.s32.totalorder %s138, %s141
      %p147 = scmp.eq.s32.totalorder %s18, 0
      %p148 = por %p146, %p147
      %p149 = scmp.ne.s32.totalorder %s138, %s141
      %p150 = scmp.eq.s32.totalorder %s23, 1
      %p151 = por %p149, %p150
      %p152 = scmp.ne.s32.totalorder %s141, %s142
      %p153 = scmp.eq.s32.totalorder %s23, 0
      %p154 = por %p152, %p153
      %p155 = scmp.ne.s32.totalorder %s141, %s142
      %p156 = scmp.eq.s32.totalorder %s24, 1
      %p157 = por %p155, %p156
      %p159 = scmp.ne.s32.totalorder %s142, %s158
      %p160 = scmp.eq.s32.totalorder %s24, 0
      %p161 = por %p159, %p160
      %p162 = scmp.le.s32.totalorder 1, %s18
      %p163 = scmp.lt.s32.totalorder %s18, 3
      %p164 = pnand %p162, %p163
      %p165 = pneg %p164
      // Predicated region
      $region9: #{tpu_custom_call.1} parent=5 // pred_check
        _
      $region10: #{tpu_custom_call.1} parent=5 // pred_check_branch
        %167 = sbr.rel (%p164) target = $region12
      $region11: #{tpu_custom_call.1} parent=5 // pred_region
        %s168 = ssub.s32 %s18, 1
        // Predicated region
        $region13: #{tpu_custom_call.1} parent=11 // pred_check
          %p169 = pneg %p65
        $region14: #{tpu_custom_call.1} parent=11 // pred_check_branch
          %171 = sbr.rel (%p169) target = $region16
        $region15: #{tpu_custom_call.1} parent=11 // pred_region
          %s173 = ssub.s32 512, 512
          %174 = vsyncadd [#allocation6], %s173
          %s175 = sshll.u32 [#allocation5], 4
          %s176 = int_to_ptr.vmem [resolvable:$true] %s175
          %181 = dma.hbm_to_vmem [thread:$0]  %s1, 512, %s176, [#allocation6], 128, 128, 8
        $region16: #{tpu_custom_call.1} parent=11 // pred_fallthru
          _
        // Predicated region
        $region17: #{tpu_custom_call.1} parent=11 // pred_check
          %p182 = pneg %p86
        $region18: #{tpu_custom_call.1} parent=11 // pred_check_branch
          %184 = sbr.rel (%p182) target = $region20
        $region19: #{tpu_custom_call.1} parent=11 // pred_region
          %s186 = ssub.s32 512, 512
          %187 = vsyncadd [#allocation6], %s186
          %s188 = sshll.u32 [#allocation7], 4
          %s189 = int_to_ptr.vmem [resolvable:$true] %s188
          %194 = dma.hbm_to_vmem [thread:$0]  %s2, 512, %s189, [#allocation6], 128, 128, 8
        $region20: #{tpu_custom_call.1} parent=11 // pred_fallthru
          _
        // Predicated region
        $region21: #{tpu_custom_call.1} parent=11 // pred_check
          %p195 = pneg %p107
        $region22: #{tpu_custom_call.1} parent=11 // pred_check_branch
          %197 = sbr.rel (%p195) target = $region24
        $region23: #{tpu_custom_call.1} parent=11 // pred_region
          _
        $region24: #{tpu_custom_call.1} parent=11 // pred_fallthru
          _
        // Predicated region
        $region25: #{tpu_custom_call.1} parent=11 // pred_check
          %p198 = pneg %p128
        $region26: #{tpu_custom_call.1} parent=11 // pred_check_branch
          %200 = sbr.rel (%p198) target = $region28
        $region27: #{tpu_custom_call.1} parent=11 // pred_region
          _
        $region28: #{tpu_custom_call.1} parent=11 // pred_fallthru
          _
      $region12: #{tpu_custom_call.1} parent=5 // pred_fallthru
        _
      %p201 = scmp.lt.s32.totalorder %s18, 2
      // Predicated region
      $region29: #{tpu_custom_call.1} parent=5 // pred_check
        %p202 = pneg %p201
      $region30: #{tpu_custom_call.1} parent=5 // pred_check_branch
        %204 = sbr.rel (%p202) target = $region32
      $region31: #{tpu_custom_call.1} parent=5 // pred_region
        // Predicated region
        $region33: #{tpu_custom_call.1} parent=31 // pred_check
          %p205 = pneg %p38
        $region34: #{tpu_custom_call.1} parent=31 // pred_check_branch
          %207 = sbr.rel (%p205) target = $region36
        $region35: #{tpu_custom_call.1} parent=31 // pred_region
          %s208 = sand.u32 %s28, 1
          %s209 = scalar_lea.sflag [#allocation3], %s208
          %s210 = sand.u32 %s28, 1
          %s211 = smul.addr %s210, 16
          %s212 = scalar_lea.vmem [#allocation2], %s211
          %s213 = smul.u32 2, %s18
          %s215 = ssub.s32 256, 256
          %216 = vsyncadd %s209, %s215
          %s217 = smul.addr %s213, 128
          %s218 = scalar_lea.hbm %s0, %s217
          %s219 = sshll.u32 %s212, 4
          %s220 = int_to_ptr.vmem [resolvable:$true] %s219
          %225 = dma.hbm_to_vmem [thread:$0]  %s218, 256, %s220, %s209, 128, 128, 8
        $region36: #{tpu_custom_call.1} parent=31 // pred_fallthru
          _
      $region32: #{tpu_custom_call.1} parent=5 // pred_fallthru
        _
      %p226 = scmp.le.s32.totalorder 1, %s18
      %p227 = scmp.lt.s32.totalorder %s18, 3
      %p228 = pnand %p226, %p227
      %p229 = pneg %p228
      // Predicated region
      $region37: #{tpu_custom_call.1} parent=5 // pred_check
        _
      $region38: #{tpu_custom_call.1} parent=5 // pred_check_branch
        %231 = sbr.rel (%p228) target = $region40
      $region39: #{tpu_custom_call.1} parent=5 // pred_region
        %s232 = ssub.s32 %s18, 1
        %s233 = sand.u32 %s31, 1
        %s234 = scalar_lea.sflag [#allocation3], %s233
        %s235 = sand.u32 %s31, 1
        %s236 = smul.addr %s235, 16
        %s237 = scalar_lea.vmem [#allocation2], %s236
        // Predicated region
        $region41: #{tpu_custom_call.1} parent=39 // pred_check
          %p238 = pneg %p44
        $region42: #{tpu_custom_call.1} parent=39 // pred_check_branch
          %240 = sbr.rel (%p238) target = $region44
        $region43: #{tpu_custom_call.1} parent=39 // pred_region
          %241 = dma.done %s234, 256
        $region44: #{tpu_custom_call.1} parent=39 // pred_fallthru
          _
        // Predicated region
        $region45: #{tpu_custom_call.1} parent=39 // pred_check
          %p242 = pneg %p65
        $region46: #{tpu_custom_call.1} parent=39 // pred_check_branch
          %244 = sbr.rel (%p242) target = $region48
        $region47: #{tpu_custom_call.1} parent=39 // pred_region
          %245 = dma.done [#allocation6], 512
        $region48: #{tpu_custom_call.1} parent=39 // pred_fallthru
          _
        // Predicated region
        $region49: #{tpu_custom_call.1} parent=39 // pred_check
          %p246 = pneg %p86
        $region50: #{tpu_custom_call.1} parent=39 // pred_check_branch
          %248 = sbr.rel (%p246) target = $region52
        $region51: #{tpu_custom_call.1} parent=39 // pred_region
          %249 = dma.done [#allocation6], 512
        $region52: #{tpu_custom_call.1} parent=39 // pred_fallthru
          _
        %s250 = sand.u32 %s31, 1
        %s251 = scalar_lea.sflag [#allocation3], %s250
        %s252 = sand.u32 %s31, 1
        %s253 = smul.addr %s252, 16
        %s254 = scalar_lea.vmem [#allocation2], %s253
        %p255 = pneg %p44
        %p256 = pneg %p41
        %p257 = pneg %p65
        %p258 = pneg %p62
        %p259 = pneg %p86
        %p260 = pneg %p83
        %p261 = pneg %p107
        %p262 = pneg %p104
        %p263 = pneg %p128
        %p264 = pneg %p125
        %p265 = pneg %p154
        %p266 = pneg %p151
        %s267 = sand.u32 %s141, 1
        %s268 = scalar_lea.sflag [#allocation4], %s267
        %s269 = sand.u32 %s141, 1
        %s270 = smul.addr %s269, 16
        %s271 = scalar_lea.vmem [#allocation8], %s270
        %s272 = smul.u32 2, %s23
        %s273 = smul.u32 2, %s23
        %v274 = vld [vmem:[%s237] sm:$0xff]
        %v275 = vld [vmem:[%s237 + $0x8] sm:$0xff]
        %v276 = vld [vmem:[#allocation5] sm:$0xff]
        %v277 = vld [vmem:[#allocation5 + $0x8] sm:$0xff]
        %v278 = vld [vmem:[#allocation5 + $0x10] sm:$0xff]
        %v279 = vld [vmem:[#allocation5 + $0x18] sm:$0xff]
        %vm280 = vcmask 261120
        %v282 = vsel %vm280, %v274, 0
        %v285 = vsel %vm280, %v275, 0
        %287 = vmatprep.subr.mxu0 0.0
        %288 = vmatpush1.msra.mxu0 %v276
        %289 = vmatprep.subr.mxu0 0.0
        %290 = vmatpush1.msra.mxu0 %v277
        %291 = vmatprep.subr.mxu0 0.0
        %292 = vmatpush1.msra.mxu0 %v278
        %293 = vmatprep.subr.mxu0 0.0
        %294 = vmatpush1.msra.mxu0 %v279
        %295 = vmatprep.subr.mxu0 0.0
        %296 = vmatpush1.msra.mxu0 0.0
        %297 = vmatprep.subr.mxu0 0.0
        %298 = vmatpush1.msra.mxu0 0.0
        %299 = vmatprep.subr.mxu0 0.0
        %300 = vmatpush1.msra.mxu0 0.0
        %301 = vmatprep.subr.mxu0 0.0
        %302 = vmatpush1.msra.mxu0 0.0
        %303 = vmatprep.subr.mxu0 0.0
        %304 = vmatpush1.msra.mxu0 0.0
        %305 = vmatprep.subr.mxu0 0.0
        %306 = vmatpush1.msra.mxu0 0.0
        %307 = vmatprep.subr.mxu0 0.0
        %308 = vmatpush1.msra.mxu0 0.0
        %309 = vmatprep.subr.mxu0 0.0
        %310 = vmatpush1.msra.mxu0 0.0
        %311 = vmatprep.subr.mxu0 0.0
        %312 = vmatpush1.msra.mxu0 0.0
        %313 = vmatprep.subr.mxu0 0.0
        %314 = vmatpush1.msra.mxu0 0.0
        %315 = vmatprep.subr.mxu0 0.0
        %316 = vmatpush1.msra.mxu0 0.0
        %317 = vmatprep.subr.mxu0 0.0
        %318 = vmatpush1.msra.mxu0 0.0
        %319 = vmatprep.subr.mxu0 0.0
        %320 = vmatpush1.msra.mxu0 0.0
        %321 = vmatprep.subr.mxu0 0.0
        %322 = vmatpush1.msra.mxu0 0.0
        %323 = vmatprep.subr.mxu0 0.0
        %324 = vmatpush1.msra.mxu0 0.0
        %325 = vmatprep.subr.mxu0 0.0
        %326 = vmatpush1.msra.mxu0 0.0
        %327 = vmatprep.subr.mxu0 0.0
        %328 = vmatpush1.msra.mxu0 0.0
        %329 = vmatprep.subr.mxu0 0.0
        %330 = vmatpush1.msra.mxu0 0.0
        %331 = vmatprep.subr.mxu0 0.0
        %332 = vmatpush1.msra.mxu0 0.0
        %333 = vmatprep.subr.mxu0 0.0
        %334 = vmatpush1.msra.mxu0 0.0
        %335 = vmatprep.subr.mxu0 0.0
        %336 = vmatpush1.msra.mxu0 0.0
        %337 = vmatprep.subr.mxu0 0.0
        %338 = vmatpush1.msra.mxu0 0.0
        %339 = vmatprep.subr.mxu0 0.0
        %340 = vmatpush1.msra.mxu0 0.0
        %341 = vmatprep.subr.mxu0 0.0
        %342 = vmatpush1.msra.mxu0 0.0
        %343 = vmatprep.subr.mxu0 0.0
        %344 = vmatpush1.msra.mxu0 0.0
        %345 = vmatprep.subr.mxu0 0.0
        %346 = vmatpush1.msra.mxu0 0.0
        %347 = vmatprep.subr.mxu0 0.0
        %348 = vmatpush1.msra.mxu0 0.0
        %349 = vmatprep.subr.mxu0 0.0
        %350 = vmatpush1.msra.mxu0 0.0
        %351 = vmatprep.mubr.f32.mxu0 0.0
        %352 = vmatmul.mubr.f32.gmra.mrb[0].mxu0 %v282
        %v353 = vpop.f32.mrb[0].mxu0
        %v354 = vadd.f32 0.0, %v353
        %v355 = vpop.f32.mrb[0].mxu0
        %356 = vmatprep.mubr.f32.mxu0 0.0
        %357 = vmatmul.mubr.f32.gmra.mrb[0].mxu0 %v285
        %v358 = vpop.f32.mrb[0].mxu0
        %v359 = vadd.f32 0.0, %v358
        %v360 = vpop.f32.mrb[0].mxu0
        %361 = vdwg.mxu0
        %v362 = vmul.f32 %v354, 0.5
        %v363 = vmul.f32 %v359, 0.5
        %v364 = vld [vmem:[%s4] sm:$0xff]
        %366 = vrot.lane.b32.xlu0 %v354, 96
        %v367 = vpop.permute.xlu0 %366
        %vm368 = vcmask 31744
        %v370 = vsel %vm368, %v362, 0
        %v372 = vsel %vm368, %v367, 0
        %374 = vmatprep.subr.mxu0 0.0
        %375 = vmatpush1.xpose.msra.mxu0 %v372
        %376 = vmatprep.subr.mxu0 0.0
        %377 = vmatpush1.xpose.msra.mxu0 0.0
        %378 = vmatprep.subr.mxu0 0.0
        %379 = vmatpush1.xpose.msra.mxu0 0.0
        %380 = vmatprep.subr.mxu0 0.0
        %381 = vmatpush1.xpose.msra.mxu0 0.0
        %382 = vmatprep.subr.mxu0 0.0
        %383 = vmatpush1.xpose.msra.mxu0 0.0
        %384 = vmatprep.subr.mxu0 0.0
        %385 = vmatpush1.xpose.msra.mxu0 0.0
        %386 = vmatprep.subr.mxu0 0.0
        %387 = vmatpush1.xpose.msra.mxu0 0.0
        %388 = vmatprep.subr.mxu0 0.0
        %389 = vmatpush1.xpose.msra.mxu0 0.0
        %390 = vmatprep.subr.mxu0 0.0
        %391 = vmatpush1.xpose.msra.mxu0 0.0
        %392 = vmatprep.subr.mxu0 0.0
        %393 = vmatpush1.xpose.msra.mxu0 0.0
        %394 = vmatprep.subr.mxu0 0.0
        %395 = vmatpush1.xpose.msra.mxu0 0.0
        %396 = vmatprep.subr.mxu0 0.0
        %397 = vmatpush1.xpose.msra.mxu0 0.0
        %398 = vmatprep.subr.mxu0 0.0
        %399 = vmatpush1.xpose.msra.mxu0 0.0
        %400 = vmatprep.subr.mxu0 0.0
        %401 = vmatpush1.xpose.msra.mxu0 0.0
        %402 = vmatprep.subr.mxu0 0.0
        %403 = vmatpush1.xpose.msra.mxu0 0.0
        %404 = vmatprep.subr.mxu0 0.0
        %405 = vmatpush1.xpose.msra.mxu0 0.0
        %406 = vmatprep.subr.mxu0 0.0
        %407 = vmatpush1.xpose.msra.mxu0 0.0
        %408 = vmatprep.subr.mxu0 0.0
        %409 = vmatpush1.xpose.msra.mxu0 0.0
        %410 = vmatprep.subr.mxu0 0.0
        %411 = vmatpush1.xpose.msra.mxu0 0.0
        %412 = vmatprep.subr.mxu0 0.0
        %413 = vmatpush1.xpose.msra.mxu0 0.0
        %414 = vmatprep.subr.mxu0 0.0
        %415 = vmatpush1.xpose.msra.mxu0 0.0
        %416 = vmatprep.subr.mxu0 0.0
        %417 = vmatpush1.xpose.msra.mxu0 0.0
        %418 = vmatprep.subr.mxu0 0.0
        %419 = vmatpush1.xpose.msra.mxu0 0.0
        %420 = vmatprep.subr.mxu0 0.0
        %421 = vmatpush1.xpose.msra.mxu0 0.0
        %422 = vmatprep.subr.mxu0 0.0
        %423 = vmatpush1.xpose.msra.mxu0 0.0
        %424 = vmatprep.subr.mxu0 0.0
        %425 = vmatpush1.xpose.msra.mxu0 0.0
        %426 = vmatprep.subr.mxu0 0.0
        %427 = vmatpush1.xpose.msra.mxu0 0.0
        %428 = vmatprep.subr.mxu0 0.0
        %429 = vmatpush1.xpose.msra.mxu0 0.0
        %430 = vmatprep.subr.mxu0 0.0
        %431 = vmatpush1.xpose.msra.mxu0 0.0
        %432 = vmatprep.subr.mxu0 0.0
        %433 = vmatpush1.xpose.msra.mxu0 0.0
        %434 = vmatprep.subr.mxu0 0.0
        %435 = vmatpush1.xpose.msra.mxu0 0.0
        %436 = vmatprep.subr.mxu0 0.0
        %437 = vmatpush1.xpose.msra.mxu0 0.0
        %438 = vmatprep.mubr.f32.mxu0 0.0
        %439 = vmatmul.mubr.f32.gmra.mrb[0].mxu0 %v370
        %v440 = vpop.f32.mrb[0].mxu0
        %v441 = vadd.f32 %v364, %v440
        %v442 = vpop.f32.mrb[0].mxu0
        %443 = vdwg.mxu0
        %445 = vrot.lane.b32.xlu0 %v359, 96
        %v446 = vpop.permute.xlu0 %445
        %v448 = vsel %vm368, %v363, 0
        %v450 = vsel %vm368, %v446, 0
        %452 = vmatprep.subr.mxu0 0.0
        %453 = vmatpush1.xpose.msra.mxu0 %v450
        %454 = vmatprep.subr.mxu0 0.0
        %455 = vmatpush1.xpose.msra.mxu0 0.0
        %456 = vmatprep.subr.mxu0 0.0
        %457 = vmatpush1.xpose.msra.mxu0 0.0
        %458 = vmatprep.subr.mxu0 0.0
        %459 = vmatpush1.xpose.msra.mxu0 0.0
        %460 = vmatprep.subr.mxu0 0.0
        %461 = vmatpush1.xpose.msra.mxu0 0.0
        %462 = vmatprep.subr.mxu0 0.0
        %463 = vmatpush1.xpose.msra.mxu0 0.0
        %464 = vmatprep.subr.mxu0 0.0
        %465 = vmatpush1.xpose.msra.mxu0 0.0
        %466 = vmatprep.subr.mxu0 0.0
        %467 = vmatpush1.xpose.msra.mxu0 0.0
        %468 = vmatprep.subr.mxu0 0.0
        %469 = vmatpush1.xpose.msra.mxu0 0.0
        %470 = vmatprep.subr.mxu0 0.0
        %471 = vmatpush1.xpose.msra.mxu0 0.0
        %472 = vmatprep.subr.mxu0 0.0
        %473 = vmatpush1.xpose.msra.mxu0 0.0
        %474 = vmatprep.subr.mxu0 0.0
        %475 = vmatpush1.xpose.msra.mxu0 0.0
        %476 = vmatprep.subr.mxu0 0.0
        %477 = vmatpush1.xpose.msra.mxu0 0.0
        %478 = vmatprep.subr.mxu0 0.0
        %479 = vmatpush1.xpose.msra.mxu0 0.0
        %480 = vmatprep.subr.mxu0 0.0
        %481 = vmatpush1.xpose.msra.mxu0 0.0
        %482 = vmatprep.subr.mxu0 0.0
        %483 = vmatpush1.xpose.msra.mxu0 0.0
        %484 = vmatprep.subr.mxu0 0.0
        %485 = vmatpush1.xpose.msra.mxu0 0.0
        %486 = vmatprep.subr.mxu0 0.0
        %487 = vmatpush1.xpose.msra.mxu0 0.0
        %488 = vmatprep.subr.mxu0 0.0
        %489 = vmatpush1.xpose.msra.mxu0 0.0
        %490 = vmatprep.subr.mxu0 0.0
        %491 = vmatpush1.xpose.msra.mxu0 0.0
        %492 = vmatprep.subr.mxu0 0.0
        %493 = vmatpush1.xpose.msra.mxu0 0.0
        %494 = vmatprep.subr.mxu0 0.0
        %495 = vmatpush1.xpose.msra.mxu0 0.0
        %496 = vmatprep.subr.mxu0 0.0
        %497 = vmatpush1.xpose.msra.mxu0 0.0
        %498 = vmatprep.subr.mxu0 0.0
        %499 = vmatpush1.xpose.msra.mxu0 0.0
        %500 = vmatprep.subr.mxu0 0.0
        %501 = vmatpush1.xpose.msra.mxu0 0.0
        %502 = vmatprep.subr.mxu0 0.0
        %503 = vmatpush1.xpose.msra.mxu0 0.0
        %504 = vmatprep.subr.mxu0 0.0
        %505 = vmatpush1.xpose.msra.mxu0 0.0
        %506 = vmatprep.subr.mxu0 0.0
        %507 = vmatpush1.xpose.msra.mxu0 0.0
        %508 = vmatprep.subr.mxu0 0.0
        %509 = vmatpush1.xpose.msra.mxu0 0.0
        %510 = vmatprep.subr.mxu0 0.0
        %511 = vmatpush1.xpose.msra.mxu0 0.0
        %512 = vmatprep.subr.mxu0 0.0
        %513 = vmatpush1.xpose.msra.mxu0 0.0
        %514 = vmatprep.subr.mxu0 0.0
        %515 = vmatpush1.xpose.msra.mxu0 0.0
        %516 = vmatprep.mubr.f32.mxu0 0.0
        %517 = vmatmul.mubr.f32.gmra.mrb[0].mxu0 %v448
        %v518 = vpop.f32.mrb[0].mxu0
        %v519 = vadd.f32 %v364, %v518
        %v520 = vpop.f32.mrb[0].mxu0
        %521 = vdwg.mxu0
        %vm522 = vcmask 64512
        %v523 = vsel %vm522, %v441, -inf
        %524 = vmax.xlane.f32.xlu0 %v523
        %v525 = vpop.xlane.xlu0 %524
        %v526 = vsel %vm522, %v519, -inf
        %527 = vmax.xlane.f32.xlu0 %v526
        %v528 = vpop.xlane.xlu0 %527
        %v529 = vsub.f32 %v441, %v525
        %v530 = vsub.f32 %v519, %v528
        %v531 = vmul.f32 %v529, 1.442695
        %v532 = vpow.pop %v531
        %v533 = vmul.f32 %v530, 1.442695
        %v534 = vpow.pop %v533
        %v535 = vsel %vm522, %v532, 0.0
        %536 = vadd.xlane.f32.xlu0 %v535
        %v537 = vpop.xlane.xlu0 %536
        %v538 = vsel %vm522, %v534, 0.0
        %539 = vadd.xlane.f32.xlu0 %v538
        %v540 = vpop.xlane.xlu0 %539
        %v541 = vrcp.pop %v537
        %v542 = vrcp.pop %v540
        %v543 = vmul.f32 %v532, %v541
        %v544 = vmul.f32 %v534, %v542
        %v545 = vmul.f32 %v543, 1.442695
        %v546 = vpow.pop %v545
        %v547 = vmul.f32 %v544, 1.442695
        %v548 = vpow.pop %v547
        %v549 = vsel %vm522, %v546, 0.0
        %550 = vadd.xlane.f32.xlu0 %v549
        %v551 = vpop.xlane.xlu0 %550
        %v552 = vsel %vm522, %v548, 0.0
        %553 = vadd.xlane.f32.xlu0 %v552
        %v554 = vpop.xlane.xlu0 %553
        %v555 = vrcp.pop %v551
        %v556 = vrcp.pop %v554
        %v557 = vmul.f32 %v546, %v555
        %v558 = vmul.f32 %v548, %v556
        %559 = vrot.lane.b32.xlu0 %v354, 64
        %v560 = vpop.permute.xlu0 %559
        %v563 = vsel %vm522, %v557, 0
        %565 = vmatprep.subr.mxu0 0.0
        %566 = vmatpush1.msra.mxu0 %v560
        %567 = vmatprep.subr.mxu0 0.0
        %568 = vmatpush1.msra.mxu0 0.0
        %569 = vmatprep.subr.mxu0 0.0
        %570 = vmatpush1.msra.mxu0 0.0
        %571 = vmatprep.subr.mxu0 0.0
        %572 = vmatpush1.msra.mxu0 0.0
        %573 = vmatprep.subr.mxu0 0.0
        %574 = vmatpush1.msra.mxu0 0.0
        %575 = vmatprep.subr.mxu0 0.0
        %576 = vmatpush1.msra.mxu0 0.0
        %577 = vmatprep.subr.mxu0 0.0
        %578 = vmatpush1.msra.mxu0 0.0
        %579 = vmatprep.subr.mxu0 0.0
        %580 = vmatpush1.msra.mxu0 0.0
        %581 = vmatprep.subr.mxu0 0.0
        %582 = vmatpush1.msra.mxu0 0.0
        %583 = vmatprep.subr.mxu0 0.0
        %584 = vmatpush1.msra.mxu0 0.0
        %585 = vmatprep.subr.mxu0 0.0
        %586 = vmatpush1.msra.mxu0 0.0
        %587 = vmatprep.subr.mxu0 0.0
        %588 = vmatpush1.msra.mxu0 0.0
        %589 = vmatprep.subr.mxu0 0.0
        %590 = vmatpush1.msra.mxu0 0.0
        %591 = vmatprep.subr.mxu0 0.0
        %592 = vmatpush1.msra.mxu0 0.0
        %593 = vmatprep.subr.mxu0 0.0
        %594 = vmatpush1.msra.mxu0 0.0
        %595 = vmatprep.subr.mxu0 0.0
        %596 = vmatpush1.msra.mxu0 0.0
        %597 = vmatprep.subr.mxu0 0.0
        %598 = vmatpush1.msra.mxu0 0.0
        %599 = vmatprep.subr.mxu0 0.0
        %600 = vmatpush1.msra.mxu0 0.0
        %601 = vmatprep.subr.mxu0 0.0
        %602 = vmatpush1.msra.mxu0 0.0
        %603 = vmatprep.subr.mxu0 0.0
        %604 = vmatpush1.msra.mxu0 0.0
        %605 = vmatprep.subr.mxu0 0.0
        %606 = vmatpush1.msra.mxu0 0.0
        %607 = vmatprep.subr.mxu0 0.0
        %608 = vmatpush1.msra.mxu0 0.0
        %609 = vmatprep.subr.mxu0 0.0
        %610 = vmatpush1.msra.mxu0 0.0
        %611 = vmatprep.subr.mxu0 0.0
        %612 = vmatpush1.msra.mxu0 0.0
        %613 = vmatprep.subr.mxu0 0.0
        %614 = vmatpush1.msra.mxu0 0.0
        %615 = vmatprep.subr.mxu0 0.0
        %616 = vmatpush1.msra.mxu0 0.0
        %617 = vmatprep.subr.mxu0 0.0
        %618 = vmatpush1.msra.mxu0 0.0
        %619 = vmatprep.subr.mxu0 0.0
        %620 = vmatpush1.msra.mxu0 0.0
        %621 = vmatprep.subr.mxu0 0.0
        %622 = vmatpush1.msra.mxu0 0.0
        %623 = vmatprep.subr.mxu0 0.0
        %624 = vmatpush1.msra.mxu0 0.0
        %625 = vmatprep.subr.mxu0 0.0
        %626 = vmatpush1.msra.mxu0 0.0
        %627 = vmatprep.subr.mxu0 0.0
        %628 = vmatpush1.msra.mxu0 0.0
        %629 = vmatprep.mubr.f32.mxu0 0.0
        %630 = vmatmul.mubr.f32.gmra.mrb[0].mxu0 %v563
        %v631 = vpop.f32.mrb[0].mxu0
        %v632 = vadd.f32 0.0, %v631
        %v633 = vpop.f32.mrb[0].mxu0
        %634 = vdwg.mxu0
        %635 = vrot.lane.b32.xlu0 %v359, 64
        %v636 = vpop.permute.xlu0 %635
        %v639 = vsel %vm522, %v558, 0
        %641 = vmatprep.subr.mxu0 0.0
        %642 = vmatpush1.msra.mxu0 %v636
        %643 = vmatprep.subr.mxu0 0.0
        %644 = vmatpush1.msra.mxu0 0.0
        %645 = vmatprep.subr.mxu0 0.0
        %646 = vmatpush1.msra.mxu0 0.0
        %647 = vmatprep.subr.mxu0 0.0
        %648 = vmatpush1.msra.mxu0 0.0
        %649 = vmatprep.subr.mxu0 0.0
        %650 = vmatpush1.msra.mxu0 0.0
        %651 = vmatprep.subr.mxu0 0.0
        %652 = vmatpush1.msra.mxu0 0.0
        %653 = vmatprep.subr.mxu0 0.0
        %654 = vmatpush1.msra.mxu0 0.0
        %655 = vmatprep.subr.mxu0 0.0
        %656 = vmatpush1.msra.mxu0 0.0
        %657 = vmatprep.subr.mxu0 0.0
        %658 = vmatpush1.msra.mxu0 0.0
        %659 = vmatprep.subr.mxu0 0.0
        %660 = vmatpush1.msra.mxu0 0.0
        %661 = vmatprep.subr.mxu0 0.0
        %662 = vmatpush1.msra.mxu0 0.0
        %663 = vmatprep.subr.mxu0 0.0
        %664 = vmatpush1.msra.mxu0 0.0
        %665 = vmatprep.subr.mxu0 0.0
        %666 = vmatpush1.msra.mxu0 0.0
        %667 = vmatprep.subr.mxu0 0.0
        %668 = vmatpush1.msra.mxu0 0.0
        %669 = vmatprep.subr.mxu0 0.0
        %670 = vmatpush1.msra.mxu0 0.0
        %671 = vmatprep.subr.mxu0 0.0
        %672 = vmatpush1.msra.mxu0 0.0
        %673 = vmatprep.subr.mxu0 0.0
        %674 = vmatpush1.msra.mxu0 0.0
        %675 = vmatprep.subr.mxu0 0.0
        %676 = vmatpush1.msra.mxu0 0.0
        %677 = vmatprep.subr.mxu0 0.0
        %678 = vmatpush1.msra.mxu0 0.0
        %679 = vmatprep.subr.mxu0 0.0
        %680 = vmatpush1.msra.mxu0 0.0
        %681 = vmatprep.subr.mxu0 0.0
        %682 = vmatpush1.msra.mxu0 0.0
        %683 = vmatprep.subr.mxu0 0.0
        %684 = vmatpush1.msra.mxu0 0.0
        %685 = vmatprep.subr.mxu0 0.0
        %686 = vmatpush1.msra.mxu0 0.0
        %687 = vmatprep.subr.mxu0 0.0
        %688 = vmatpush1.msra.mxu0 0.0
        %689 = vmatprep.subr.mxu0 0.0
        %690 = vmatpush1.msra.mxu0 0.0
        %691 = vmatprep.subr.mxu0 0.0
        %692 = vmatpush1.msra.mxu0 0.0
        %693 = vmatprep.subr.mxu0 0.0
        %694 = vmatpush1.msra.mxu0 0.0
        %695 = vmatprep.subr.mxu0 0.0
        %696 = vmatpush1.msra.mxu0 0.0
        %697 = vmatprep.subr.mxu0 0.0
        %698 = vmatpush1.msra.mxu0 0.0
        %699 = vmatprep.subr.mxu0 0.0
        %700 = vmatpush1.msra.mxu0 0.0
        %701 = vmatprep.subr.mxu0 0.0
        %702 = vmatpush1.msra.mxu0 0.0
        %703 = vmatprep.subr.mxu0 0.0
        %704 = vmatpush1.msra.mxu0 0.0
        %705 = vmatprep.mubr.f32.mxu0 0.0
        %706 = vmatmul.mubr.f32.gmra.mrb[0].mxu0 %v639
        %v707 = vpop.f32.mrb[0].mxu0
        %v708 = vadd.f32 0.0, %v707
        %v709 = vpop.f32.mrb[0].mxu0
        %710 = vdwg.mxu0
        %711 = vrot.lane.b32.xlu0 %v362, 124
        %v712 = vpop.permute.xlu0 %711
        %713 = vrot.lane.b32.xlu0 %v354, 92
        %v714 = vpop.permute.xlu0 %713
        %v715 = vsel %vm368, %v712, 0
        %v717 = vsel %vm368, %v714, 0
        %719 = vmatprep.subr.mxu0 0.0
        %720 = vmatpush1.xpose.msra.mxu0 %v717
        %721 = vmatprep.subr.mxu0 0.0
        %722 = vmatpush1.xpose.msra.mxu0 0.0
        %723 = vmatprep.subr.mxu0 0.0
        %724 = vmatpush1.xpose.msra.mxu0 0.0
        %725 = vmatprep.subr.mxu0 0.0
        %726 = vmatpush1.xpose.msra.mxu0 0.0
        %727 = vmatprep.subr.mxu0 0.0
        %728 = vmatpush1.xpose.msra.mxu0 0.0
        %729 = vmatprep.subr.mxu0 0.0
        %730 = vmatpush1.xpose.msra.mxu0 0.0
        %731 = vmatprep.subr.mxu0 0.0
        %732 = vmatpush1.xpose.msra.mxu0 0.0
        %733 = vmatprep.subr.mxu0 0.0
        %734 = vmatpush1.xpose.msra.mxu0 0.0
        %735 = vmatprep.subr.mxu0 0.0
        %736 = vmatpush1.xpose.msra.mxu0 0.0
        %737 = vmatprep.subr.mxu0 0.0
        %738 = vmatpush1.xpose.msra.mxu0 0.0
        %739 = vmatprep.subr.mxu0 0.0
        %740 = vmatpush1.xpose.msra.mxu0 0.0
        %741 = vmatprep.subr.mxu0 0.0
        %742 = vmatpush1.xpose.msra.mxu0 0.0
        %743 = vmatprep.subr.mxu0 0.0
        %744 = vmatpush1.xpose.msra.mxu0 0.0
        %745 = vmatprep.subr.mxu0 0.0
        %746 = vmatpush1.xpose.msra.mxu0 0.0
        %747 = vmatprep.subr.mxu0 0.0
        %748 = vmatpush1.xpose.msra.mxu0 0.0
        %749 = vmatprep.subr.mxu0 0.0
        %750 = vmatpush1.xpose.msra.mxu0 0.0
        %751 = vmatprep.subr.mxu0 0.0
        %752 = vmatpush1.xpose.msra.mxu0 0.0
        %753 = vmatprep.subr.mxu0 0.0
        %754 = vmatpush1.xpose.msra.mxu0 0.0
        %755 = vmatprep.subr.mxu0 0.0
        %756 = vmatpush1.xpose.msra.mxu0 0.0
        %757 = vmatprep.subr.mxu0 0.0
        %758 = vmatpush1.xpose.msra.mxu0 0.0
        %759 = vmatprep.subr.mxu0 0.0
        %760 = vmatpush1.xpose.msra.mxu0 0.0
        %761 = vmatprep.subr.mxu0 0.0
        %762 = vmatpush1.xpose.msra.mxu0 0.0
        %763 = vmatprep.subr.mxu0 0.0
        %764 = vmatpush1.xpose.msra.mxu0 0.0
        %765 = vmatprep.subr.mxu0 0.0
        %766 = vmatpush1.xpose.msra.mxu0 0.0
        %767 = vmatprep.subr.mxu0 0.0
        %768 = vmatpush1.xpose.msra.mxu0 0.0
        %769 = vmatprep.subr.mxu0 0.0
        %770 = vmatpush1.xpose.msra.mxu0 0.0
        %771 = vmatprep.subr.mxu0 0.0
        %772 = vmatpush1.xpose.msra.mxu0 0.0
        %773 = vmatprep.subr.mxu0 0.0
        %774 = vmatpush1.xpose.msra.mxu0 0.0
        %775 = vmatprep.subr.mxu0 0.0
        %776 = vmatpush1.xpose.msra.mxu0 0.0
        %777 = vmatprep.subr.mxu0 0.0
        %778 = vmatpush1.xpose.msra.mxu0 0.0
        %779 = vmatprep.subr.mxu0 0.0
        %780 = vmatpush1.xpose.msra.mxu0 0.0
        %781 = vmatprep.subr.mxu0 0.0
        %782 = vmatpush1.xpose.msra.mxu0 0.0
        %783 = vmatprep.mubr.f32.mxu0 0.0
        %784 = vmatmul.mubr.f32.gmra.mrb[0].mxu0 %v715
        %v785 = vpop.f32.mrb[0].mxu0
        %v786 = vadd.f32 %v364, %v785
        %v787 = vpop.f32.mrb[0].mxu0
        %788 = vdwg.mxu0
        %789 = vrot.lane.b32.xlu0 %v363, 124
        %v790 = vpop.permute.xlu0 %789
        %791 = vrot.lane.b32.xlu0 %v359, 92
        %v792 = vpop.permute.xlu0 %791
        %v793 = vsel %vm368, %v790, 0
        %v795 = vsel %vm368, %v792, 0
        %797 = vmatprep.subr.mxu0 0.0
        %798 = vmatpush1.xpose.msra.mxu0 %v795
        %799 = vmatprep.subr.mxu0 0.0
        %800 = vmatpush1.xpose.msra.mxu0 0.0
        %801 = vmatprep.subr.mxu0 0.0
        %802 = vmatpush1.xpose.msra.mxu0 0.0
        %803 = vmatprep.subr.mxu0 0.0
        %804 = vmatpush1.xpose.msra.mxu0 0.0
        %805 = vmatprep.subr.mxu0 0.0
        %806 = vmatpush1.xpose.msra.mxu0 0.0
        %807 = vmatprep.subr.mxu0 0.0
        %808 = vmatpush1.xpose.msra.mxu0 0.0
        %809 = vmatprep.subr.mxu0 0.0
        %810 = vmatpush1.xpose.msra.mxu0 0.0
        %811 = vmatprep.subr.mxu0 0.0
        %812 = vmatpush1.xpose.msra.mxu0 0.0
        %813 = vmatprep.subr.mxu0 0.0
        %814 = vmatpush1.xpose.msra.mxu0 0.0
        %815 = vmatprep.subr.mxu0 0.0
        %816 = vmatpush1.xpose.msra.mxu0 0.0
        %817 = vmatprep.subr.mxu0 0.0
        %818 = vmatpush1.xpose.msra.mxu0 0.0
        %819 = vmatprep.subr.mxu0 0.0
        %820 = vmatpush1.xpose.msra.mxu0 0.0
        %821 = vmatprep.subr.mxu0 0.0
        %822 = vmatpush1.xpose.msra.mxu0 0.0
        %823 = vmatprep.subr.mxu0 0.0
        %824 = vmatpush1.xpose.msra.mxu0 0.0
        %825 = vmatprep.subr.mxu0 0.0
        %826 = vmatpush1.xpose.msra.mxu0 0.0
        %827 = vmatprep.subr.mxu0 0.0
        %828 = vmatpush1.xpose.msra.mxu0 0.0
        %829 = vmatprep.subr.mxu0 0.0
        %830 = vmatpush1.xpose.msra.mxu0 0.0
        %831 = vmatprep.subr.mxu0 0.0
        %832 = vmatpush1.xpose.msra.mxu0 0.0
        %833 = vmatprep.subr.mxu0 0.0
        %834 = vmatpush1.xpose.msra.mxu0 0.0
        %835 = vmatprep.subr.mxu0 0.0
        %836 = vmatpush1.xpose.msra.mxu0 0.0
        %837 = vmatprep.subr.mxu0 0.0
        %838 = vmatpush1.xpose.msra.mxu0 0.0
        %839 = vmatprep.subr.mxu0 0.0
        %840 = vmatpush1.xpose.msra.mxu0 0.0
        %841 = vmatprep.subr.mxu0 0.0
        %842 = vmatpush1.xpose.msra.mxu0 0.0
        %843 = vmatprep.subr.mxu0 0.0
        %844 = vmatpush1.xpose.msra.mxu0 0.0
        %845 = vmatprep.subr.mxu0 0.0
        %846 = vmatpush1.xpose.msra.mxu0 0.0
        %847 = vmatprep.subr.mxu0 0.0
        %848 = vmatpush1.xpose.msra.mxu0 0.0
        %849 = vmatprep.subr.mxu0 0.0
        %850 = vmatpush1.xpose.msra.mxu0 0.0
        %851 = vmatprep.subr.mxu0 0.0
        %852 = vmatpush1.xpose.msra.mxu0 0.0
        %853 = vmatprep.subr.mxu0 0.0
        %854 = vmatpush1.xpose.msra.mxu0 0.0
        %855 = vmatprep.subr.mxu0 0.0
        %856 = vmatpush1.xpose.msra.mxu0 0.0
        %857 = vmatprep.subr.mxu0 0.0
        %858 = vmatpush1.xpose.msra.mxu0 0.0
        %859 = vmatprep.subr.mxu0 0.0
        %860 = vmatpush1.xpose.msra.mxu0 0.0
        %861 = vmatprep.mubr.f32.mxu0 0.0
        %862 = vmatmul.mubr.f32.gmra.mrb[0].mxu0 %v793
        %v863 = vpop.f32.mrb[0].mxu0
        %v864 = vadd.f32 %v364, %v863
        %v865 = vpop.f32.mrb[0].mxu0
        %866 = vdwg.mxu0
        %v867 = vsel %vm522, %v786, -inf
        %868 = vmax.xlane.f32.xlu0 %v867
        %v869 = vpop.xlane.xlu0 %868
        %v870 = vsel %vm522, %v864, -inf
        %871 = vmax.xlane.f32.xlu0 %v870
        %v872 = vpop.xlane.xlu0 %871
        %v873 = vsub.f32 %v786, %v869
        %v874 = vsub.f32 %v864, %v872
        %v875 = vmul.f32 %v873, 1.442695
        %v876 = vpow.pop %v875
        %v877 = vmul.f32 %v874, 1.442695
        %v878 = vpow.pop %v877
        %v879 = vsel %vm522, %v876, 0.0
        %880 = vadd.xlane.f32.xlu0 %v879
        %v881 = vpop.xlane.xlu0 %880
        %v882 = vsel %vm522, %v878, 0.0
        %883 = vadd.xlane.f32.xlu0 %v882
        %v884 = vpop.xlane.xlu0 %883
        %v885 = vrcp.pop %v881
        %v886 = vrcp.pop %v884
        %v887 = vmul.f32 %v876, %v885
        %v888 = vmul.f32 %v878, %v886
        %v889 = vmul.f32 %v887, 1.442695
        %v890 = vpow.pop %v889
        %v891 = vmul.f32 %v888, 1.442695
        %v892 = vpow.pop %v891
        %v893 = vsel %vm522, %v890, 0.0
        %894 = vadd.xlane.f32.xlu0 %v893
        %v895 = vpop.xlane.xlu0 %894
        %v896 = vsel %vm522, %v892, 0.0
        %897 = vadd.xlane.f32.xlu0 %v896
        %v898 = vpop.xlane.xlu0 %897
        %v899 = vrcp.pop %v895
        %v900 = vrcp.pop %v898
        %v901 = vmul.f32 %v890, %v899
        %v902 = vmul.f32 %v892, %v900
        %903 = vrot.lane.b32.xlu0 %v354, 60
        %v904 = vpop.permute.xlu0 %903
        %v907 = vsel %vm522, %v901, 0
        %909 = vmatprep.subr.mxu0 0.0
        %910 = vmatpush1.msra.mxu0 %v904
        %911 = vmatprep.subr.mxu0 0.0
        %912 = vmatpush1.msra.mxu0 0.0
        %913 = vmatprep.subr.mxu0 0.0
        %914 = vmatpush1.msra.mxu0 0.0
        %915 = vmatprep.subr.mxu0 0.0
        %916 = vmatpush1.msra.mxu0 0.0
        %917 = vmatprep.subr.mxu0 0.0
        %918 = vmatpush1.msra.mxu0 0.0
        %919 = vmatprep.subr.mxu0 0.0
        %920 = vmatpush1.msra.mxu0 0.0
        %921 = vmatprep.subr.mxu0 0.0
        %922 = vmatpush1.msra.mxu0 0.0
        %923 = vmatprep.subr.mxu0 0.0
        %924 = vmatpush1.msra.mxu0 0.0
        %925 = vmatprep.subr.mxu0 0.0
        %926 = vmatpush1.msra.mxu0 0.0
        %927 = vmatprep.subr.mxu0 0.0
        %928 = vmatpush1.msra.mxu0 0.0
        %929 = vmatprep.subr.mxu0 0.0
        %930 = vmatpush1.msra.mxu0 0.0
        %931 = vmatprep.subr.mxu0 0.0
        %932 = vmatpush1.msra.mxu0 0.0
        %933 = vmatprep.subr.mxu0 0.0
        %934 = vmatpush1.msra.mxu0 0.0
        %935 = vmatprep.subr.mxu0 0.0
        %936 = vmatpush1.msra.mxu0 0.0
        %937 = vmatprep.subr.mxu0 0.0
        %938 = vmatpush1.msra.mxu0 0.0
        %939 = vmatprep.subr.mxu0 0.0
        %940 = vmatpush1.msra.mxu0 0.0
        %941 = vmatprep.subr.mxu0 0.0
        %942 = vmatpush1.msra.mxu0 0.0
        %943 = vmatprep.subr.mxu0 0.0
        %944 = vmatpush1.msra.mxu0 0.0
        %945 = vmatprep.subr.mxu0 0.0
        %946 = vmatpush1.msra.mxu0 0.0
        %947 = vmatprep.subr.mxu0 0.0
        %948 = vmatpush1.msra.mxu0 0.0
        %949 = vmatprep.subr.mxu0 0.0
        %950 = vmatpush1.msra.mxu0 0.0
        %951 = vmatprep.subr.mxu0 0.0
        %952 = vmatpush1.msra.mxu0 0.0
        %953 = vmatprep.subr.mxu0 0.0
        %954 = vmatpush1.msra.mxu0 0.0
        %955 = vmatprep.subr.mxu0 0.0
        %956 = vmatpush1.msra.mxu0 0.0
        %957 = vmatprep.subr.mxu0 0.0
        %958 = vmatpush1.msra.mxu0 0.0
        %959 = vmatprep.subr.mxu0 0.0
        %960 = vmatpush1.msra.mxu0 0.0
        %961 = vmatprep.subr.mxu0 0.0
        %962 = vmatpush1.msra.mxu0 0.0
        %963 = vmatprep.subr.mxu0 0.0
        %964 = vmatpush1.msra.mxu0 0.0
        %965 = vmatprep.subr.mxu0 0.0
        %966 = vmatpush1.msra.mxu0 0.0
        %967 = vmatprep.subr.mxu0 0.0
        %968 = vmatpush1.msra.mxu0 0.0
        %969 = vmatprep.subr.mxu0 0.0
        %970 = vmatpush1.msra.mxu0 0.0
        %971 = vmatprep.subr.mxu0 0.0
        %972 = vmatpush1.msra.mxu0 0.0
        %973 = vmatprep.mubr.f32.mxu0 0.0
        %974 = vmatmul.mubr.f32.gmra.mrb[0].mxu0 %v907
        %v975 = vpop.f32.mrb[0].mxu0
        %v976 = vadd.f32 0.0, %v975
        %v977 = vpop.f32.mrb[0].mxu0
        %978 = vdwg.mxu0
        %979 = vrot.lane.b32.xlu0 %v359, 60
        %v980 = vpop.permute.xlu0 %979
        %v983 = vsel %vm522, %v902, 0
        %985 = vmatprep.subr.mxu0 0.0
        %986 = vmatpush1.msra.mxu0 %v980
        %987 = vmatprep.subr.mxu0 0.0
        %988 = vmatpush1.msra.mxu0 0.0
        %989 = vmatprep.subr.mxu0 0.0
        %990 = vmatpush1.msra.mxu0 0.0
        %991 = vmatprep.subr.mxu0 0.0
        %992 = vmatpush1.msra.mxu0 0.0
        %993 = vmatprep.subr.mxu0 0.0
        %994 = vmatpush1.msra.mxu0 0.0
        %995 = vmatprep.subr.mxu0 0.0
        %996 = vmatpush1.msra.mxu0 0.0
        %997 = vmatprep.subr.mxu0 0.0
        %998 = vmatpush1.msra.mxu0 0.0
        %999 = vmatprep.subr.mxu0 0.0
        %1000 = vmatpush1.msra.mxu0 0.0
        %1001 = vmatprep.subr.mxu0 0.0
        %1002 = vmatpush1.msra.mxu0 0.0
        %1003 = vmatprep.subr.mxu0 0.0
        %1004 = vmatpush1.msra.mxu0 0.0
        %1005 = vmatprep.subr.mxu0 0.0
        %1006 = vmatpush1.msra.mxu0 0.0
        %1007 = vmatprep.subr.mxu0 0.0
        %1008 = vmatpush1.msra.mxu0 0.0
        %1009 = vmatprep.subr.mxu0 0.0
        %1010 = vmatpush1.msra.mxu0 0.0
        %1011 = vmatprep.subr.mxu0 0.0
        %1012 = vmatpush1.msra.mxu0 0.0
        %1013 = vmatprep.subr.mxu0 0.0
        %1014 = vmatpush1.msra.mxu0 0.0
        %1015 = vmatprep.subr.mxu0 0.0
        %1016 = vmatpush1.msra.mxu0 0.0
        %1017 = vmatprep.subr.mxu0 0.0
        %1018 = vmatpush1.msra.mxu0 0.0
        %1019 = vmatprep.subr.mxu0 0.0
        %1020 = vmatpush1.msra.mxu0 0.0
        %1021 = vmatprep.subr.mxu0 0.0
        %1022 = vmatpush1.msra.mxu0 0.0
        %1023 = vmatprep.subr.mxu0 0.0
        %1024 = vmatpush1.msra.mxu0 0.0
        %1025 = vmatprep.subr.mxu0 0.0
        %1026 = vmatpush1.msra.mxu0 0.0
        %1027 = vmatprep.subr.mxu0 0.0
        %1028 = vmatpush1.msra.mxu0 0.0
        %1029 = vmatprep.subr.mxu0 0.0
        %1030 = vmatpush1.msra.mxu0 0.0
        %1031 = vmatprep.subr.mxu0 0.0
        %1032 = vmatpush1.msra.mxu0 0.0
        %1033 = vmatprep.subr.mxu0 0.0
        %1034 = vmatpush1.msra.mxu0 0.0
        %1035 = vmatprep.subr.mxu0 0.0
        %1036 = vmatpush1.msra.mxu0 0.0
        %1037 = vmatprep.subr.mxu0 0.0
        %1038 = vmatpush1.msra.mxu0 0.0
        %1039 = vmatprep.subr.mxu0 0.0
        %1040 = vmatpush1.msra.mxu0 0.0
        %1041 = vmatprep.subr.mxu0 0.0
        %1042 = vmatpush1.msra.mxu0 0.0
        %1043 = vmatprep.subr.mxu0 0.0
        %1044 = vmatpush1.msra.mxu0 0.0
        %1045 = vmatprep.subr.mxu0 0.0
        %1046 = vmatpush1.msra.mxu0 0.0
        %1047 = vmatprep.subr.mxu0 0.0
        %1048 = vmatpush1.msra.mxu0 0.0
        %1049 = vmatprep.mubr.f32.mxu0 0.0
        %1050 = vmatmul.mubr.f32.gmra.mrb[0].mxu0 %v983
        %v1051 = vpop.f32.mrb[0].mxu0
        %v1052 = vadd.f32 0.0, %v1051
        %v1053 = vpop.f32.mrb[0].mxu0
        %1054 = vdwg.mxu0
        %1055 = vrot.lane.b32.xlu0 %v362, 120
        %v1056 = vpop.permute.xlu0 %1055
        %1057 = vrot.lane.b32.xlu0 %v354, 88
        %v1058 = vpop.permute.xlu0 %1057
        %v1059 = vsel %vm368, %v1056, 0
        %v1061 = vsel %vm368, %v1058, 0
        %1063 = vmatprep.subr.mxu0 0.0
        %1064 = vmatpush1.xpose.msra.mxu0 %v1061
        %1065 = vmatprep.subr.mxu0 0.0
        %1066 = vmatpush1.xpose.msra.mxu0 0.0
        %1067 = vmatprep.subr.mxu0 0.0
        %1068 = vmatpush1.xpose.msra.mxu0 0.0
        %1069 = vmatprep.subr.mxu0 0.0
        %1070 = vmatpush1.xpose.msra.mxu0 0.0
        %1071 = vmatprep.subr.mxu0 0.0
        %1072 = vmatpush1.xpose.msra.mxu0 0.0
        %1073 = vmatprep.subr.mxu0 0.0
        %1074 = vmatpush1.xpose.msra.mxu0 0.0
        %1075 = vmatprep.subr.mxu0 0.0
        %1076 = vmatpush1.xpose.msra.mxu0 0.0
        %1077 = vmatprep.subr.mxu0 0.0
        %1078 = vmatpush1.xpose.msra.mxu0 0.0
        %1079 = vmatprep.subr.mxu0 0.0
        %1080 = vmatpush1.xpose.msra.mxu0 0.0
        %1081 = vmatprep.subr.mxu0 0.0
        %1082 = vmatpush1.xpose.msra.mxu0 0.0
        %1083 = vmatprep.subr.mxu0 0.0
        %1084 = vmatpush1.xpose.msra.mxu0 0.0
        %1085 = vmatprep.subr.mxu0 0.0
        %1086 = vmatpush1.xpose.msra.mxu0 0.0
        %1087 = vmatprep.subr.mxu0 0.0
        %1088 = vmatpush1.xpose.msra.mxu0 0.0
        %1089 = vmatprep.subr.mxu0 0.0
        %1090 = vmatpush1.xpose.msra.mxu0 0.0
        %1091 = vmatprep.subr.mxu0 0.0
        %1092 = vmatpush1.xpose.msra.mxu0 0.0
        %1093 = vmatprep.subr.mxu0 0.0
        %1094 = vmatpush1.xpose.msra.mxu0 0.0
        %1095 = vmatprep.subr.mxu0 0.0
        %1096 = vmatpush1.xpose.msra.mxu0 0.0
        %1097 = vmatprep.subr.mxu0 0.0
        %1098 = vmatpush1.xpose.msra.mxu0 0.0
        %1099 = vmatprep.subr.mxu0 0.0
        %1100 = vmatpush1.xpose.msra.mxu0 0.0
        %1101 = vmatprep.subr.mxu0 0.0
        %1102 = vmatpush1.xpose.msra.mxu0 0.0
        %1103 = vmatprep.subr.mxu0 0.0
        %1104 = vmatpush1.xpose.msra.mxu0 0.0
        %1105 = vmatprep.subr.mxu0 0.0
        %1106 = vmatpush1.xpose.msra.mxu0 0.0
        %1107 = vmatprep.subr.mxu0 0.0
        %1108 = vmatpush1.xpose.msra.mxu0 0.0
        %1109 = vmatprep.subr.mxu0 0.0
        %1110 = vmatpush1.xpose.msra.mxu0 0.0
        %1111 = vmatprep.subr.mxu0 0.0
        %1112 = vmatpush1.xpose.msra.mxu0 0.0
        %1113 = vmatprep.subr.mxu0 0.0
        %1114 = vmatpush1.xpose.msra.mxu0 0.0
        %1115 = vmatprep.subr.mxu0 0.0
        %1116 = vmatpush1.xpose.msra.mxu0 0.0
        %1117 = vmatprep.subr.mxu0 0.0
        %1118 = vmatpush1.xpose.msra.mxu0 0.0
        %1119 = vmatprep.subr.mxu0 0.0
        %1120 = vmatpush1.xpose.msra.mxu0 0.0
        %1121 = vmatprep.subr.mxu0 0.0
        %1122 = vmatpush1.xpose.msra.mxu0 0.0
        %1123 = vmatprep.subr.mxu0 0.0
        %1124 = vmatpush1.xpose.msra.mxu0 0.0
        %1125 = vmatprep.subr.mxu0 0.0
        %1126 = vmatpush1.xpose.msra.mxu0 0.0
        %1127 = vmatprep.mubr.f32.mxu0 0.0
        %1128 = vmatmul.mubr.f32.gmra.mrb[0].mxu0 %v1059
        %v1129 = vpop.f32.mrb[0].mxu0
        %v1130 = vadd.f32 %v364, %v1129
        %v1131 = vpop.f32.mrb[0].mxu0
        %1132 = vdwg.mxu0
        %1133 = vrot.lane.b32.xlu0 %v363, 120
        %v1134 = vpop.permute.xlu0 %1133
        %1135 = vrot.lane.b32.xlu0 %v359, 88
        %v1136 = vpop.permute.xlu0 %1135
        %v1137 = vsel %vm368, %v1134, 0
        %v1139 = vsel %vm368, %v1136, 0
        %1141 = vmatprep.subr.mxu0 0.0
        %1142 = vmatpush1.xpose.msra.mxu0 %v1139
        %1143 = vmatprep.subr.mxu0 0.0
        %1144 = vmatpush1.xpose.msra.mxu0 0.0
        %1145 = vmatprep.subr.mxu0 0.0
        %1146 = vmatpush1.xpose.msra.mxu0 0.0
        %1147 = vmatprep.subr.mxu0 0.0
        %1148 = vmatpush1.xpose.msra.mxu0 0.0
        %1149 = vmatprep.subr.mxu0 0.0
        %1150 = vmatpush1.xpose.msra.mxu0 0.0
        %1151 = vmatprep.subr.mxu0 0.0
        %1152 = vmatpush1.xpose.msra.mxu0 0.0
        %1153 = vmatprep.subr.mxu0 0.0
        %1154 = vmatpush1.xpose.msra.mxu0 0.0
        %1155 = vmatprep.subr.mxu0 0.0
        %1156 = vmatpush1.xpose.msra.mxu0 0.0
        %1157 = vmatprep.subr.mxu0 0.0
        %1158 = vmatpush1.xpose.msra.mxu0 0.0
        %1159 = vmatprep.subr.mxu0 0.0
        %1160 = vmatpush1.xpose.msra.mxu0 0.0
        %1161 = vmatprep.subr.mxu0 0.0
        %1162 = vmatpush1.xpose.msra.mxu0 0.0
        %1163 = vmatprep.subr.mxu0 0.0
        %1164 = vmatpush1.xpose.msra.mxu0 0.0
        %1165 = vmatprep.subr.mxu0 0.0
        %1166 = vmatpush1.xpose.msra.mxu0 0.0
        %1167 = vmatprep.subr.mxu0 0.0
        %1168 = vmatpush1.xpose.msra.mxu0 0.0
        %1169 = vmatprep.subr.mxu0 0.0
        %1170 = vmatpush1.xpose.msra.mxu0 0.0
        %1171 = vmatprep.subr.mxu0 0.0
        %1172 = vmatpush1.xpose.msra.mxu0 0.0
        %1173 = vmatprep.subr.mxu0 0.0
        %1174 = vmatpush1.xpose.msra.mxu0 0.0
        %1175 = vmatprep.subr.mxu0 0.0
        %1176 = vmatpush1.xpose.msra.mxu0 0.0
        %1177 = vmatprep.subr.mxu0 0.0
        %1178 = vmatpush1.xpose.msra.mxu0 0.0
        %1179 = vmatprep.subr.mxu0 0.0
        %1180 = vmatpush1.xpose.msra.mxu0 0.0
        %1181 = vmatprep.subr.mxu0 0.0
        %1182 = vmatpush1.xpose.msra.mxu0 0.0
        %1183 = vmatprep.subr.mxu0 0.0
        %1184 = vmatpush1.xpose.msra.mxu0 0.0
        %1185 = vmatprep.subr.mxu0 0.0
        %1186 = vmatpush1.xpose.msra.mxu0 0.0
        %1187 = vmatprep.subr.mxu0 0.0
        %1188 = vmatpush1.xpose.msra.mxu0 0.0
        %1189 = vmatprep.subr.mxu0 0.0
        %1190 = vmatpush1.xpose.msra.mxu0 0.0
        %1191 = vmatprep.subr.mxu0 0.0
        %1192 = vmatpush1.xpose.msra.mxu0 0.0
        %1193 = vmatprep.subr.mxu0 0.0
        %1194 = vmatpush1.xpose.msra.mxu0 0.0
        %1195 = vmatprep.subr.mxu0 0.0
        %1196 = vmatpush1.xpose.msra.mxu0 0.0
        %1197 = vmatprep.subr.mxu0 0.0
        %1198 = vmatpush1.xpose.msra.mxu0 0.0
        %1199 = vmatprep.subr.mxu0 0.0
        %1200 = vmatpush1.xpose.msra.mxu0 0.0
        %1201 = vmatprep.subr.mxu0 0.0
        %1202 = vmatpush1.xpose.msra.mxu0 0.0
        %1203 = vmatprep.subr.mxu0 0.0
        %1204 = vmatpush1.xpose.msra.mxu0 0.0
        %1205 = vmatprep.mubr.f32.mxu0 0.0
        %1206 = vmatmul.mubr.f32.gmra.mrb[0].mxu0 %v1137
        %v1207 = vpop.f32.mrb[0].mxu0
        %v1208 = vadd.f32 %v364, %v1207
        %v1209 = vpop.f32.mrb[0].mxu0
        %1210 = vdwg.mxu0
        %v1211 = vsel %vm522, %v1130, -inf
        %1212 = vmax.xlane.f32.xlu0 %v1211
        %v1213 = vpop.xlane.xlu0 %1212
        %v1214 = vsel %vm522, %v1208, -inf
        %1215 = vmax.xlane.f32.xlu0 %v1214
        %v1216 = vpop.xlane.xlu0 %1215
        %v1217 = vsub.f32 %v1130, %v1213
        %v1218 = vsub.f32 %v1208, %v1216
        %v1219 = vmul.f32 %v1217, 1.442695
        %v1220 = vpow.pop %v1219
        %v1221 = vmul.f32 %v1218, 1.442695
        %v1222 = vpow.pop %v1221
        %v1223 = vsel %vm522, %v1220, 0.0
        %1224 = vadd.xlane.f32.xlu0 %v1223
        %v1225 = vpop.xlane.xlu0 %1224
        %v1226 = vsel %vm522, %v1222, 0.0
        %1227 = vadd.xlane.f32.xlu0 %v1226
        %v1228 = vpop.xlane.xlu0 %1227
        %v1229 = vrcp.pop %v1225
        %v1230 = vrcp.pop %v1228
        %v1231 = vmul.f32 %v1220, %v1229
        %v1232 = vmul.f32 %v1222, %v1230
        %v1233 = vmul.f32 %v1231, 1.442695
        %v1234 = vpow.pop %v1233
        %v1235 = vmul.f32 %v1232, 1.442695
        %v1236 = vpow.pop %v1235
        %v1237 = vsel %vm522, %v1234, 0.0
        %1238 = vadd.xlane.f32.xlu0 %v1237
        %v1239 = vpop.xlane.xlu0 %1238
        %v1240 = vsel %vm522, %v1236, 0.0
        %1241 = vadd.xlane.f32.xlu0 %v1240
        %v1242 = vpop.xlane.xlu0 %1241
        %v1243 = vrcp.pop %v1239
        %v1244 = vrcp.pop %v1242
        %v1245 = vmul.f32 %v1234, %v1243
        %v1246 = vmul.f32 %v1236, %v1244
        %1247 = vrot.lane.b32.xlu0 %v354, 56
        %v1248 = vpop.permute.xlu0 %1247
        %v1251 = vsel %vm522, %v1245, 0
        %1253 = vmatprep.subr.mxu0 0.0
        %1254 = vmatpush1.msra.mxu0 %v1248
        %1255 = vmatprep.subr.mxu0 0.0
        %1256 = vmatpush1.msra.mxu0 0.0
        %1257 = vmatprep.subr.mxu0 0.0
        %1258 = vmatpush1.msra.mxu0 0.0
        %1259 = vmatprep.subr.mxu0 0.0
        %1260 = vmatpush1.msra.mxu0 0.0
        %1261 = vmatprep.subr.mxu0 0.0
        %1262 = vmatpush1.msra.mxu0 0.0
        %1263 = vmatprep.subr.mxu0 0.0
        %1264 = vmatpush1.msra.mxu0 0.0
        %1265 = vmatprep.subr.mxu0 0.0
        %1266 = vmatpush1.msra.mxu0 0.0
        %1267 = vmatprep.subr.mxu0 0.0
        %1268 = vmatpush1.msra.mxu0 0.0
        %1269 = vmatprep.subr.mxu0 0.0
        %1270 = vmatpush1.msra.mxu0 0.0
        %1271 = vmatprep.subr.mxu0 0.0
        %1272 = vmatpush1.msra.mxu0 0.0
        %1273 = vmatprep.subr.mxu0 0.0
        %1274 = vmatpush1.msra.mxu0 0.0
        %1275 = vmatprep.subr.mxu0 0.0
        %1276 = vmatpush1.msra.mxu0 0.0
        %1277 = vmatprep.subr.mxu0 0.0
        %1278 = vmatpush1.msra.mxu0 0.0
        %1279 = vmatprep.subr.mxu0 0.0
        %1280 = vmatpush1.msra.mxu0 0.0
        %1281 = vmatprep.subr.mxu0 0.0
        %1282 = vmatpush1.msra.mxu0 0.0
        %1283 = vmatprep.subr.mxu0 0.0
        %1284 = vmatpush1.msra.mxu0 0.0
        %1285 = vmatprep.subr.mxu0 0.0
        %1286 = vmatpush1.msra.mxu0 0.0
        %1287 = vmatprep.subr.mxu0 0.0
        %1288 = vmatpush1.msra.mxu0 0.0
        %1289 = vmatprep.subr.mxu0 0.0
        %1290 = vmatpush1.msra.mxu0 0.0
        %1291 = vmatprep.subr.mxu0 0.0
        %1292 = vmatpush1.msra.mxu0 0.0
        %1293 = vmatprep.subr.mxu0 0.0
        %1294 = vmatpush1.msra.mxu0 0.0
        %1295 = vmatprep.subr.mxu0 0.0
        %1296 = vmatpush1.msra.mxu0 0.0
        %1297 = vmatprep.subr.mxu0 0.0
        %1298 = vmatpush1.msra.mxu0 0.0
        %1299 = vmatprep.subr.mxu0 0.0
        %1300 = vmatpush1.msra.mxu0 0.0
        %1301 = vmatprep.subr.mxu0 0.0
        %1302 = vmatpush1.msra.mxu0 0.0
        %1303 = vmatprep.subr.mxu0 0.0
        %1304 = vmatpush1.msra.mxu0 0.0
        %1305 = vmatprep.subr.mxu0 0.0
        %1306 = vmatpush1.msra.mxu0 0.0
        %1307 = vmatprep.subr.mxu0 0.0
        %1308 = vmatpush1.msra.mxu0 0.0
        %1309 = vmatprep.subr.mxu0 0.0
        %1310 = vmatpush1.msra.mxu0 0.0
        %1311 = vmatprep.subr.mxu0 0.0
        %1312 = vmatpush1.msra.mxu0 0.0
        %1313 = vmatprep.subr.mxu0 0.0
        %1314 = vmatpush1.msra.mxu0 0.0
        %1315 = vmatprep.subr.mxu0 0.0
        %1316 = vmatpush1.msra.mxu0 0.0
        %1317 = vmatprep.mubr.f32.mxu0 0.0
        %1318 = vmatmul.mubr.f32.gmra.mrb[0].mxu0 %v1251
        %v1319 = vpop.f32.mrb[0].mxu0
        %v1320 = vadd.f32 0.0, %v1319
        %v1321 = vpop.f32.mrb[0].mxu0
        %1322 = vdwg.mxu0
        %1323 = vrot.lane.b32.xlu0 %v359, 56
        %v1324 = vpop.permute.xlu0 %1323
        %v1327 = vsel %vm522, %v1246, 0
        %1329 = vmatprep.subr.mxu0 0.0
        %1330 = vmatpush1.msra.mxu0 %v1324
        %1331 = vmatprep.subr.mxu0 0.0
        %1332 = vmatpush1.msra.mxu0 0.0
        %1333 = vmatprep.subr.mxu0 0.0
        %1334 = vmatpush1.msra.mxu0 0.0
        %1335 = vmatprep.subr.mxu0 0.0
        %1336 = vmatpush1.msra.mxu0 0.0
        %1337 = vmatprep.subr.mxu0 0.0
        %1338 = vmatpush1.msra.mxu0 0.0
        %1339 = vmatprep.subr.mxu0 0.0
        %1340 = vmatpush1.msra.mxu0 0.0
        %1341 = vmatprep.subr.mxu0 0.0
        %1342 = vmatpush1.msra.mxu0 0.0
        %1343 = vmatprep.subr.mxu0 0.0
        %1344 = vmatpush1.msra.mxu0 0.0
        %1345 = vmatprep.subr.mxu0 0.0
        %1346 = vmatpush1.msra.mxu0 0.0
        %1347 = vmatprep.subr.mxu0 0.0
        %1348 = vmatpush1.msra.mxu0 0.0
        %1349 = vmatprep.subr.mxu0 0.0
        %1350 = vmatpush1.msra.mxu0 0.0
        %1351 = vmatprep.subr.mxu0 0.0
        %1352 = vmatpush1.msra.mxu0 0.0
        %1353 = vmatprep.subr.mxu0 0.0
        %1354 = vmatpush1.msra.mxu0 0.0
        %1355 = vmatprep.subr.mxu0 0.0
        %1356 = vmatpush1.msra.mxu0 0.0
        %1357 = vmatprep.subr.mxu0 0.0
        %1358 = vmatpush1.msra.mxu0 0.0
        %1359 = vmatprep.subr.mxu0 0.0
        %1360 = vmatpush1.msra.mxu0 0.0
        %1361 = vmatprep.subr.mxu0 0.0
        %1362 = vmatpush1.msra.mxu0 0.0
        %1363 = vmatprep.subr.mxu0 0.0
        %1364 = vmatpush1.msra.mxu0 0.0
        %1365 = vmatprep.subr.mxu0 0.0
        %1366 = vmatpush1.msra.mxu0 0.0
        %1367 = vmatprep.subr.mxu0 0.0
        %1368 = vmatpush1.msra.mxu0 0.0
        %1369 = vmatprep.subr.mxu0 0.0
        %1370 = vmatpush1.msra.mxu0 0.0
        %1371 = vmatprep.subr.mxu0 0.0
        %1372 = vmatpush1.msra.mxu0 0.0
        %1373 = vmatprep.subr.mxu0 0.0
        %1374 = vmatpush1.msra.mxu0 0.0
        %1375 = vmatprep.subr.mxu0 0.0
        %1376 = vmatpush1.msra.mxu0 0.0
        %1377 = vmatprep.subr.mxu0 0.0
        %1378 = vmatpush1.msra.mxu0 0.0
        %1379 = vmatprep.subr.mxu0 0.0
        %1380 = vmatpush1.msra.mxu0 0.0
        %1381 = vmatprep.subr.mxu0 0.0
        %1382 = vmatpush1.msra.mxu0 0.0
        %1383 = vmatprep.subr.mxu0 0.0
        %1384 = vmatpush1.msra.mxu0 0.0
        %1385 = vmatprep.subr.mxu0 0.0
        %1386 = vmatpush1.msra.mxu0 0.0
        %1387 = vmatprep.subr.mxu0 0.0
        %1388 = vmatpush1.msra.mxu0 0.0
        %1389 = vmatprep.subr.mxu0 0.0
        %1390 = vmatpush1.msra.mxu0 0.0
        %1391 = vmatprep.subr.mxu0 0.0
        %1392 = vmatpush1.msra.mxu0 0.0
        %1393 = vmatprep.mubr.f32.mxu0 0.0
        %1394 = vmatmul.mubr.f32.gmra.mrb[0].mxu0 %v1327
        %v1395 = vpop.f32.mrb[0].mxu0
        %v1396 = vadd.f32 0.0, %v1395
        %v1397 = vpop.f32.mrb[0].mxu0
        %1398 = vdwg.mxu0
        %1399 = vrot.lane.b32.xlu0 %v362, 116
        %v1400 = vpop.permute.xlu0 %1399
        %1401 = vrot.lane.b32.xlu0 %v354, 84
        %v1402 = vpop.permute.xlu0 %1401
        %v1403 = vsel %vm368, %v1400, 0
        %v1405 = vsel %vm368, %v1402, 0
        %1407 = vmatprep.subr.mxu0 0.0
        %1408 = vmatpush1.xpose.msra.mxu0 %v1405
        %1409 = vmatprep.subr.mxu0 0.0
        %1410 = vmatpush1.xpose.msra.mxu0 0.0
        %1411 = vmatprep.subr.mxu0 0.0
        %1412 = vmatpush1.xpose.msra.mxu0 0.0
        %1413 = vmatprep.subr.mxu0 0.0
        %1414 = vmatpush1.xpose.msra.mxu0 0.0
        %1415 = vmatprep.subr.mxu0 0.0
        %1416 = vmatpush1.xpose.msra.mxu0 0.0
        %1417 = vmatprep.subr.mxu0 0.0
        %1418 = vmatpush1.xpose.msra.mxu0 0.0
        %1419 = vmatprep.subr.mxu0 0.0
        %1420 = vmatpush1.xpose.msra.mxu0 0.0
        %1421 = vmatprep.subr.mxu0 0.0
        %1422 = vmatpush1.xpose.msra.mxu0 0.0
        %1423 = vmatprep.subr.mxu0 0.0
        %1424 = vmatpush1.xpose.msra.mxu0 0.0
        %1425 = vmatprep.subr.mxu0 0.0
        %1426 = vmatpush1.xpose.msra.mxu0 0.0
        %1427 = vmatprep.subr.mxu0 0.0
        %1428 = vmatpush1.xpose.msra.mxu0 0.0
        %1429 = vmatprep.subr.mxu0 0.0
        %1430 = vmatpush1.xpose.msra.mxu0 0.0
        %1431 = vmatprep.subr.mxu0 0.0
        %1432 = vmatpush1.xpose.msra.mxu0 0.0
        %1433 = vmatprep.subr.mxu0 0.0
        %1434 = vmatpush1.xpose.msra.mxu0 0.0
        %1435 = vmatprep.subr.mxu0 0.0
        %1436 = vmatpush1.xpose.msra.mxu0 0.0
        %1437 = vmatprep.subr.mxu0 0.0
        %1438 = vmatpush1.xpose.msra.mxu0 0.0
        %1439 = vmatprep.subr.mxu0 0.0
        %1440 = vmatpush1.xpose.msra.mxu0 0.0
        %1441 = vmatprep.subr.mxu0 0.0
        %1442 = vmatpush1.xpose.msra.mxu0 0.0
        %1443 = vmatprep.subr.mxu0 0.0
        %1444 = vmatpush1.xpose.msra.mxu0 0.0
        %1445 = vmatprep.subr.mxu0 0.0
        %1446 = vmatpush1.xpose.msra.mxu0 0.0
        %1447 = vmatprep.subr.mxu0 0.0
        %1448 = vmatpush1.xpose.msra.mxu0 0.0
        %1449 = vmatprep.subr.mxu0 0.0
        %1450 = vmatpush1.xpose.msra.mxu0 0.0
        %1451 = vmatprep.subr.mxu0 0.0
        %1452 = vmatpush1.xpose.msra.mxu0 0.0
        %1453 = vmatprep.subr.mxu0 0.0
        %1454 = vmatpush1.xpose.msra.mxu0 0.0
        %1455 = vmatprep.subr.mxu0 0.0
        %1456 = vmatpush1.xpose.msra.mxu0 0.0
        %1457 = vmatprep.subr.mxu0 0.0
        %1458 = vmatpush1.xpose.msra.mxu0 0.0
        %1459 = vmatprep.subr.mxu0 0.0
        %1460 = vmatpush1.xpose.msra.mxu0 0.0
        %1461 = vmatprep.subr.mxu0 0.0
        %1462 = vmatpush1.xpose.msra.mxu0 0.0
        %1463 = vmatprep.subr.mxu0 0.0
        %1464 = vmatpush1.xpose.msra.mxu0 0.0
        %1465 = vmatprep.subr.mxu0 0.0
        %1466 = vmatpush1.xpose.msra.mxu0 0.0
        %1467 = vmatprep.subr.mxu0 0.0
        %1468 = vmatpush1.xpose.msra.mxu0 0.0
        %1469 = vmatprep.subr.mxu0 0.0
        %1470 = vmatpush1.xpose.msra.mxu0 0.0
        %1471 = vmatprep.mubr.f32.mxu0 0.0
        %1472 = vmatmul.mubr.f32.gmra.mrb[0].mxu0 %v1403
        %v1473 = vpop.f32.mrb[0].mxu0
        %v1474 = vadd.f32 %v364, %v1473
        %v1475 = vpop.f32.mrb[0].mxu0
        %1476 = vdwg.mxu0
        %1477 = vrot.lane.b32.xlu0 %v363, 116
        %v1478 = vpop.permute.xlu0 %1477
        %1479 = vrot.lane.b32.xlu0 %v359, 84
        %v1480 = vpop.permute.xlu0 %1479
        %v1481 = vsel %vm368, %v1478, 0
        %v1483 = vsel %vm368, %v1480, 0
        %1485 = vmatprep.subr.mxu0 0.0
        %1486 = vmatpush1.xpose.msra.mxu0 %v1483
        %1487 = vmatprep.subr.mxu0 0.0
        %1488 = vmatpush1.xpose.msra.mxu0 0.0
        %1489 = vmatprep.subr.mxu0 0.0
        %1490 = vmatpush1.xpose.msra.mxu0 0.0
        %1491 = vmatprep.subr.mxu0 0.0
        %1492 = vmatpush1.xpose.msra.mxu0 0.0
        %1493 = vmatprep.subr.mxu0 0.0
        %1494 = vmatpush1.xpose.msra.mxu0 0.0
        %1495 = vmatprep.subr.mxu0 0.0
        %1496 = vmatpush1.xpose.msra.mxu0 0.0
        %1497 = vmatprep.subr.mxu0 0.0
        %1498 = vmatpush1.xpose.msra.mxu0 0.0
        %1499 = vmatprep.subr.mxu0 0.0
        %1500 = vmatpush1.xpose.msra.mxu0 0.0
        %1501 = vmatprep.subr.mxu0 0.0
        %1502 = vmatpush1.xpose.msra.mxu0 0.0
        %1503 = vmatprep.subr.mxu0 0.0
        %1504 = vmatpush1.xpose.msra.mxu0 0.0
        %1505 = vmatprep.subr.mxu0 0.0
        %1506 = vmatpush1.xpose.msra.mxu0 0.0
        %1507 = vmatprep.subr.mxu0 0.0
        %1508 = vmatpush1.xpose.msra.mxu0 0.0
        %1509 = vmatprep.subr.mxu0 0.0
        %1510 = vmatpush1.xpose.msra.mxu0 0.0
        %1511 = vmatprep.subr.mxu0 0.0
        %1512 = vmatpush1.xpose.msra.mxu0 0.0
        %1513 = vmatprep.subr.mxu0 0.0
        %1514 = vmatpush1.xpose.msra.mxu0 0.0
        %1515 = vmatprep.subr.mxu0 0.0
        %1516 = vmatpush1.xpose.msra.mxu0 0.0
        %1517 = vmatprep.subr.mxu0 0.0
        %1518 = vmatpush1.xpose.msra.mxu0 0.0
        %1519 = vmatprep.subr.mxu0 0.0
        %1520 = vmatpush1.xpose.msra.mxu0 0.0
        %1521 = vmatprep.subr.mxu0 0.0
        %1522 = vmatpush1.xpose.msra.mxu0 0.0
        %1523 = vmatprep.subr.mxu0 0.0
        %1524 = vmatpush1.xpose.msra.mxu0 0.0
        %1525 = vmatprep.subr.mxu0 0.0
        %1526 = vmatpush1.xpose.msra.mxu0 0.0
        %1527 = vmatprep.subr.mxu0 0.0
        %1528 = vmatpush1.xpose.msra.mxu0 0.0
        %1529 = vmatprep.subr.mxu0 0.0
        %1530 = vmatpush1.xpose.msra.mxu0 0.0
        %1531 = vmatprep.subr.mxu0 0.0
        %1532 = vmatpush1.xpose.msra.mxu0 0.0
        %1533 = vmatprep.subr.mxu0 0.0
        %1534 = vmatpush1.xpose.msra.mxu0 0.0
        %1535 = vmatprep.subr.mxu0 0.0
        %1536 = vmatpush1.xpose.msra.mxu0 0.0
        %1537 = vmatprep.subr.mxu0 0.0
        %1538 = vmatpush1.xpose.msra.mxu0 0.0
        %1539 = vmatprep.subr.mxu0 0.0
        %1540 = vmatpush1.xpose.msra.mxu0 0.0
        %1541 = vmatprep.subr.mxu0 0.0
        %1542 = vmatpush1.xpose.msra.mxu0 0.0
        %1543 = vmatprep.subr.mxu0 0.0
        %1544 = vmatpush1.xpose.msra.mxu0 0.0
        %1545 = vmatprep.subr.mxu0 0.0
        %1546 = vmatpush1.xpose.msra.mxu0 0.0
        %1547 = vmatprep.subr.mxu0 0.0
        %1548 = vmatpush1.xpose.msra.mxu0 0.0
        %1549 = vmatprep.mubr.f32.mxu0 0.0
        %1550 = vmatmul.mubr.f32.gmra.mrb[0].mxu0 %v1481
        %v1551 = vpop.f32.mrb[0].mxu0
        %v1552 = vadd.f32 %v364, %v1551
        %v1553 = vpop.f32.mrb[0].mxu0
        %1554 = vdwg.mxu0
        %v1555 = vsel %vm522, %v1474, -inf
        %1556 = vmax.xlane.f32.xlu0 %v1555
        %v1557 = vpop.xlane.xlu0 %1556
        %v1558 = vsel %vm522, %v1552, -inf
        %1559 = vmax.xlane.f32.xlu0 %v1558
        %v1560 = vpop.xlane.xlu0 %1559
        %v1561 = vsub.f32 %v1474, %v1557
        %v1562 = vsub.f32 %v1552, %v1560
        %v1563 = vmul.f32 %v1561, 1.442695
        %v1564 = vpow.pop %v1563
        %v1565 = vmul.f32 %v1562, 1.442695
        %v1566 = vpow.pop %v1565
        %v1567 = vsel %vm522, %v1564, 0.0
        %1568 = vadd.xlane.f32.xlu0 %v1567
        %v1569 = vpop.xlane.xlu0 %1568
        %v1570 = vsel %vm522, %v1566, 0.0
        %1571 = vadd.xlane.f32.xlu0 %v1570
        %v1572 = vpop.xlane.xlu0 %1571
        %v1573 = vrcp.pop %v1569
        %v1574 = vrcp.pop %v1572
        %v1575 = vmul.f32 %v1564, %v1573
        %v1576 = vmul.f32 %v1566, %v1574
        %v1577 = vmul.f32 %v1575, 1.442695
        %v1578 = vpow.pop %v1577
        %v1579 = vmul.f32 %v1576, 1.442695
        %v1580 = vpow.pop %v1579
        %v1581 = vsel %vm522, %v1578, 0.0
        %1582 = vadd.xlane.f32.xlu0 %v1581
        %v1583 = vpop.xlane.xlu0 %1582
        %v1584 = vsel %vm522, %v1580, 0.0
        %1585 = vadd.xlane.f32.xlu0 %v1584
        %v1586 = vpop.xlane.xlu0 %1585
        %v1587 = vrcp.pop %v1583
        %v1588 = vrcp.pop %v1586
        %v1589 = vmul.f32 %v1578, %v1587
        %v1590 = vmul.f32 %v1580, %v1588
        %1591 = vrot.lane.b32.xlu0 %v354, 52
        %v1592 = vpop.permute.xlu0 %1591
        %v1595 = vsel %vm522, %v1589, 0
        %1597 = vmatprep.subr.mxu0 0.0
        %1598 = vmatpush1.msra.mxu0 %v1592
        %1599 = vmatprep.subr.mxu0 0.0
        %1600 = vmatpush1.msra.mxu0 0.0
        %1601 = vmatprep.subr.mxu0 0.0
        %1602 = vmatpush1.msra.mxu0 0.0
        %1603 = vmatprep.subr.mxu0 0.0
        %1604 = vmatpush1.msra.mxu0 0.0
        %1605 = vmatprep.subr.mxu0 0.0
        %1606 = vmatpush1.msra.mxu0 0.0
        %1607 = vmatprep.subr.mxu0 0.0
        %1608 = vmatpush1.msra.mxu0 0.0
        %1609 = vmatprep.subr.mxu0 0.0
        %1610 = vmatpush1.msra.mxu0 0.0
        %1611 = vmatprep.subr.mxu0 0.0
        %1612 = vmatpush1.msra.mxu0 0.0
        %1613 = vmatprep.subr.mxu0 0.0
        %1614 = vmatpush1.msra.mxu0 0.0
        %1615 = vmatprep.subr.mxu0 0.0
        %1616 = vmatpush1.msra.mxu0 0.0
        %1617 = vmatprep.subr.mxu0 0.0
        %1618 = vmatpush1.msra.mxu0 0.0
        %1619 = vmatprep.subr.mxu0 0.0
        %1620 = vmatpush1.msra.mxu0 0.0
        %1621 = vmatprep.subr.mxu0 0.0
        %1622 = vmatpush1.msra.mxu0 0.0
        %1623 = vmatprep.subr.mxu0 0.0
        %1624 = vmatpush1.msra.mxu0 0.0
        %1625 = vmatprep.subr.mxu0 0.0
        %1626 = vmatpush1.msra.mxu0 0.0
        %1627 = vmatprep.subr.mxu0 0.0
        %1628 = vmatpush1.msra.mxu0 0.0
        %1629 = vmatprep.subr.mxu0 0.0
        %1630 = vmatpush1.msra.mxu0 0.0
        %1631 = vmatprep.subr.mxu0 0.0
        %1632 = vmatpush1.msra.mxu0 0.0
        %1633 = vmatprep.subr.mxu0 0.0
        %1634 = vmatpush1.msra.mxu0 0.0
        %1635 = vmatprep.subr.mxu0 0.0
        %1636 = vmatpush1.msra.mxu0 0.0
        %1637 = vmatprep.subr.mxu0 0.0
        %1638 = vmatpush1.msra.mxu0 0.0
        %1639 = vmatprep.subr.mxu0 0.0
        %1640 = vmatpush1.msra.mxu0 0.0
        %1641 = vmatprep.subr.mxu0 0.0
        %1642 = vmatpush1.msra.mxu0 0.0
        %1643 = vmatprep.subr.mxu0 0.0
        %1644 = vmatpush1.msra.mxu0 0.0
        %1645 = vmatprep.subr.mxu0 0.0
        %1646 = vmatpush1.msra.mxu0 0.0
        %1647 = vmatprep.subr.mxu0 0.0
        %1648 = vmatpush1.msra.mxu0 0.0
        %1649 = vmatprep.subr.mxu0 0.0
        %1650 = vmatpush1.msra.mxu0 0.0
        %1651 = vmatprep.subr.mxu0 0.0
        %1652 = vmatpush1.msra.mxu0 0.0
        %1653 = vmatprep.subr.mxu0 0.0
        %1654 = vmatpush1.msra.mxu0 0.0
        %1655 = vmatprep.subr.mxu0 0.0
        %1656 = vmatpush1.msra.mxu0 0.0
        %1657 = vmatprep.subr.mxu0 0.0
        %1658 = vmatpush1.msra.mxu0 0.0
        %1659 = vmatprep.subr.mxu0 0.0
        %1660 = vmatpush1.msra.mxu0 0.0
        %1661 = vmatprep.mubr.f32.mxu0 0.0
        %1662 = vmatmul.mubr.f32.gmra.mrb[0].mxu0 %v1595
        %v1663 = vpop.f32.mrb[0].mxu0
        %v1664 = vadd.f32 0.0, %v1663
        %v1665 = vpop.f32.mrb[0].mxu0
        %1666 = vdwg.mxu0
        %1667 = vrot.lane.b32.xlu0 %v359, 52
        %v1668 = vpop.permute.xlu0 %1667
        %v1671 = vsel %vm522, %v1590, 0
        %1673 = vmatprep.subr.mxu0 0.0
        %1674 = vmatpush1.msra.mxu0 %v1668
        %1675 = vmatprep.subr.mxu0 0.0
        %1676 = vmatpush1.msra.mxu0 0.0
        %1677 = vmatprep.subr.mxu0 0.0
        %1678 = vmatpush1.msra.mxu0 0.0
        %1679 = vmatprep.subr.mxu0 0.0
        %1680 = vmatpush1.msra.mxu0 0.0
        %1681 = vmatprep.subr.mxu0 0.0
        %1682 = vmatpush1.msra.mxu0 0.0
        %1683 = vmatprep.subr.mxu0 0.0
        %1684 = vmatpush1.msra.mxu0 0.0
        %1685 = vmatprep.subr.mxu0 0.0
        %1686 = vmatpush1.msra.mxu0 0.0
        %1687 = vmatprep.subr.mxu0 0.0
        %1688 = vmatpush1.msra.mxu0 0.0
        %1689 = vmatprep.subr.mxu0 0.0
        %1690 = vmatpush1.msra.mxu0 0.0
        %1691 = vmatprep.subr.mxu0 0.0
        %1692 = vmatpush1.msra.mxu0 0.0
        %1693 = vmatprep.subr.mxu0 0.0
        %1694 = vmatpush1.msra.mxu0 0.0
        %1695 = vmatprep.subr.mxu0 0.0
        %1696 = vmatpush1.msra.mxu0 0.0
        %1697 = vmatprep.subr.mxu0 0.0
        %1698 = vmatpush1.msra.mxu0 0.0
        %1699 = vmatprep.subr.mxu0 0.0
        %1700 = vmatpush1.msra.mxu0 0.0
        %1701 = vmatprep.subr.mxu0 0.0
        %1702 = vmatpush1.msra.mxu0 0.0
        %1703 = vmatprep.subr.mxu0 0.0
        %1704 = vmatpush1.msra.mxu0 0.0
        %1705 = vmatprep.subr.mxu0 0.0
        %1706 = vmatpush1.msra.mxu0 0.0
        %1707 = vmatprep.subr.mxu0 0.0
        %1708 = vmatpush1.msra.mxu0 0.0
        %1709 = vmatprep.subr.mxu0 0.0
        %1710 = vmatpush1.msra.mxu0 0.0
        %1711 = vmatprep.subr.mxu0 0.0
        %1712 = vmatpush1.msra.mxu0 0.0
        %1713 = vmatprep.subr.mxu0 0.0
        %1714 = vmatpush1.msra.mxu0 0.0
        %1715 = vmatprep.subr.mxu0 0.0
        %1716 = vmatpush1.msra.mxu0 0.0
        %1717 = vmatprep.subr.mxu0 0.0
        %1718 = vmatpush1.msra.mxu0 0.0
        %1719 = vmatprep.subr.mxu0 0.0
        %1720 = vmatpush1.msra.mxu0 0.0
        %1721 = vmatprep.subr.mxu0 0.0
        %1722 = vmatpush1.msra.mxu0 0.0
        %1723 = vmatprep.subr.mxu0 0.0
        %1724 = vmatpush1.msra.mxu0 0.0
        %1725 = vmatprep.subr.mxu0 0.0
        %1726 = vmatpush1.msra.mxu0 0.0
        %1727 = vmatprep.subr.mxu0 0.0
        %1728 = vmatpush1.msra.mxu0 0.0
        %1729 = vmatprep.subr.mxu0 0.0
        %1730 = vmatpush1.msra.mxu0 0.0
        %1731 = vmatprep.subr.mxu0 0.0
        %1732 = vmatpush1.msra.mxu0 0.0
        %1733 = vmatprep.subr.mxu0 0.0
        %1734 = vmatpush1.msra.mxu0 0.0
        %1735 = vmatprep.subr.mxu0 0.0
        %1736 = vmatpush1.msra.mxu0 0.0
        %1737 = vmatprep.mubr.f32.mxu0 0.0
        %1738 = vmatmul.mubr.f32.gmra.mrb[0].mxu0 %v1671
        %v1739 = vpop.f32.mrb[0].mxu0
        %v1740 = vadd.f32 0.0, %v1739
        %v1741 = vpop.f32.mrb[0].mxu0
        %1742 = vdwg.mxu0
        %1743 = vrot.lane.b32.xlu0 %v362, 112
        %v1744 = vpop.permute.xlu0 %1743
        %1745 = vrot.lane.b32.xlu0 %v354, 80
        %v1746 = vpop.permute.xlu0 %1745
        %v1747 = vsel %vm368, %v1744, 0
        %v1749 = vsel %vm368, %v1746, 0
        %1751 = vmatprep.subr.mxu0 0.0
        %1752 = vmatpush1.xpose.msra.mxu0 %v1749
        %1753 = vmatprep.subr.mxu0 0.0
        %1754 = vmatpush1.xpose.msra.mxu0 0.0
        %1755 = vmatprep.subr.mxu0 0.0
        %1756 = vmatpush1.xpose.msra.mxu0 0.0
        %1757 = vmatprep.subr.mxu0 0.0
        %1758 = vmatpush1.xpose.msra.mxu0 0.0
        %1759 = vmatprep.subr.mxu0 0.0
        %1760 = vmatpush1.xpose.msra.mxu0 0.0
        %1761 = vmatprep.subr.mxu0 0.0
        %1762 = vmatpush1.xpose.msra.mxu0 0.0
        %1763 = vmatprep.subr.mxu0 0.0
        %1764 = vmatpush1.xpose.msra.mxu0 0.0
        %1765 = vmatprep.subr.mxu0 0.0
        %1766 = vmatpush1.xpose.msra.mxu0 0.0
        %1767 = vmatprep.subr.mxu0 0.0
        %1768 = vmatpush1.xpose.msra.mxu0 0.0
        %1769 = vmatprep.subr.mxu0 0.0
        %1770 = vmatpush1.xpose.msra.mxu0 0.0
        %1771 = vmatprep.subr.mxu0 0.0
        %1772 = vmatpush1.xpose.msra.mxu0 0.0
        %1773 = vmatprep.subr.mxu0 0.0
        %1774 = vmatpush1.xpose.msra.mxu0 0.0
        %1775 = vmatprep.subr.mxu0 0.0
        %1776 = vmatpush1.xpose.msra.mxu0 0.0
        %1777 = vmatprep.subr.mxu0 0.0
        %1778 = vmatpush1.xpose.msra.mxu0 0.0
        %1779 = vmatprep.subr.mxu0 0.0
        %1780 = vmatpush1.xpose.msra.mxu0 0.0
        %1781 = vmatprep.subr.mxu0 0.0
        %1782 = vmatpush1.xpose.msra.mxu0 0.0
        %1783 = vmatprep.subr.mxu0 0.0
        %1784 = vmatpush1.xpose.msra.mxu0 0.0
        %1785 = vmatprep.subr.mxu0 0.0
        %1786 = vmatpush1.xpose.msra.mxu0 0.0
        %1787 = vmatprep.subr.mxu0 0.0
        %1788 = vmatpush1.xpose.msra.mxu0 0.0
        %1789 = vmatprep.subr.mxu0 0.0
        %1790 = vmatpush1.xpose.msra.mxu0 0.0
        %1791 = vmatprep.subr.mxu0 0.0
        %1792 = vmatpush1.xpose.msra.mxu0 0.0
        %1793 = vmatprep.subr.mxu0 0.0
        %1794 = vmatpush1.xpose.msra.mxu0 0.0
        %1795 = vmatprep.subr.mxu0 0.0
        %1796 = vmatpush1.xpose.msra.mxu0 0.0
        %1797 = vmatprep.subr.mxu0 0.0
        %1798 = vmatpush1.xpose.msra.mxu0 0.0
        %1799 = vmatprep.subr.mxu0 0.0
        %1800 = vmatpush1.xpose.msra.mxu0 0.0
        %1801 = vmatprep.subr.mxu0 0.0
        %1802 = vmatpush1.xpose.msra.mxu0 0.0
        %1803 = vmatprep.subr.mxu0 0.0
        %1804 = vmatpush1.xpose.msra.mxu0 0.0
        %1805 = vmatprep.subr.mxu0 0.0
        %1806 = vmatpush1.xpose.msra.mxu0 0.0
        %1807 = vmatprep.subr.mxu0 0.0
        %1808 = vmatpush1.xpose.msra.mxu0 0.0
        %1809 = vmatprep.subr.mxu0 0.0
        %1810 = vmatpush1.xpose.msra.mxu0 0.0
        %1811 = vmatprep.subr.mxu0 0.0
        %1812 = vmatpush1.xpose.msra.mxu0 0.0
        %1813 = vmatprep.subr.mxu0 0.0
        %1814 = vmatpush1.xpose.msra.mxu0 0.0
        %1815 = vmatprep.mubr.f32.mxu0 0.0
        %1816 = vmatmul.mubr.f32.gmra.mrb[0].mxu0 %v1747
        %v1817 = vpop.f32.mrb[0].mxu0
        %v1818 = vadd.f32 %v364, %v1817
        %v1819 = vpop.f32.mrb[0].mxu0
        %1820 = vdwg.mxu0
        %1821 = vrot.lane.b32.xlu0 %v363, 112
        %v1822 = vpop.permute.xlu0 %1821
        %1823 = vrot.lane.b32.xlu0 %v359, 80
        %v1824 = vpop.permute.xlu0 %1823
        %v1825 = vsel %vm368, %v1822, 0
        %v1827 = vsel %vm368, %v1824, 0
        %1829 = vmatprep.subr.mxu0 0.0
        %1830 = vmatpush1.xpose.msra.mxu0 %v1827
        %1831 = vmatprep.subr.mxu0 0.0
        %1832 = vmatpush1.xpose.msra.mxu0 0.0
        %1833 = vmatprep.subr.mxu0 0.0
        %1834 = vmatpush1.xpose.msra.mxu0 0.0
        %1835 = vmatprep.subr.mxu0 0.0
        %1836 = vmatpush1.xpose.msra.mxu0 0.0
        %1837 = vmatprep.subr.mxu0 0.0
        %1838 = vmatpush1.xpose.msra.mxu0 0.0
        %1839 = vmatprep.subr.mxu0 0.0
        %1840 = vmatpush1.xpose.msra.mxu0 0.0
        %1841 = vmatprep.subr.mxu0 0.0
        %1842 = vmatpush1.xpose.msra.mxu0 0.0
        %1843 = vmatprep.subr.mxu0 0.0
        %1844 = vmatpush1.xpose.msra.mxu0 0.0
        %1845 = vmatprep.subr.mxu0 0.0
        %1846 = vmatpush1.xpose.msra.mxu0 0.0
        %1847 = vmatprep.subr.mxu0 0.0
        %1848 = vmatpush1.xpose.msra.mxu0 0.0
        %1849 = vmatprep.subr.mxu0 0.0
        %1850 = vmatpush1.xpose.msra.mxu0 0.0
        %1851 = vmatprep.subr.mxu0 0.0
        %1852 = vmatpush1.xpose.msra.mxu0 0.0
        %1853 = vmatprep.subr.mxu0 0.0
        %1854 = vmatpush1.xpose.msra.mxu0 0.0
        %1855 = vmatprep.subr.mxu0 0.0
        %1856 = vmatpush1.xpose.msra.mxu0 0.0
        %1857 = vmatprep.subr.mxu0 0.0
        %1858 = vmatpush1.xpose.msra.mxu0 0.0
        %1859 = vmatprep.subr.mxu0 0.0
        %1860 = vmatpush1.xpose.msra.mxu0 0.0
        %1861 = vmatprep.subr.mxu0 0.0
        %1862 = vmatpush1.xpose.msra.mxu0 0.0
        %1863 = vmatprep.subr.mxu0 0.0
        %1864 = vmatpush1.xpose.msra.mxu0 0.0
        %1865 = vmatprep.subr.mxu0 0.0
        %1866 = vmatpush1.xpose.msra.mxu0 0.0
        %1867 = vmatprep.subr.mxu0 0.0
        %1868 = vmatpush1.xpose.msra.mxu0 0.0
        %1869 = vmatprep.subr.mxu0 0.0
        %1870 = vmatpush1.xpose.msra.mxu0 0.0
        %1871 = vmatprep.subr.mxu0 0.0
        %1872 = vmatpush1.xpose.msra.mxu0 0.0
        %1873 = vmatprep.subr.mxu0 0.0
        %1874 = vmatpush1.xpose.msra.mxu0 0.0
        %1875 = vmatprep.subr.mxu0 0.0
        %1876 = vmatpush1.xpose.msra.mxu0 0.0
        %1877 = vmatprep.subr.mxu0 0.0
        %1878 = vmatpush1.xpose.msra.mxu0 0.0
        %1879 = vmatprep.subr.mxu0 0.0
        %1880 = vmatpush1.xpose.msra.mxu0 0.0
        %1881 = vmatprep.subr.mxu0 0.0
        %1882 = vmatpush1.xpose.msra.mxu0 0.0
        %1883 = vmatprep.subr.mxu0 0.0
        %1884 = vmatpush1.xpose.msra.mxu0 0.0
        %1885 = vmatprep.subr.mxu0 0.0
        %1886 = vmatpush1.xpose.msra.mxu0 0.0
        %1887 = vmatprep.subr.mxu0 0.0
        %1888 = vmatpush1.xpose.msra.mxu0 0.0
        %1889 = vmatprep.subr.mxu0 0.0
        %1890 = vmatpush1.xpose.msra.mxu0 0.0
        %1891 = vmatprep.subr.mxu0 0.0
        %1892 = vmatpush1.xpose.msra.mxu0 0.0
        %1893 = vmatprep.mubr.f32.mxu0 0.0
        %1894 = vmatmul.mubr.f32.gmra.mrb[0].mxu0 %v1825
        %v1895 = vpop.f32.mrb[0].mxu0
        %v1896 = vadd.f32 %v364, %v1895
        %v1897 = vpop.f32.mrb[0].mxu0
        %1898 = vdwg.mxu0
        %v1899 = vsel %vm522, %v1818, -inf
        %1900 = vmax.xlane.f32.xlu0 %v1899
        %v1901 = vpop.xlane.xlu0 %1900
        %v1902 = vsel %vm522, %v1896, -inf
        %1903 = vmax.xlane.f32.xlu0 %v1902
        %v1904 = vpop.xlane.xlu0 %1903
        %v1905 = vsub.f32 %v1818, %v1901
        %v1906 = vsub.f32 %v1896, %v1904
        %v1907 = vmul.f32 %v1905, 1.442695
        %v1908 = vpow.pop %v1907
        %v1909 = vmul.f32 %v1906, 1.442695
        %v1910 = vpow.pop %v1909
        %v1911 = vsel %vm522, %v1908, 0.0
        %1912 = vadd.xlane.f32.xlu0 %v1911
        %v1913 = vpop.xlane.xlu0 %1912
        %v1914 = vsel %vm522, %v1910, 0.0
        %1915 = vadd.xlane.f32.xlu0 %v1914
        %v1916 = vpop.xlane.xlu0 %1915
        %v1917 = vrcp.pop %v1913
        %v1918 = vrcp.pop %v1916
        %v1919 = vmul.f32 %v1908, %v1917
        %v1920 = vmul.f32 %v1910, %v1918
        %v1921 = vmul.f32 %v1919, 1.442695
        %v1922 = vpow.pop %v1921
        %v1923 = vmul.f32 %v1920, 1.442695
        %v1924 = vpow.pop %v1923
        %v1925 = vsel %vm522, %v1922, 0.0
        %1926 = vadd.xlane.f32.xlu0 %v1925
        %v1927 = vpop.xlane.xlu0 %1926
        %v1928 = vsel %vm522, %v1924, 0.0
        %1929 = vadd.xlane.f32.xlu0 %v1928
        %v1930 = vpop.xlane.xlu0 %1929
        %v1931 = vrcp.pop %v1927
        %v1932 = vrcp.pop %v1930
        %v1933 = vmul.f32 %v1922, %v1931
        %v1934 = vmul.f32 %v1924, %v1932
        %1935 = vrot.lane.b32.xlu0 %v354, 48
        %v1936 = vpop.permute.xlu0 %1935
        %v1939 = vsel %vm522, %v1933, 0
        %1941 = vmatprep.subr.mxu0 0.0
        %1942 = vmatpush1.msra.mxu0 %v1936
        %1943 = vmatprep.subr.mxu0 0.0
        %1944 = vmatpush1.msra.mxu0 0.0
        %1945 = vmatprep.subr.mxu0 0.0
        %1946 = vmatpush1.msra.mxu0 0.0
        %1947 = vmatprep.subr.mxu0 0.0
        %1948 = vmatpush1.msra.mxu0 0.0
        %1949 = vmatprep.subr.mxu0 0.0
        %1950 = vmatpush1.msra.mxu0 0.0
        %1951 = vmatprep.subr.mxu0 0.0
        %1952 = vmatpush1.msra.mxu0 0.0
        %1953 = vmatprep.subr.mxu0 0.0
        %1954 = vmatpush1.msra.mxu0 0.0
        %1955 = vmatprep.subr.mxu0 0.0
        %1956 = vmatpush1.msra.mxu0 0.0
        %1957 = vmatprep.subr.mxu0 0.0
        %1958 = vmatpush1.msra.mxu0 0.0
        %1959 = vmatprep.subr.mxu0 0.0
        %1960 = vmatpush1.msra.mxu0 0.0
        %1961 = vmatprep.subr.mxu0 0.0
        %1962 = vmatpush1.msra.mxu0 0.0
        %1963 = vmatprep.subr.mxu0 0.0
        %1964 = vmatpush1.msra.mxu0 0.0
        %1965 = vmatprep.subr.mxu0 0.0
        %1966 = vmatpush1.msra.mxu0 0.0
        %1967 = vmatprep.subr.mxu0 0.0
        %1968 = vmatpush1.msra.mxu0 0.0
        %1969 = vmatprep.subr.mxu0 0.0
        %1970 = vmatpush1.msra.mxu0 0.0
        %1971 = vmatprep.subr.mxu0 0.0
        %1972 = vmatpush1.msra.mxu0 0.0
        %1973 = vmatprep.subr.mxu0 0.0
        %1974 = vmatpush1.msra.mxu0 0.0
        %1975 = vmatprep.subr.mxu0 0.0
        %1976 = vmatpush1.msra.mxu0 0.0
        %1977 = vmatprep.subr.mxu0 0.0
        %1978 = vmatpush1.msra.mxu0 0.0
        %1979 = vmatprep.subr.mxu0 0.0
        %1980 = vmatpush1.msra.mxu0 0.0
        %1981 = vmatprep.subr.mxu0 0.0
        %1982 = vmatpush1.msra.mxu0 0.0
        %1983 = vmatprep.subr.mxu0 0.0
        %1984 = vmatpush1.msra.mxu0 0.0
        %1985 = vmatprep.subr.mxu0 0.0
        %1986 = vmatpush1.msra.mxu0 0.0
        %1987 = vmatprep.subr.mxu0 0.0
        %1988 = vmatpush1.msra.mxu0 0.0
        %1989 = vmatprep.subr.mxu0 0.0
        %1990 = vmatpush1.msra.mxu0 0.0
        %1991 = vmatprep.subr.mxu0 0.0
        %1992 = vmatpush1.msra.mxu0 0.0
        %1993 = vmatprep.subr.mxu0 0.0
        %1994 = vmatpush1.msra.mxu0 0.0
        %1995 = vmatprep.subr.mxu0 0.0
        %1996 = vmatpush1.msra.mxu0 0.0
        %1997 = vmatprep.subr.mxu0 0.0
        %1998 = vmatpush1.msra.mxu0 0.0
        %1999 = vmatprep.subr.mxu0 0.0
        %2000 = vmatpush1.msra.mxu0 0.0
        %2001 = vmatprep.subr.mxu0 0.0
        %2002 = vmatpush1.msra.mxu0 0.0
        %2003 = vmatprep.subr.mxu0 0.0
        %2004 = vmatpush1.msra.mxu0 0.0
        %2005 = vmatprep.mubr.f32.mxu0 0.0
        %2006 = vmatmul.mubr.f32.gmra.mrb[0].mxu0 %v1939
        %v2007 = vpop.f32.mrb[0].mxu0
        %v2008 = vadd.f32 0.0, %v2007
        %v2009 = vpop.f32.mrb[0].mxu0
        %2010 = vdwg.mxu0
        %2011 = vrot.lane.b32.xlu0 %v359, 48
        %v2012 = vpop.permute.xlu0 %2011
        %v2015 = vsel %vm522, %v1934, 0
        %2017 = vmatprep.subr.mxu0 0.0
        %2018 = vmatpush1.msra.mxu0 %v2012
        %2019 = vmatprep.subr.mxu0 0.0
        %2020 = vmatpush1.msra.mxu0 0.0
        %2021 = vmatprep.subr.mxu0 0.0
        %2022 = vmatpush1.msra.mxu0 0.0
        %2023 = vmatprep.subr.mxu0 0.0
        %2024 = vmatpush1.msra.mxu0 0.0
        %2025 = vmatprep.subr.mxu0 0.0
        %2026 = vmatpush1.msra.mxu0 0.0
        %2027 = vmatprep.subr.mxu0 0.0
        %2028 = vmatpush1.msra.mxu0 0.0
        %2029 = vmatprep.subr.mxu0 0.0
        %2030 = vmatpush1.msra.mxu0 0.0
        %2031 = vmatprep.subr.mxu0 0.0
        %2032 = vmatpush1.msra.mxu0 0.0
        %2033 = vmatprep.subr.mxu0 0.0
        %2034 = vmatpush1.msra.mxu0 0.0
        %2035 = vmatprep.subr.mxu0 0.0
        %2036 = vmatpush1.msra.mxu0 0.0
        %2037 = vmatprep.subr.mxu0 0.0
        %2038 = vmatpush1.msra.mxu0 0.0
        %2039 = vmatprep.subr.mxu0 0.0
        %2040 = vmatpush1.msra.mxu0 0.0
        %2041 = vmatprep.subr.mxu0 0.0
        %2042 = vmatpush1.msra.mxu0 0.0
        %2043 = vmatprep.subr.mxu0 0.0
        %2044 = vmatpush1.msra.mxu0 0.0
        %2045 = vmatprep.subr.mxu0 0.0
        %2046 = vmatpush1.msra.mxu0 0.0
        %2047 = vmatprep.subr.mxu0 0.0
        %2048 = vmatpush1.msra.mxu0 0.0
        %2049 = vmatprep.subr.mxu0 0.0
        %2050 = vmatpush1.msra.mxu0 0.0
        %2051 = vmatprep.subr.mxu0 0.0
        %2052 = vmatpush1.msra.mxu0 0.0
        %2053 = vmatprep.subr.mxu0 0.0
        %2054 = vmatpush1.msra.mxu0 0.0
        %2055 = vmatprep.subr.mxu0 0.0
        %2056 = vmatpush1.msra.mxu0 0.0
        %2057 = vmatprep.subr.mxu0 0.0
        %2058 = vmatpush1.msra.mxu0 0.0
        %2059 = vmatprep.subr.mxu0 0.0
        %2060 = vmatpush1.msra.mxu0 0.0
        %2061 = vmatprep.subr.mxu0 0.0
        %2062 = vmatpush1.msra.mxu0 0.0
        %2063 = vmatprep.subr.mxu0 0.0
        %2064 = vmatpush1.msra.mxu0 0.0
        %2065 = vmatprep.subr.mxu0 0.0
        %2066 = vmatpush1.msra.mxu0 0.0
        %2067 = vmatprep.subr.mxu0 0.0
        %2068 = vmatpush1.msra.mxu0 0.0
        %2069 = vmatprep.subr.mxu0 0.0
        %2070 = vmatpush1.msra.mxu0 0.0
        %2071 = vmatprep.subr.mxu0 0.0
        %2072 = vmatpush1.msra.mxu0 0.0
        %2073 = vmatprep.subr.mxu0 0.0
        %2074 = vmatpush1.msra.mxu0 0.0
        %2075 = vmatprep.subr.mxu0 0.0
        %2076 = vmatpush1.msra.mxu0 0.0
        %2077 = vmatprep.subr.mxu0 0.0
        %2078 = vmatpush1.msra.mxu0 0.0
        %2079 = vmatprep.subr.mxu0 0.0
        %2080 = vmatpush1.msra.mxu0 0.0
        %2081 = vmatprep.mubr.f32.mxu0 0.0
        %2082 = vmatmul.mubr.f32.gmra.mrb[0].mxu0 %v2015
        %v2083 = vpop.f32.mrb[0].mxu0
        %v2084 = vadd.f32 0.0, %v2083
        %v2085 = vpop.f32.mrb[0].mxu0
        %2086 = vdwg.mxu0
        %2087 = vrot.lane.b32.xlu0 %v362, 108
        %v2088 = vpop.permute.xlu0 %2087
        %2089 = vrot.lane.b32.xlu0 %v354, 76
        %v2090 = vpop.permute.xlu0 %2089
        %v2091 = vsel %vm368, %v2088, 0
        %v2093 = vsel %vm368, %v2090, 0
        %2095 = vmatprep.subr.mxu0 0.0
        %2096 = vmatpush1.xpose.msra.mxu0 %v2093
        %2097 = vmatprep.subr.mxu0 0.0
        %2098 = vmatpush1.xpose.msra.mxu0 0.0
        %2099 = vmatprep.subr.mxu0 0.0
        %2100 = vmatpush1.xpose.msra.mxu0 0.0
        %2101 = vmatprep.subr.mxu0 0.0
        %2102 = vmatpush1.xpose.msra.mxu0 0.0
        %2103 = vmatprep.subr.mxu0 0.0
        %2104 = vmatpush1.xpose.msra.mxu0 0.0
        %2105 = vmatprep.subr.mxu0 0.0
        %2106 = vmatpush1.xpose.msra.mxu0 0.0
        %2107 = vmatprep.subr.mxu0 0.0
        %2108 = vmatpush1.xpose.msra.mxu0 0.0
        %2109 = vmatprep.subr.mxu0 0.0
        %2110 = vmatpush1.xpose.msra.mxu0 0.0
        %2111 = vmatprep.subr.mxu0 0.0
        %2112 = vmatpush1.xpose.msra.mxu0 0.0
        %2113 = vmatprep.subr.mxu0 0.0
        %2114 = vmatpush1.xpose.msra.mxu0 0.0
        %2115 = vmatprep.subr.mxu0 0.0
        %2116 = vmatpush1.xpose.msra.mxu0 0.0
        %2117 = vmatprep.subr.mxu0 0.0
        %2118 = vmatpush1.xpose.msra.mxu0 0.0
        %2119 = vmatprep.subr.mxu0 0.0
        %2120 = vmatpush1.xpose.msra.mxu0 0.0
        %2121 = vmatprep.subr.mxu0 0.0
        %2122 = vmatpush1.xpose.msra.mxu0 0.0
        %2123 = vmatprep.subr.mxu0 0.0
        %2124 = vmatpush1.xpose.msra.mxu0 0.0
        %2125 = vmatprep.subr.mxu0 0.0
        %2126 = vmatpush1.xpose.msra.mxu0 0.0
        %2127 = vmatprep.subr.mxu0 0.0
        %2128 = vmatpush1.xpose.msra.mxu0 0.0
        %2129 = vmatprep.subr.mxu0 0.0
        %2130 = vmatpush1.xpose.msra.mxu0 0.0
        %2131 = vmatprep.subr.mxu0 0.0
        %2132 = vmatpush1.xpose.msra.mxu0 0.0
        %2133 = vmatprep.subr.mxu0 0.0
        %2134 = vmatpush1.xpose.msra.mxu0 0.0
        %2135 = vmatprep.subr.mxu0 0.0
        %2136 = vmatpush1.xpose.msra.mxu0 0.0
        %2137 = vmatprep.subr.mxu0 0.0
        %2138 = vmatpush1.xpose.msra.mxu0 0.0
        %2139 = vmatprep.subr.mxu0 0.0
        %2140 = vmatpush1.xpose.msra.mxu0 0.0
        %2141 = vmatprep.subr.mxu0 0.0
        %2142 = vmatpush1.xpose.msra.mxu0 0.0
        %2143 = vmatprep.subr.mxu0 0.0
        %2144 = vmatpush1.xpose.msra.mxu0 0.0
        %2145 = vmatprep.subr.mxu0 0.0
        %2146 = vmatpush1.xpose.msra.mxu0 0.0
        %2147 = vmatprep.subr.mxu0 0.0
        %2148 = vmatpush1.xpose.msra.mxu0 0.0
        %2149 = vmatprep.subr.mxu0 0.0
        %2150 = vmatpush1.xpose.msra.mxu0 0.0
        %2151 = vmatprep.subr.mxu0 0.0
        %2152 = vmatpush1.xpose.msra.mxu0 0.0
        %2153 = vmatprep.subr.mxu0 0.0
        %2154 = vmatpush1.xpose.msra.mxu0 0.0
        %2155 = vmatprep.subr.mxu0 0.0
        %2156 = vmatpush1.xpose.msra.mxu0 0.0
        %2157 = vmatprep.subr.mxu0 0.0
        %2158 = vmatpush1.xpose.msra.mxu0 0.0
        %2159 = vmatprep.mubr.f32.mxu0 0.0
        %2160 = vmatmul.mubr.f32.gmra.mrb[0].mxu0 %v2091
        %v2161 = vpop.f32.mrb[0].mxu0
        %v2162 = vadd.f32 %v364, %v2161
        %v2163 = vpop.f32.mrb[0].mxu0
        %2164 = vdwg.mxu0
        %2165 = vrot.lane.b32.xlu0 %v363, 108
        %v2166 = vpop.permute.xlu0 %2165
        %2167 = vrot.lane.b32.xlu0 %v359, 76
        %v2168 = vpop.permute.xlu0 %2167
        %v2169 = vsel %vm368, %v2166, 0
        %v2171 = vsel %vm368, %v2168, 0
        %2173 = vmatprep.subr.mxu0 0.0
        %2174 = vmatpush1.xpose.msra.mxu0 %v2171
        %2175 = vmatprep.subr.mxu0 0.0
        %2176 = vmatpush1.xpose.msra.mxu0 0.0
        %2177 = vmatprep.subr.mxu0 0.0
        %2178 = vmatpush1.xpose.msra.mxu0 0.0
        %2179 = vmatprep.subr.mxu0 0.0
        %2180 = vmatpush1.xpose.msra.mxu0 0.0
        %2181 = vmatprep.subr.mxu0 0.0
        %2182 = vmatpush1.xpose.msra.mxu0 0.0
        %2183 = vmatprep.subr.mxu0 0.0
        %2184 = vmatpush1.xpose.msra.mxu0 0.0
        %2185 = vmatprep.subr.mxu0 0.0
        %2186 = vmatpush1.xpose.msra.mxu0 0.0
        %2187 = vmatprep.subr.mxu0 0.0
        %2188 = vmatpush1.xpose.msra.mxu0 0.0
        %2189 = vmatprep.subr.mxu0 0.0
        %2190 = vmatpush1.xpose.msra.mxu0 0.0
        %2191 = vmatprep.subr.mxu0 0.0
        %2192 = vmatpush1.xpose.msra.mxu0 0.0
        %2193 = vmatprep.subr.mxu0 0.0
        %2194 = vmatpush1.xpose.msra.mxu0 0.0
        %2195 = vmatprep.subr.mxu0 0.0
        %2196 = vmatpush1.xpose.msra.mxu0 0.0
        %2197 = vmatprep.subr.mxu0 0.0
        %2198 = vmatpush1.xpose.msra.mxu0 0.0
        %2199 = vmatprep.subr.mxu0 0.0
        %2200 = vmatpush1.xpose.msra.mxu0 0.0
        %2201 = vmatprep.subr.mxu0 0.0
        %2202 = vmatpush1.xpose.msra.mxu0 0.0
        %2203 = vmatprep.subr.mxu0 0.0
        %2204 = vmatpush1.xpose.msra.mxu0 0.0
        %2205 = vmatprep.subr.mxu0 0.0
        %2206 = vmatpush1.xpose.msra.mxu0 0.0
        %2207 = vmatprep.subr.mxu0 0.0
        %2208 = vmatpush1.xpose.msra.mxu0 0.0
        %2209 = vmatprep.subr.mxu0 0.0
        %2210 = vmatpush1.xpose.msra.mxu0 0.0
        %2211 = vmatprep.subr.mxu0 0.0
        %2212 = vmatpush1.xpose.msra.mxu0 0.0
        %2213 = vmatprep.subr.mxu0 0.0
        %2214 = vmatpush1.xpose.msra.mxu0 0.0
        %2215 = vmatprep.subr.mxu0 0.0
        %2216 = vmatpush1.xpose.msra.mxu0 0.0
        %2217 = vmatprep.subr.mxu0 0.0
        %2218 = vmatpush1.xpose.msra.mxu0 0.0
        %2219 = vmatprep.subr.mxu0 0.0
        %2220 = vmatpush1.xpose.msra.mxu0 0.0
        %2221 = vmatprep.subr.mxu0 0.0
        %2222 = vmatpush1.xpose.msra.mxu0 0.0
        %2223 = vmatprep.subr.mxu0 0.0
        %2224 = vmatpush1.xpose.msra.mxu0 0.0
        %2225 = vmatprep.subr.mxu0 0.0
        %2226 = vmatpush1.xpose.msra.mxu0 0.0
        %2227 = vmatprep.subr.mxu0 0.0
        %2228 = vmatpush1.xpose.msra.mxu0 0.0
        %2229 = vmatprep.subr.mxu0 0.0
        %2230 = vmatpush1.xpose.msra.mxu0 0.0
        %2231 = vmatprep.subr.mxu0 0.0
        %2232 = vmatpush1.xpose.msra.mxu0 0.0
        %2233 = vmatprep.subr.mxu0 0.0
        %2234 = vmatpush1.xpose.msra.mxu0 0.0
        %2235 = vmatprep.subr.mxu0 0.0
        %2236 = vmatpush1.xpose.msra.mxu0 0.0
        %2237 = vmatprep.mubr.f32.mxu0 0.0
        %2238 = vmatmul.mubr.f32.gmra.mrb[0].mxu0 %v2169
        %v2239 = vpop.f32.mrb[0].mxu0
        %v2240 = vadd.f32 %v364, %v2239
        %v2241 = vpop.f32.mrb[0].mxu0
        %2242 = vdwg.mxu0
        %v2243 = vsel %vm522, %v2162, -inf
        %2244 = vmax.xlane.f32.xlu0 %v2243
        %v2245 = vpop.xlane.xlu0 %2244
        %v2246 = vsel %vm522, %v2240, -inf
        %2247 = vmax.xlane.f32.xlu0 %v2246
        %v2248 = vpop.xlane.xlu0 %2247
        %v2249 = vsub.f32 %v2162, %v2245
        %v2250 = vsub.f32 %v2240, %v2248
        %v2251 = vmul.f32 %v2249, 1.442695
        %v2252 = vpow.pop %v2251
        %v2253 = vmul.f32 %v2250, 1.442695
        %v2254 = vpow.pop %v2253
        %v2255 = vsel %vm522, %v2252, 0.0
        %2256 = vadd.xlane.f32.xlu0 %v2255
        %v2257 = vpop.xlane.xlu0 %2256
        %v2258 = vsel %vm522, %v2254, 0.0
        %2259 = vadd.xlane.f32.xlu0 %v2258
        %v2260 = vpop.xlane.xlu0 %2259
        %v2261 = vrcp.pop %v2257
        %v2262 = vrcp.pop %v2260
        %v2263 = vmul.f32 %v2252, %v2261
        %v2264 = vmul.f32 %v2254, %v2262
        %v2265 = vmul.f32 %v2263, 1.442695
        %v2266 = vpow.pop %v2265
        %v2267 = vmul.f32 %v2264, 1.442695
        %v2268 = vpow.pop %v2267
        %v2269 = vsel %vm522, %v2266, 0.0
        %2270 = vadd.xlane.f32.xlu0 %v2269
        %v2271 = vpop.xlane.xlu0 %2270
        %v2272 = vsel %vm522, %v2268, 0.0
        %2273 = vadd.xlane.f32.xlu0 %v2272
        %v2274 = vpop.xlane.xlu0 %2273
        %v2275 = vrcp.pop %v2271
        %v2276 = vrcp.pop %v2274
        %v2277 = vmul.f32 %v2266, %v2275
        %v2278 = vmul.f32 %v2268, %v2276
        %2279 = vrot.lane.b32.xlu0 %v354, 44
        %v2280 = vpop.permute.xlu0 %2279
        %v2283 = vsel %vm522, %v2277, 0
        %2285 = vmatprep.subr.mxu0 0.0
        %2286 = vmatpush1.msra.mxu0 %v2280
        %2287 = vmatprep.subr.mxu0 0.0
        %2288 = vmatpush1.msra.mxu0 0.0
        %2289 = vmatprep.subr.mxu0 0.0
        %2290 = vmatpush1.msra.mxu0 0.0
        %2291 = vmatprep.subr.mxu0 0.0
        %2292 = vmatpush1.msra.mxu0 0.0
        %2293 = vmatprep.subr.mxu0 0.0
        %2294 = vmatpush1.msra.mxu0 0.0
        %2295 = vmatprep.subr.mxu0 0.0
        %2296 = vmatpush1.msra.mxu0 0.0
        %2297 = vmatprep.subr.mxu0 0.0
        %2298 = vmatpush1.msra.mxu0 0.0
        %2299 = vmatprep.subr.mxu0 0.0
        %2300 = vmatpush1.msra.mxu0 0.0
        %2301 = vmatprep.subr.mxu0 0.0
        %2302 = vmatpush1.msra.mxu0 0.0
        %2303 = vmatprep.subr.mxu0 0.0
        %2304 = vmatpush1.msra.mxu0 0.0
        %2305 = vmatprep.subr.mxu0 0.0
        %2306 = vmatpush1.msra.mxu0 0.0
        %2307 = vmatprep.subr.mxu0 0.0
        %2308 = vmatpush1.msra.mxu0 0.0
        %2309 = vmatprep.subr.mxu0 0.0
        %2310 = vmatpush1.msra.mxu0 0.0
        %2311 = vmatprep.subr.mxu0 0.0
        %2312 = vmatpush1.msra.mxu0 0.0
        %2313 = vmatprep.subr.mxu0 0.0
        %2314 = vmatpush1.msra.mxu0 0.0
        %2315 = vmatprep.subr.mxu0 0.0
        %2316 = vmatpush1.msra.mxu0 0.0
        %2317 = vmatprep.subr.mxu0 0.0
        %2318 = vmatpush1.msra.mxu0 0.0
        %2319 = vmatprep.subr.mxu0 0.0
        %2320 = vmatpush1.msra.mxu0 0.0
        %2321 = vmatprep.subr.mxu0 0.0
        %2322 = vmatpush1.msra.mxu0 0.0
        %2323 = vmatprep.subr.mxu0 0.0
        %2324 = vmatpush1.msra.mxu0 0.0
        %2325 = vmatprep.subr.mxu0 0.0
        %2326 = vmatpush1.msra.mxu0 0.0
        %2327 = vmatprep.subr.mxu0 0.0
        %2328 = vmatpush1.msra.mxu0 0.0
        %2329 = vmatprep.subr.mxu0 0.0
        %2330 = vmatpush1.msra.mxu0 0.0
        %2331 = vmatprep.subr.mxu0 0.0
        %2332 = vmatpush1.msra.mxu0 0.0
        %2333 = vmatprep.subr.mxu0 0.0
        %2334 = vmatpush1.msra.mxu0 0.0
        %2335 = vmatprep.subr.mxu0 0.0
        %2336 = vmatpush1.msra.mxu0 0.0
        %2337 = vmatprep.subr.mxu0 0.0
        %2338 = vmatpush1.msra.mxu0 0.0
        %2339 = vmatprep.subr.mxu0 0.0
        %2340 = vmatpush1.msra.mxu0 0.0
        %2341 = vmatprep.subr.mxu0 0.0
        %2342 = vmatpush1.msra.mxu0 0.0
        %2343 = vmatprep.subr.mxu0 0.0
        %2344 = vmatpush1.msra.mxu0 0.0
        %2345 = vmatprep.subr.mxu0 0.0
        %2346 = vmatpush1.msra.mxu0 0.0
        %2347 = vmatprep.subr.mxu0 0.0
        %2348 = vmatpush1.msra.mxu0 0.0
        %2349 = vmatprep.mubr.f32.mxu0 0.0
        %2350 = vmatmul.mubr.f32.gmra.mrb[0].mxu0 %v2283
        %v2351 = vpop.f32.mrb[0].mxu0
        %v2352 = vadd.f32 0.0, %v2351
        %v2353 = vpop.f32.mrb[0].mxu0
        %2354 = vdwg.mxu0
        %2355 = vrot.lane.b32.xlu0 %v359, 44
        %v2356 = vpop.permute.xlu0 %2355
        %v2359 = vsel %vm522, %v2278, 0
        %2361 = vmatprep.subr.mxu0 0.0
        %2362 = vmatpush1.msra.mxu0 %v2356
        %2363 = vmatprep.subr.mxu0 0.0
        %2364 = vmatpush1.msra.mxu0 0.0
        %2365 = vmatprep.subr.mxu0 0.0
        %2366 = vmatpush1.msra.mxu0 0.0
        %2367 = vmatprep.subr.mxu0 0.0
        %2368 = vmatpush1.msra.mxu0 0.0
        %2369 = vmatprep.subr.mxu0 0.0
        %2370 = vmatpush1.msra.mxu0 0.0
        %2371 = vmatprep.subr.mxu0 0.0
        %2372 = vmatpush1.msra.mxu0 0.0
        %2373 = vmatprep.subr.mxu0 0.0
        %2374 = vmatpush1.msra.mxu0 0.0
        %2375 = vmatprep.subr.mxu0 0.0
        %2376 = vmatpush1.msra.mxu0 0.0
        %2377 = vmatprep.subr.mxu0 0.0
        %2378 = vmatpush1.msra.mxu0 0.0
        %2379 = vmatprep.subr.mxu0 0.0
        %2380 = vmatpush1.msra.mxu0 0.0
        %2381 = vmatprep.subr.mxu0 0.0
        %2382 = vmatpush1.msra.mxu0 0.0
        %2383 = vmatprep.subr.mxu0 0.0
        %2384 = vmatpush1.msra.mxu0 0.0
        %2385 = vmatprep.subr.mxu0 0.0
        %2386 = vmatpush1.msra.mxu0 0.0
        %2387 = vmatprep.subr.mxu0 0.0
        %2388 = vmatpush1.msra.mxu0 0.0
        %2389 = vmatprep.subr.mxu0 0.0
        %2390 = vmatpush1.msra.mxu0 0.0
        %2391 = vmatprep.subr.mxu0 0.0
        %2392 = vmatpush1.msra.mxu0 0.0
        %2393 = vmatprep.subr.mxu0 0.0
        %2394 = vmatpush1.msra.mxu0 0.0
        %2395 = vmatprep.subr.mxu0 0.0
        %2396 = vmatpush1.msra.mxu0 0.0
        %2397 = vmatprep.subr.mxu0 0.0
        %2398 = vmatpush1.msra.mxu0 0.0
        %2399 = vmatprep.subr.mxu0 0.0
        %2400 = vmatpush1.msra.mxu0 0.0
        %2401 = vmatprep.subr.mxu0 0.0
        %2402 = vmatpush1.msra.mxu0 0.0
        %2403 = vmatprep.subr.mxu0 0.0
        %2404 = vmatpush1.msra.mxu0 0.0
        %2405 = vmatprep.subr.mxu0 0.0
        %2406 = vmatpush1.msra.mxu0 0.0
        %2407 = vmatprep.subr.mxu0 0.0
        %2408 = vmatpush1.msra.mxu0 0.0
        %2409 = vmatprep.subr.mxu0 0.0
        %2410 = vmatpush1.msra.mxu0 0.0
        %2411 = vmatprep.subr.mxu0 0.0
        %2412 = vmatpush1.msra.mxu0 0.0
        %2413 = vmatprep.subr.mxu0 0.0
        %2414 = vmatpush1.msra.mxu0 0.0
        %2415 = vmatprep.subr.mxu0 0.0
        %2416 = vmatpush1.msra.mxu0 0.0
        %2417 = vmatprep.subr.mxu0 0.0
        %2418 = vmatpush1.msra.mxu0 0.0
        %2419 = vmatprep.subr.mxu0 0.0
        %2420 = vmatpush1.msra.mxu0 0.0
        %2421 = vmatprep.subr.mxu0 0.0
        %2422 = vmatpush1.msra.mxu0 0.0
        %2423 = vmatprep.subr.mxu0 0.0
        %2424 = vmatpush1.msra.mxu0 0.0
        %2425 = vmatprep.mubr.f32.mxu0 0.0
        %2426 = vmatmul.mubr.f32.gmra.mrb[0].mxu0 %v2359
        %v2427 = vpop.f32.mrb[0].mxu0
        %v2428 = vadd.f32 0.0, %v2427
        %v2429 = vpop.f32.mrb[0].mxu0
        %2430 = vdwg.mxu0
        %2431 = vrot.lane.b32.xlu0 %v362, 104
        %v2432 = vpop.permute.xlu0 %2431
        %2433 = vrot.lane.b32.xlu0 %v354, 72
        %v2434 = vpop.permute.xlu0 %2433
        %v2435 = vsel %vm368, %v2432, 0
        %v2437 = vsel %vm368, %v2434, 0
        %2439 = vmatprep.subr.mxu0 0.0
        %2440 = vmatpush1.xpose.msra.mxu0 %v2437
        %2441 = vmatprep.subr.mxu0 0.0
        %2442 = vmatpush1.xpose.msra.mxu0 0.0
        %2443 = vmatprep.subr.mxu0 0.0
        %2444 = vmatpush1.xpose.msra.mxu0 0.0
        %2445 = vmatprep.subr.mxu0 0.0
        %2446 = vmatpush1.xpose.msra.mxu0 0.0
        %2447 = vmatprep.subr.mxu0 0.0
        %2448 = vmatpush1.xpose.msra.mxu0 0.0
        %2449 = vmatprep.subr.mxu0 0.0
        %2450 = vmatpush1.xpose.msra.mxu0 0.0
        %2451 = vmatprep.subr.mxu0 0.0
        %2452 = vmatpush1.xpose.msra.mxu0 0.0
        %2453 = vmatprep.subr.mxu0 0.0
        %2454 = vmatpush1.xpose.msra.mxu0 0.0
        %2455 = vmatprep.subr.mxu0 0.0
        %2456 = vmatpush1.xpose.msra.mxu0 0.0
        %2457 = vmatprep.subr.mxu0 0.0
        %2458 = vmatpush1.xpose.msra.mxu0 0.0
        %2459 = vmatprep.subr.mxu0 0.0
        %2460 = vmatpush1.xpose.msra.mxu0 0.0
        %2461 = vmatprep.subr.mxu0 0.0
        %2462 = vmatpush1.xpose.msra.mxu0 0.0
        %2463 = vmatprep.subr.mxu0 0.0
        %2464 = vmatpush1.xpose.msra.mxu0 0.0
        %2465 = vmatprep.subr.mxu0 0.0
        %2466 = vmatpush1.xpose.msra.mxu0 0.0
        %2467 = vmatprep.subr.mxu0 0.0
        %2468 = vmatpush1.xpose.msra.mxu0 0.0
        %2469 = vmatprep.subr.mxu0 0.0
        %2470 = vmatpush1.xpose.msra.mxu0 0.0
        %2471 = vmatprep.subr.mxu0 0.0
        %2472 = vmatpush1.xpose.msra.mxu0 0.0
        %2473 = vmatprep.subr.mxu0 0.0
        %2474 = vmatpush1.xpose.msra.mxu0 0.0
        %2475 = vmatprep.subr.mxu0 0.0
        %2476 = vmatpush1.xpose.msra.mxu0 0.0
        %2477 = vmatprep.subr.mxu0 0.0
        %2478 = vmatpush1.xpose.msra.mxu0 0.0
        %2479 = vmatprep.subr.mxu0 0.0
        %2480 = vmatpush1.xpose.msra.mxu0 0.0
        %2481 = vmatprep.subr.mxu0 0.0
        %2482 = vmatpush1.xpose.msra.mxu0 0.0
        %2483 = vmatprep.subr.mxu0 0.0
        %2484 = vmatpush1.xpose.msra.mxu0 0.0
        %2485 = vmatprep.subr.mxu0 0.0
        %2486 = vmatpush1.xpose.msra.mxu0 0.0
        %2487 = vmatprep.subr.mxu0 0.0
        %2488 = vmatpush1.xpose.msra.mxu0 0.0
        %2489 = vmatprep.subr.mxu0 0.0
        %2490 = vmatpush1.xpose.msra.mxu0 0.0
        %2491 = vmatprep.subr.mxu0 0.0
        %2492 = vmatpush1.xpose.msra.mxu0 0.0
        %2493 = vmatprep.subr.mxu0 0.0
        %2494 = vmatpush1.xpose.msra.mxu0 0.0
        %2495 = vmatprep.subr.mxu0 0.0
        %2496 = vmatpush1.xpose.msra.mxu0 0.0
        %2497 = vmatprep.subr.mxu0 0.0
        %2498 = vmatpush1.xpose.msra.mxu0 0.0
        %2499 = vmatprep.subr.mxu0 0.0
        %2500 = vmatpush1.xpose.msra.mxu0 0.0
        %2501 = vmatprep.subr.mxu0 0.0
        %2502 = vmatpush1.xpose.msra.mxu0 0.0
        %2503 = vmatprep.mubr.f32.mxu0 0.0
        %2504 = vmatmul.mubr.f32.gmra.mrb[0].mxu0 %v2435
        %v2505 = vpop.f32.mrb[0].mxu0
        %v2506 = vadd.f32 %v364, %v2505
        %v2507 = vpop.f32.mrb[0].mxu0
        %2508 = vdwg.mxu0
        %2509 = vrot.lane.b32.xlu0 %v363, 104
        %v2510 = vpop.permute.xlu0 %2509
        %2511 = vrot.lane.b32.xlu0 %v359, 72
        %v2512 = vpop.permute.xlu0 %2511
        %v2513 = vsel %vm368, %v2510, 0
        %v2515 = vsel %vm368, %v2512, 0
        %2517 = vmatprep.subr.mxu0 0.0
        %2518 = vmatpush1.xpose.msra.mxu0 %v2515
        %2519 = vmatprep.subr.mxu0 0.0
        %2520 = vmatpush1.xpose.msra.mxu0 0.0
        %2521 = vmatprep.subr.mxu0 0.0
        %2522 = vmatpush1.xpose.msra.mxu0 0.0
        %2523 = vmatprep.subr.mxu0 0.0
        %2524 = vmatpush1.xpose.msra.mxu0 0.0
        %2525 = vmatprep.subr.mxu0 0.0
        %2526 = vmatpush1.xpose.msra.mxu0 0.0
        %2527 = vmatprep.subr.mxu0 0.0
        %2528 = vmatpush1.xpose.msra.mxu0 0.0
        %2529 = vmatprep.subr.mxu0 0.0
        %2530 = vmatpush1.xpose.msra.mxu0 0.0
        %2531 = vmatprep.subr.mxu0 0.0
        %2532 = vmatpush1.xpose.msra.mxu0 0.0
        %2533 = vmatprep.subr.mxu0 0.0
        %2534 = vmatpush1.xpose.msra.mxu0 0.0
        %2535 = vmatprep.subr.mxu0 0.0
        %2536 = vmatpush1.xpose.msra.mxu0 0.0
        %2537 = vmatprep.subr.mxu0 0.0
        %2538 = vmatpush1.xpose.msra.mxu0 0.0
        %2539 = vmatprep.subr.mxu0 0.0
        %2540 = vmatpush1.xpose.msra.mxu0 0.0
        %2541 = vmatprep.subr.mxu0 0.0
        %2542 = vmatpush1.xpose.msra.mxu0 0.0
        %2543 = vmatprep.subr.mxu0 0.0
        %2544 = vmatpush1.xpose.msra.mxu0 0.0
        %2545 = vmatprep.subr.mxu0 0.0
        %2546 = vmatpush1.xpose.msra.mxu0 0.0
        %2547 = vmatprep.subr.mxu0 0.0
        %2548 = vmatpush1.xpose.msra.mxu0 0.0
        %2549 = vmatprep.subr.mxu0 0.0
        %2550 = vmatpush1.xpose.msra.mxu0 0.0
        %2551 = vmatprep.subr.mxu0 0.0
        %2552 = vmatpush1.xpose.msra.mxu0 0.0
        %2553 = vmatprep.subr.mxu0 0.0
        %2554 = vmatpush1.xpose.msra.mxu0 0.0
        %2555 = vmatprep.subr.mxu0 0.0
        %2556 = vmatpush1.xpose.msra.mxu0 0.0
        %2557 = vmatprep.subr.mxu0 0.0
        %2558 = vmatpush1.xpose.msra.mxu0 0.0
        %2559 = vmatprep.subr.mxu0 0.0
        %2560 = vmatpush1.xpose.msra.mxu0 0.0
        %2561 = vmatprep.subr.mxu0 0.0
        %2562 = vmatpush1.xpose.msra.mxu0 0.0
        %2563 = vmatprep.subr.mxu0 0.0
        %2564 = vmatpush1.xpose.msra.mxu0 0.0
        %2565 = vmatprep.subr.mxu0 0.0
        %2566 = vmatpush1.xpose.msra.mxu0 0.0
        %2567 = vmatprep.subr.mxu0 0.0
        %2568 = vmatpush1.xpose.msra.mxu0 0.0
        %2569 = vmatprep.subr.mxu0 0.0
        %2570 = vmatpush1.xpose.msra.mxu0 0.0
        %2571 = vmatprep.subr.mxu0 0.0
        %2572 = vmatpush1.xpose.msra.mxu0 0.0
        %2573 = vmatprep.subr.mxu0 0.0
        %2574 = vmatpush1.xpose.msra.mxu0 0.0
        %2575 = vmatprep.subr.mxu0 0.0
        %2576 = vmatpush1.xpose.msra.mxu0 0.0
        %2577 = vmatprep.subr.mxu0 0.0
        %2578 = vmatpush1.xpose.msra.mxu0 0.0
        %2579 = vmatprep.subr.mxu0 0.0
        %2580 = vmatpush1.xpose.msra.mxu0 0.0
        %2581 = vmatprep.mubr.f32.mxu0 0.0
        %2582 = vmatmul.mubr.f32.gmra.mrb[0].mxu0 %v2513
        %v2583 = vpop.f32.mrb[0].mxu0
        %v2584 = vadd.f32 %v364, %v2583
        %v2585 = vpop.f32.mrb[0].mxu0
        %2586 = vdwg.mxu0
        %v2587 = vsel %vm522, %v2506, -inf
        %2588 = vmax.xlane.f32.xlu0 %v2587
        %v2589 = vpop.xlane.xlu0 %2588
        %v2590 = vsel %vm522, %v2584, -inf
        %2591 = vmax.xlane.f32.xlu0 %v2590
        %v2592 = vpop.xlane.xlu0 %2591
        %v2593 = vsub.f32 %v2506, %v2589
        %v2594 = vsub.f32 %v2584, %v2592
        %v2595 = vmul.f32 %v2593, 1.442695
        %v2596 = vpow.pop %v2595
        %v2597 = vmul.f32 %v2594, 1.442695
        %v2598 = vpow.pop %v2597
        %v2599 = vsel %vm522, %v2596, 0.0
        %2600 = vadd.xlane.f32.xlu0 %v2599
        %v2601 = vpop.xlane.xlu0 %2600
        %v2602 = vsel %vm522, %v2598, 0.0
        %2603 = vadd.xlane.f32.xlu0 %v2602
        %v2604 = vpop.xlane.xlu0 %2603
        %v2605 = vrcp.pop %v2601
        %v2606 = vrcp.pop %v2604
        %v2607 = vmul.f32 %v2596, %v2605
        %v2608 = vmul.f32 %v2598, %v2606
        %v2609 = vmul.f32 %v2607, 1.442695
        %v2610 = vpow.pop %v2609
        %v2611 = vmul.f32 %v2608, 1.442695
        %v2612 = vpow.pop %v2611
        %v2613 = vsel %vm522, %v2610, 0.0
        %2614 = vadd.xlane.f32.xlu0 %v2613
        %v2615 = vpop.xlane.xlu0 %2614
        %v2616 = vsel %vm522, %v2612, 0.0
        %2617 = vadd.xlane.f32.xlu0 %v2616
        %v2618 = vpop.xlane.xlu0 %2617
        %v2619 = vrcp.pop %v2615
        %v2620 = vrcp.pop %v2618
        %v2621 = vmul.f32 %v2610, %v2619
        %v2622 = vmul.f32 %v2612, %v2620
        %2623 = vrot.lane.b32.xlu0 %v354, 40
        %v2624 = vpop.permute.xlu0 %2623
        %v2627 = vsel %vm522, %v2621, 0
        %2629 = vmatprep.subr.mxu0 0.0
        %2630 = vmatpush1.msra.mxu0 %v2624
        %2631 = vmatprep.subr.mxu0 0.0
        %2632 = vmatpush1.msra.mxu0 0.0
        %2633 = vmatprep.subr.mxu0 0.0
        %2634 = vmatpush1.msra.mxu0 0.0
        %2635 = vmatprep.subr.mxu0 0.0
        %2636 = vmatpush1.msra.mxu0 0.0
        %2637 = vmatprep.subr.mxu0 0.0
        %2638 = vmatpush1.msra.mxu0 0.0
        %2639 = vmatprep.subr.mxu0 0.0
        %2640 = vmatpush1.msra.mxu0 0.0
        %2641 = vmatprep.subr.mxu0 0.0
        %2642 = vmatpush1.msra.mxu0 0.0
        %2643 = vmatprep.subr.mxu0 0.0
        %2644 = vmatpush1.msra.mxu0 0.0
        %2645 = vmatprep.subr.mxu0 0.0
        %2646 = vmatpush1.msra.mxu0 0.0
        %2647 = vmatprep.subr.mxu0 0.0
        %2648 = vmatpush1.msra.mxu0 0.0
        %2649 = vmatprep.subr.mxu0 0.0
        %2650 = vmatpush1.msra.mxu0 0.0
        %2651 = vmatprep.subr.mxu0 0.0
        %2652 = vmatpush1.msra.mxu0 0.0
        %2653 = vmatprep.subr.mxu0 0.0
        %2654 = vmatpush1.msra.mxu0 0.0
        %2655 = vmatprep.subr.mxu0 0.0
        %2656 = vmatpush1.msra.mxu0 0.0
        %2657 = vmatprep.subr.mxu0 0.0
        %2658 = vmatpush1.msra.mxu0 0.0
        %2659 = vmatprep.subr.mxu0 0.0
        %2660 = vmatpush1.msra.mxu0 0.0
        %2661 = vmatprep.subr.mxu0 0.0
        %2662 = vmatpush1.msra.mxu0 0.0
        %2663 = vmatprep.subr.mxu0 0.0
        %2664 = vmatpush1.msra.mxu0 0.0
        %2665 = vmatprep.subr.mxu0 0.0
        %2666 = vmatpush1.msra.mxu0 0.0
        %2667 = vmatprep.subr.mxu0 0.0
        %2668 = vmatpush1.msra.mxu0 0.0
        %2669 = vmatprep.subr.mxu0 0.0
        %2670 = vmatpush1.msra.mxu0 0.0
        %2671 = vmatprep.subr.mxu0 0.0
        %2672 = vmatpush1.msra.mxu0 0.0
        %2673 = vmatprep.subr.mxu0 0.0
        %2674 = vmatpush1.msra.mxu0 0.0
        %2675 = vmatprep.subr.mxu0 0.0
        %2676 = vmatpush1.msra.mxu0 0.0
        %2677 = vmatprep.subr.mxu0 0.0
        %2678 = vmatpush1.msra.mxu0 0.0
        %2679 = vmatprep.subr.mxu0 0.0
        %2680 = vmatpush1.msra.mxu0 0.0
        %2681 = vmatprep.subr.mxu0 0.0
        %2682 = vmatpush1.msra.mxu0 0.0
        %2683 = vmatprep.subr.mxu0 0.0
        %2684 = vmatpush1.msra.mxu0 0.0
        %2685 = vmatprep.subr.mxu0 0.0
        %2686 = vmatpush1.msra.mxu0 0.0
        %2687 = vmatprep.subr.mxu0 0.0
        %2688 = vmatpush1.msra.mxu0 0.0
        %2689 = vmatprep.subr.mxu0 0.0
        %2690 = vmatpush1.msra.mxu0 0.0
        %2691 = vmatprep.subr.mxu0 0.0
        %2692 = vmatpush1.msra.mxu0 0.0
        %2693 = vmatprep.mubr.f32.mxu0 0.0
        %2694 = vmatmul.mubr.f32.gmra.mrb[0].mxu0 %v2627
        %v2695 = vpop.f32.mrb[0].mxu0
        %v2696 = vadd.f32 0.0, %v2695
        %v2697 = vpop.f32.mrb[0].mxu0
        %2698 = vdwg.mxu0
        %2699 = vrot.lane.b32.xlu0 %v359, 40
        %v2700 = vpop.permute.xlu0 %2699
        %v2703 = vsel %vm522, %v2622, 0
        %2705 = vmatprep.subr.mxu0 0.0
        %2706 = vmatpush1.msra.mxu0 %v2700
        %2707 = vmatprep.subr.mxu0 0.0
        %2708 = vmatpush1.msra.mxu0 0.0
        %2709 = vmatprep.subr.mxu0 0.0
        %2710 = vmatpush1.msra.mxu0 0.0
        %2711 = vmatprep.subr.mxu0 0.0
        %2712 = vmatpush1.msra.mxu0 0.0
        %2713 = vmatprep.subr.mxu0 0.0
        %2714 = vmatpush1.msra.mxu0 0.0
        %2715 = vmatprep.subr.mxu0 0.0
        %2716 = vmatpush1.msra.mxu0 0.0
        %2717 = vmatprep.subr.mxu0 0.0
        %2718 = vmatpush1.msra.mxu0 0.0
        %2719 = vmatprep.subr.mxu0 0.0
        %2720 = vmatpush1.msra.mxu0 0.0
        %2721 = vmatprep.subr.mxu0 0.0
        %2722 = vmatpush1.msra.mxu0 0.0
        %2723 = vmatprep.subr.mxu0 0.0
        %2724 = vmatpush1.msra.mxu0 0.0
        %2725 = vmatprep.subr.mxu0 0.0
        %2726 = vmatpush1.msra.mxu0 0.0
        %2727 = vmatprep.subr.mxu0 0.0
        %2728 = vmatpush1.msra.mxu0 0.0
        %2729 = vmatprep.subr.mxu0 0.0
        %2730 = vmatpush1.msra.mxu0 0.0
        %2731 = vmatprep.subr.mxu0 0.0
        %2732 = vmatpush1.msra.mxu0 0.0
        %2733 = vmatprep.subr.mxu0 0.0
        %2734 = vmatpush1.msra.mxu0 0.0
        %2735 = vmatprep.subr.mxu0 0.0
        %2736 = vmatpush1.msra.mxu0 0.0
        %2737 = vmatprep.subr.mxu0 0.0
        %2738 = vmatpush1.msra.mxu0 0.0
        %2739 = vmatprep.subr.mxu0 0.0
        %2740 = vmatpush1.msra.mxu0 0.0
        %2741 = vmatprep.subr.mxu0 0.0
        %2742 = vmatpush1.msra.mxu0 0.0
        %2743 = vmatprep.subr.mxu0 0.0
        %2744 = vmatpush1.msra.mxu0 0.0
        %2745 = vmatprep.subr.mxu0 0.0
        %2746 = vmatpush1.msra.mxu0 0.0
        %2747 = vmatprep.subr.mxu0 0.0
        %2748 = vmatpush1.msra.mxu0 0.0
        %2749 = vmatprep.subr.mxu0 0.0
        %2750 = vmatpush1.msra.mxu0 0.0
        %2751 = vmatprep.subr.mxu0 0.0
        %2752 = vmatpush1.msra.mxu0 0.0
        %2753 = vmatprep.subr.mxu0 0.0
        %2754 = vmatpush1.msra.mxu0 0.0
        %2755 = vmatprep.subr.mxu0 0.0
        %2756 = vmatpush1.msra.mxu0 0.0
        %2757 = vmatprep.subr.mxu0 0.0
        %2758 = vmatpush1.msra.mxu0 0.0
        %2759 = vmatprep.subr.mxu0 0.0
        %2760 = vmatpush1.msra.mxu0 0.0
        %2761 = vmatprep.subr.mxu0 0.0
        %2762 = vmatpush1.msra.mxu0 0.0
        %2763 = vmatprep.subr.mxu0 0.0
        %2764 = vmatpush1.msra.mxu0 0.0
        %2765 = vmatprep.subr.mxu0 0.0
        %2766 = vmatpush1.msra.mxu0 0.0
        %2767 = vmatprep.subr.mxu0 0.0
        %2768 = vmatpush1.msra.mxu0 0.0
        %2769 = vmatprep.mubr.f32.mxu0 0.0
        %2770 = vmatmul.mubr.f32.gmra.mrb[0].mxu0 %v2703
        %v2771 = vpop.f32.mrb[0].mxu0
        %v2772 = vadd.f32 0.0, %v2771
        %v2773 = vpop.f32.mrb[0].mxu0
        %2774 = vdwg.mxu0
        %2775 = vrot.lane.b32.xlu0 %v362, 100
        %v2776 = vpop.permute.xlu0 %2775
        %2777 = vrot.lane.b32.xlu0 %v354, 68
        %v2778 = vpop.permute.xlu0 %2777
        %v2779 = vsel %vm368, %v2776, 0
        %v2781 = vsel %vm368, %v2778, 0
        %2783 = vmatprep.subr.mxu0 0.0
        %2784 = vmatpush1.xpose.msra.mxu0 %v2781
        %2785 = vmatprep.subr.mxu0 0.0
        %2786 = vmatpush1.xpose.msra.mxu0 0.0
        %2787 = vmatprep.subr.mxu0 0.0
        %2788 = vmatpush1.xpose.msra.mxu0 0.0
        %2789 = vmatprep.subr.mxu0 0.0
        %2790 = vmatpush1.xpose.msra.mxu0 0.0
        %2791 = vmatprep.subr.mxu0 0.0
        %2792 = vmatpush1.xpose.msra.mxu0 0.0
        %2793 = vmatprep.subr.mxu0 0.0
        %2794 = vmatpush1.xpose.msra.mxu0 0.0
        %2795 = vmatprep.subr.mxu0 0.0
        %2796 = vmatpush1.xpose.msra.mxu0 0.0
        %2797 = vmatprep.subr.mxu0 0.0
        %2798 = vmatpush1.xpose.msra.mxu0 0.0
        %2799 = vmatprep.subr.mxu0 0.0
        %2800 = vmatpush1.xpose.msra.mxu0 0.0
        %2801 = vmatprep.subr.mxu0 0.0
        %2802 = vmatpush1.xpose.msra.mxu0 0.0
        %2803 = vmatprep.subr.mxu0 0.0
        %2804 = vmatpush1.xpose.msra.mxu0 0.0
        %2805 = vmatprep.subr.mxu0 0.0
        %2806 = vmatpush1.xpose.msra.mxu0 0.0
        %2807 = vmatprep.subr.mxu0 0.0
        %2808 = vmatpush1.xpose.msra.mxu0 0.0
        %2809 = vmatprep.subr.mxu0 0.0
        %2810 = vmatpush1.xpose.msra.mxu0 0.0
        %2811 = vmatprep.subr.mxu0 0.0
        %2812 = vmatpush1.xpose.msra.mxu0 0.0
        %2813 = vmatprep.subr.mxu0 0.0
        %2814 = vmatpush1.xpose.msra.mxu0 0.0
        %2815 = vmatprep.subr.mxu0 0.0
        %2816 = vmatpush1.xpose.msra.mxu0 0.0
        %2817 = vmatprep.subr.mxu0 0.0
        %2818 = vmatpush1.xpose.msra.mxu0 0.0
        %2819 = vmatprep.subr.mxu0 0.0
        %2820 = vmatpush1.xpose.msra.mxu0 0.0
        %2821 = vmatprep.subr.mxu0 0.0
        %2822 = vmatpush1.xpose.msra.mxu0 0.0
        %2823 = vmatprep.subr.mxu0 0.0
        %2824 = vmatpush1.xpose.msra.mxu0 0.0
        %2825 = vmatprep.subr.mxu0 0.0
        %2826 = vmatpush1.xpose.msra.mxu0 0.0
        %2827 = vmatprep.subr.mxu0 0.0
        %2828 = vmatpush1.xpose.msra.mxu0 0.0
        %2829 = vmatprep.subr.mxu0 0.0
        %2830 = vmatpush1.xpose.msra.mxu0 0.0
        %2831 = vmatprep.subr.mxu0 0.0
        %2832 = vmatpush1.xpose.msra.mxu0 0.0
        %2833 = vmatprep.subr.mxu0 0.0
        %2834 = vmatpush1.xpose.msra.mxu0 0.0
        %2835 = vmatprep.subr.mxu0 0.0
        %2836 = vmatpush1.xpose.msra.mxu0 0.0
        %2837 = vmatprep.subr.mxu0 0.0
        %2838 = vmatpush1.xpose.msra.mxu0 0.0
        %2839 = vmatprep.subr.mxu0 0.0
        %2840 = vmatpush1.xpose.msra.mxu0 0.0
        %2841 = vmatprep.subr.mxu0 0.0
        %2842 = vmatpush1.xpose.msra.mxu0 0.0
        %2843 = vmatprep.subr.mxu0 0.0
        %2844 = vmatpush1.xpose.msra.mxu0 0.0
        %2845 = vmatprep.subr.mxu0 0.0
        %2846 = vmatpush1.xpose.msra.mxu0 0.0
        %2847 = vmatprep.mubr.f32.mxu0 0.0
        %2848 = vmatmul.mubr.f32.gmra.mrb[0].mxu0 %v2779
        %v2849 = vpop.f32.mrb[0].mxu0
        %v2850 = vadd.f32 %v364, %v2849
        %v2851 = vpop.f32.mrb[0].mxu0
        %2852 = vdwg.mxu0
        %2853 = vrot.lane.b32.xlu0 %v363, 100
        %v2854 = vpop.permute.xlu0 %2853
        %2855 = vrot.lane.b32.xlu0 %v359, 68
        %v2856 = vpop.permute.xlu0 %2855
        %v2857 = vsel %vm368, %v2854, 0
        %v2859 = vsel %vm368, %v2856, 0
        %2861 = vmatprep.subr.mxu0 0.0
        %2862 = vmatpush1.xpose.msra.mxu0 %v2859
        %2863 = vmatprep.subr.mxu0 0.0
        %2864 = vmatpush1.xpose.msra.mxu0 0.0
        %2865 = vmatprep.subr.mxu0 0.0
        %2866 = vmatpush1.xpose.msra.mxu0 0.0
        %2867 = vmatprep.subr.mxu0 0.0
        %2868 = vmatpush1.xpose.msra.mxu0 0.0
        %2869 = vmatprep.subr.mxu0 0.0
        %2870 = vmatpush1.xpose.msra.mxu0 0.0
        %2871 = vmatprep.subr.mxu0 0.0
        %2872 = vmatpush1.xpose.msra.mxu0 0.0
        %2873 = vmatprep.subr.mxu0 0.0
        %2874 = vmatpush1.xpose.msra.mxu0 0.0
        %2875 = vmatprep.subr.mxu0 0.0
        %2876 = vmatpush1.xpose.msra.mxu0 0.0
        %2877 = vmatprep.subr.mxu0 0.0
        %2878 = vmatpush1.xpose.msra.mxu0 0.0
        %2879 = vmatprep.subr.mxu0 0.0
        %2880 = vmatpush1.xpose.msra.mxu0 0.0
        %2881 = vmatprep.subr.mxu0 0.0
        %2882 = vmatpush1.xpose.msra.mxu0 0.0
        %2883 = vmatprep.subr.mxu0 0.0
        %2884 = vmatpush1.xpose.msra.mxu0 0.0
        %2885 = vmatprep.subr.mxu0 0.0
        %2886 = vmatpush1.xpose.msra.mxu0 0.0
        %2887 = vmatprep.subr.mxu0 0.0
        %2888 = vmatpush1.xpose.msra.mxu0 0.0
        %2889 = vmatprep.subr.mxu0 0.0
        %2890 = vmatpush1.xpose.msra.mxu0 0.0
        %2891 = vmatprep.subr.mxu0 0.0
        %2892 = vmatpush1.xpose.msra.mxu0 0.0
        %2893 = vmatprep.subr.mxu0 0.0
        %2894 = vmatpush1.xpose.msra.mxu0 0.0
        %2895 = vmatprep.subr.mxu0 0.0
        %2896 = vmatpush1.xpose.msra.mxu0 0.0
        %2897 = vmatprep.subr.mxu0 0.0
        %2898 = vmatpush1.xpose.msra.mxu0 0.0
        %2899 = vmatprep.subr.mxu0 0.0
        %2900 = vmatpush1.xpose.msra.mxu0 0.0
        %2901 = vmatprep.subr.mxu0 0.0
        %2902 = vmatpush1.xpose.msra.mxu0 0.0
        %2903 = vmatprep.subr.mxu0 0.0
        %2904 = vmatpush1.xpose.msra.mxu0 0.0
        %2905 = vmatprep.subr.mxu0 0.0
        %2906 = vmatpush1.xpose.msra.mxu0 0.0
        %2907 = vmatprep.subr.mxu0 0.0
        %2908 = vmatpush1.xpose.msra.mxu0 0.0
        %2909 = vmatprep.subr.mxu0 0.0
        %2910 = vmatpush1.xpose.msra.mxu0 0.0
        %2911 = vmatprep.subr.mxu0 0.0
        %2912 = vmatpush1.xpose.msra.mxu0 0.0
        %2913 = vmatprep.subr.mxu0 0.0
        %2914 = vmatpush1.xpose.msra.mxu0 0.0
        %2915 = vmatprep.subr.mxu0 0.0
        %2916 = vmatpush1.xpose.msra.mxu0 0.0
        %2917 = vmatprep.subr.mxu0 0.0
        %2918 = vmatpush1.xpose.msra.mxu0 0.0
        %2919 = vmatprep.subr.mxu0 0.0
        %2920 = vmatpush1.xpose.msra.mxu0 0.0
        %2921 = vmatprep.subr.mxu0 0.0
        %2922 = vmatpush1.xpose.msra.mxu0 0.0
        %2923 = vmatprep.subr.mxu0 0.0
        %2924 = vmatpush1.xpose.msra.mxu0 0.0
        %2925 = vmatprep.mubr.f32.mxu0 0.0
        %2926 = vmatmul.mubr.f32.gmra.mrb[0].mxu0 %v2857
        %v2927 = vpop.f32.mrb[0].mxu0
        %v2928 = vadd.f32 %v364, %v2927
        %v2929 = vpop.f32.mrb[0].mxu0
        %2930 = vdwg.mxu0
        %v2931 = vsel %vm522, %v2850, -inf
        %2932 = vmax.xlane.f32.xlu0 %v2931
        %v2933 = vpop.xlane.xlu0 %2932
        %v2934 = vsel %vm522, %v2928, -inf
        %2935 = vmax.xlane.f32.xlu0 %v2934
        %v2936 = vpop.xlane.xlu0 %2935
        %v2937 = vsub.f32 %v2850, %v2933
        %v2938 = vsub.f32 %v2928, %v2936
        %v2939 = vmul.f32 %v2937, 1.442695
        %v2940 = vpow.pop %v2939
        %v2941 = vmul.f32 %v2938, 1.442695
        %v2942 = vpow.pop %v2941
        %v2943 = vsel %vm522, %v2940, 0.0
        %2944 = vadd.xlane.f32.xlu0 %v2943
        %v2945 = vpop.xlane.xlu0 %2944
        %v2946 = vsel %vm522, %v2942, 0.0
        %2947 = vadd.xlane.f32.xlu0 %v2946
        %v2948 = vpop.xlane.xlu0 %2947
        %v2949 = vrcp.pop %v2945
        %v2950 = vrcp.pop %v2948
        %v2951 = vmul.f32 %v2940, %v2949
        %v2952 = vmul.f32 %v2942, %v2950
        %v2953 = vmul.f32 %v2951, 1.442695
        %v2954 = vpow.pop %v2953
        %v2955 = vmul.f32 %v2952, 1.442695
        %v2956 = vpow.pop %v2955
        %v2957 = vsel %vm522, %v2954, 0.0
        %2958 = vadd.xlane.f32.xlu0 %v2957
        %v2959 = vpop.xlane.xlu0 %2958
        %v2960 = vsel %vm522, %v2956, 0.0
        %2961 = vadd.xlane.f32.xlu0 %v2960
        %v2962 = vpop.xlane.xlu0 %2961
        %v2963 = vrcp.pop %v2959
        %v2964 = vrcp.pop %v2962
        %v2965 = vmul.f32 %v2954, %v2963
        %v2966 = vmul.f32 %v2956, %v2964
        %2967 = vrot.lane.b32.xlu0 %v354, 36
        %v2968 = vpop.permute.xlu0 %2967
        %v2971 = vsel %vm522, %v2965, 0
        %2973 = vmatprep.subr.mxu0 0.0
        %2974 = vmatpush1.msra.mxu0 %v2968
        %2975 = vmatprep.subr.mxu0 0.0
        %2976 = vmatpush1.msra.mxu0 0.0
        %2977 = vmatprep.subr.mxu0 0.0
        %2978 = vmatpush1.msra.mxu0 0.0
        %2979 = vmatprep.subr.mxu0 0.0
        %2980 = vmatpush1.msra.mxu0 0.0
        %2981 = vmatprep.subr.mxu0 0.0
        %2982 = vmatpush1.msra.mxu0 0.0
        %2983 = vmatprep.subr.mxu0 0.0
        %2984 = vmatpush1.msra.mxu0 0.0
        %2985 = vmatprep.subr.mxu0 0.0
        %2986 = vmatpush1.msra.mxu0 0.0
        %2987 = vmatprep.subr.mxu0 0.0
        %2988 = vmatpush1.msra.mxu0 0.0
        %2989 = vmatprep.subr.mxu0 0.0
        %2990 = vmatpush1.msra.mxu0 0.0
        %2991 = vmatprep.subr.mxu0 0.0
        %2992 = vmatpush1.msra.mxu0 0.0
        %2993 = vmatprep.subr.mxu0 0.0
        %2994 = vmatpush1.msra.mxu0 0.0
        %2995 = vmatprep.subr.mxu0 0.0
        %2996 = vmatpush1.msra.mxu0 0.0
        %2997 = vmatprep.subr.mxu0 0.0
        %2998 = vmatpush1.msra.mxu0 0.0
        %2999 = vmatprep.subr.mxu0 0.0
        %3000 = vmatpush1.msra.mxu0 0.0
        %3001 = vmatprep.subr.mxu0 0.0
        %3002 = vmatpush1.msra.mxu0 0.0
        %3003 = vmatprep.subr.mxu0 0.0
        %3004 = vmatpush1.msra.mxu0 0.0
        %3005 = vmatprep.subr.mxu0 0.0
        %3006 = vmatpush1.msra.mxu0 0.0
        %3007 = vmatprep.subr.mxu0 0.0
        %3008 = vmatpush1.msra.mxu0 0.0
        %3009 = vmatprep.subr.mxu0 0.0
        %3010 = vmatpush1.msra.mxu0 0.0
        %3011 = vmatprep.subr.mxu0 0.0
        %3012 = vmatpush1.msra.mxu0 0.0
        %3013 = vmatprep.subr.mxu0 0.0
        %3014 = vmatpush1.msra.mxu0 0.0
        %3015 = vmatprep.subr.mxu0 0.0
        %3016 = vmatpush1.msra.mxu0 0.0
        %3017 = vmatprep.subr.mxu0 0.0
        %3018 = vmatpush1.msra.mxu0 0.0
        %3019 = vmatprep.subr.mxu0 0.0
        %3020 = vmatpush1.msra.mxu0 0.0
        %3021 = vmatprep.subr.mxu0 0.0
        %3022 = vmatpush1.msra.mxu0 0.0
        %3023 = vmatprep.subr.mxu0 0.0
        %3024 = vmatpush1.msra.mxu0 0.0
        %3025 = vmatprep.subr.mxu0 0.0
        %3026 = vmatpush1.msra.mxu0 0.0
        %3027 = vmatprep.subr.mxu0 0.0
        %3028 = vmatpush1.msra.mxu0 0.0
        %3029 = vmatprep.subr.mxu0 0.0
        %3030 = vmatpush1.msra.mxu0 0.0
        %3031 = vmatprep.subr.mxu0 0.0
        %3032 = vmatpush1.msra.mxu0 0.0
        %3033 = vmatprep.subr.mxu0 0.0
        %3034 = vmatpush1.msra.mxu0 0.0
        %3035 = vmatprep.subr.mxu0 0.0
        %3036 = vmatpush1.msra.mxu0 0.0
        %3037 = vmatprep.mubr.f32.mxu0 0.0
        %3038 = vmatmul.mubr.f32.gmra.mrb[0].mxu0 %v2971
        %v3039 = vpop.f32.mrb[0].mxu0
        %v3040 = vadd.f32 0.0, %v3039
        %v3041 = vpop.f32.mrb[0].mxu0
        %3042 = vdwg.mxu0
        %3043 = vrot.lane.b32.xlu0 %v359, 36
        %v3044 = vpop.permute.xlu0 %3043
        %v3047 = vsel %vm522, %v2966, 0
        %3049 = vmatprep.subr.mxu0 0.0
        %3050 = vmatpush1.msra.mxu0 %v3044
        %3051 = vmatprep.subr.mxu0 0.0
        %3052 = vmatpush1.msra.mxu0 0.0
        %3053 = vmatprep.subr.mxu0 0.0
        %3054 = vmatpush1.msra.mxu0 0.0
        %3055 = vmatprep.subr.mxu0 0.0
        %3056 = vmatpush1.msra.mxu0 0.0
        %3057 = vmatprep.subr.mxu0 0.0
        %3058 = vmatpush1.msra.mxu0 0.0
        %3059 = vmatprep.subr.mxu0 0.0
        %3060 = vmatpush1.msra.mxu0 0.0
        %3061 = vmatprep.subr.mxu0 0.0
        %3062 = vmatpush1.msra.mxu0 0.0
        %3063 = vmatprep.subr.mxu0 0.0
        %3064 = vmatpush1.msra.mxu0 0.0
        %3065 = vmatprep.subr.mxu0 0.0
        %3066 = vmatpush1.msra.mxu0 0.0
        %3067 = vmatprep.subr.mxu0 0.0
        %3068 = vmatpush1.msra.mxu0 0.0
        %3069 = vmatprep.subr.mxu0 0.0
        %3070 = vmatpush1.msra.mxu0 0.0
        %3071 = vmatprep.subr.mxu0 0.0
        %3072 = vmatpush1.msra.mxu0 0.0
        %3073 = vmatprep.subr.mxu0 0.0
        %3074 = vmatpush1.msra.mxu0 0.0
        %3075 = vmatprep.subr.mxu0 0.0
        %3076 = vmatpush1.msra.mxu0 0.0
        %3077 = vmatprep.subr.mxu0 0.0
        %3078 = vmatpush1.msra.mxu0 0.0
        %3079 = vmatprep.subr.mxu0 0.0
        %3080 = vmatpush1.msra.mxu0 0.0
        %3081 = vmatprep.subr.mxu0 0.0
        %3082 = vmatpush1.msra.mxu0 0.0
        %3083 = vmatprep.subr.mxu0 0.0
        %3084 = vmatpush1.msra.mxu0 0.0
        %3085 = vmatprep.subr.mxu0 0.0
        %3086 = vmatpush1.msra.mxu0 0.0
        %3087 = vmatprep.subr.mxu0 0.0
        %3088 = vmatpush1.msra.mxu0 0.0
        %3089 = vmatprep.subr.mxu0 0.0
        %3090 = vmatpush1.msra.mxu0 0.0
        %3091 = vmatprep.subr.mxu0 0.0
        %3092 = vmatpush1.msra.mxu0 0.0
        %3093 = vmatprep.subr.mxu0 0.0
        %3094 = vmatpush1.msra.mxu0 0.0
        %3095 = vmatprep.subr.mxu0 0.0
        %3096 = vmatpush1.msra.mxu0 0.0
        %3097 = vmatprep.subr.mxu0 0.0
        %3098 = vmatpush1.msra.mxu0 0.0
        %3099 = vmatprep.subr.mxu0 0.0
        %3100 = vmatpush1.msra.mxu0 0.0
        %3101 = vmatprep.subr.mxu0 0.0
        %3102 = vmatpush1.msra.mxu0 0.0
        %3103 = vmatprep.subr.mxu0 0.0
        %3104 = vmatpush1.msra.mxu0 0.0
        %3105 = vmatprep.subr.mxu0 0.0
        %3106 = vmatpush1.msra.mxu0 0.0
        %3107 = vmatprep.subr.mxu0 0.0
        %3108 = vmatpush1.msra.mxu0 0.0
        %3109 = vmatprep.subr.mxu0 0.0
        %3110 = vmatpush1.msra.mxu0 0.0
        %3111 = vmatprep.subr.mxu0 0.0
        %3112 = vmatpush1.msra.mxu0 0.0
        %3113 = vmatprep.mubr.f32.mxu0 0.0
        %3114 = vmatmul.mubr.f32.gmra.mrb[0].mxu0 %v3047
        %v3115 = vpop.f32.mrb[0].mxu0
        %v3116 = vadd.f32 0.0, %v3115
        %v3117 = vpop.f32.mrb[0].mxu0
        %3118 = vdwg.mxu0
        %3121 = vrot.lane.b32.xlu0 %v976, 4
        %v3122 = vpop.permute.xlu0 %3121
        %3123 = vrot.lane.b32.xlu0 %v1052, 4
        %v3124 = vpop.permute.xlu0 %3123
        %3129 = vrot.lane.b32.xlu0 %v1320, 8
        %v3130 = vpop.permute.xlu0 %3129
        %3131 = vrot.lane.b32.xlu0 %v1396, 8
        %v3132 = vpop.permute.xlu0 %3131
        %3137 = vrot.lane.b32.xlu0 %v1664, 12
        %v3138 = vpop.permute.xlu0 %3137
        %3139 = vrot.lane.b32.xlu0 %v1740, 12
        %v3140 = vpop.permute.xlu0 %3139
        %3145 = vrot.lane.b32.xlu0 %v2008, 16
        %v3146 = vpop.permute.xlu0 %3145
        %3147 = vrot.lane.b32.xlu0 %v2084, 16
        %v3148 = vpop.permute.xlu0 %3147
        %3153 = vrot.lane.b32.xlu0 %v2352, 20
        %v3154 = vpop.permute.xlu0 %3153
        %3155 = vrot.lane.b32.xlu0 %v2428, 20
        %v3156 = vpop.permute.xlu0 %3155
        %3161 = vrot.lane.b32.xlu0 %v2696, 24
        %v3162 = vpop.permute.xlu0 %3161
        %3163 = vrot.lane.b32.xlu0 %v2772, 24
        %v3164 = vpop.permute.xlu0 %3163
        %3169 = vrot.lane.b32.xlu0 %v3040, 28
        %v3170 = vpop.permute.xlu0 %3169
        %3171 = vrot.lane.b32.xlu0 %v3116, 28
        %v3172 = vpop.permute.xlu0 %3171
        %v3175 = vsel %vm368, %v632, %v3122
        %v3176 = vsel %vm368, %v708, %v3124
        %v3177 = vsel %vm522, %v3175, %v3130
        %v3178 = vsel %vm522, %v3176, %v3132
        %vm3179 = vcmask 97280
        %v3180 = vsel %vm3179, %v3177, %v3138
        %v3181 = vsel %vm3179, %v3178, %v3140
        %vm3182 = vcmask 130048
        %v3183 = vsel %vm3182, %v3180, %v3146
        %v3184 = vsel %vm3182, %v3181, %v3148
        %vm3185 = vcmask 162816
        %v3186 = vsel %vm3185, %v3183, %v3154
        %v3187 = vsel %vm3185, %v3184, %v3156
        %vm3188 = vcmask 195584
        %v3189 = vsel %vm3188, %v3186, %v3162
        %v3190 = vsel %vm3188, %v3187, %v3164
        %vm3191 = vcmask 228352
        %v3192 = vsel %vm3191, %v3189, %v3170
        %v3193 = vsel %vm3191, %v3190, %v3172
        %v3194 = vld [vmem:[#allocation7] sm:$0xff]
        %v3195 = vld [vmem:[#allocation7 + $0x8] sm:$0xff]
        %v3196 = vld [vmem:[#allocation7 + $0x10] sm:$0xff]
        %v3197 = vld [vmem:[#allocation7 + $0x18] sm:$0xff]
        %v3198 = vld [vmem:[%s3] sm:$0x1]
        %v3200 = vlaneseq
        %v3201 = vshrl.u32 %v3200, 7
        %v3202 = vsub.s32 0, %v3201
        %v3203 = vrot.slane %v3198, %v3202
        %v3206 = vsel %vm280, %v3192, 0
        %v3209 = vsel %vm280, %v3193, 0
        %3211 = vmatprep.subr.mxu0 0.0
        %3212 = vmatpush1.msra.mxu0 %v3194
        %3213 = vmatprep.subr.mxu0 0.0
        %3214 = vmatpush1.msra.mxu0 %v3195
        %3215 = vmatprep.subr.mxu0 0.0
        %3216 = vmatpush1.msra.mxu0 %v3196
        %3217 = vmatprep.subr.mxu0 0.0
        %3218 = vmatpush1.msra.mxu0 %v3197
        %3219 = vmatprep.subr.mxu0 0.0
        %3220 = vmatpush1.msra.mxu0 0.0
        %3221 = vmatprep.subr.mxu0 0.0
        %3222 = vmatpush1.msra.mxu0 0.0
        %3223 = vmatprep.subr.mxu0 0.0
        %3224 = vmatpush1.msra.mxu0 0.0
        %3225 = vmatprep.subr.mxu0 0.0
        %3226 = vmatpush1.msra.mxu0 0.0
        %3227 = vmatprep.subr.mxu0 0.0
        %3228 = vmatpush1.msra.mxu0 0.0
        %3229 = vmatprep.subr.mxu0 0.0
        %3230 = vmatpush1.msra.mxu0 0.0
        %3231 = vmatprep.subr.mxu0 0.0
        %3232 = vmatpush1.msra.mxu0 0.0
        %3233 = vmatprep.subr.mxu0 0.0
        %3234 = vmatpush1.msra.mxu0 0.0
        %3235 = vmatprep.subr.mxu0 0.0
        %3236 = vmatpush1.msra.mxu0 0.0
        %3237 = vmatprep.subr.mxu0 0.0
        %3238 = vmatpush1.msra.mxu0 0.0
        %3239 = vmatprep.subr.mxu0 0.0
        %3240 = vmatpush1.msra.mxu0 0.0
        %3241 = vmatprep.subr.mxu0 0.0
        %3242 = vmatpush1.msra.mxu0 0.0
        %3243 = vmatprep.subr.mxu0 0.0
        %3244 = vmatpush1.msra.mxu0 0.0
        %3245 = vmatprep.subr.mxu0 0.0
        %3246 = vmatpush1.msra.mxu0 0.0
        %3247 = vmatprep.subr.mxu0 0.0
        %3248 = vmatpush1.msra.mxu0 0.0
        %3249 = vmatprep.subr.mxu0 0.0
        %3250 = vmatpush1.msra.mxu0 0.0
        %3251 = vmatprep.subr.mxu0 0.0
        %3252 = vmatpush1.msra.mxu0 0.0
        %3253 = vmatprep.subr.mxu0 0.0
        %3254 = vmatpush1.msra.mxu0 0.0
        %3255 = vmatprep.subr.mxu0 0.0
        %3256 = vmatpush1.msra.mxu0 0.0
        %3257 = vmatprep.subr.mxu0 0.0
        %3258 = vmatpush1.msra.mxu0 0.0
        %3259 = vmatprep.subr.mxu0 0.0
        %3260 = vmatpush1.msra.mxu0 0.0
        %3261 = vmatprep.subr.mxu0 0.0
        %3262 = vmatpush1.msra.mxu0 0.0
        %3263 = vmatprep.subr.mxu0 0.0
        %3264 = vmatpush1.msra.mxu0 0.0
        %3265 = vmatprep.subr.mxu0 0.0
        %3266 = vmatpush1.msra.mxu0 0.0
        %3267 = vmatprep.subr.mxu0 0.0
        %3268 = vmatpush1.msra.mxu0 0.0
        %3269 = vmatprep.subr.mxu0 0.0
        %3270 = vmatpush1.msra.mxu0 0.0
        %3271 = vmatprep.subr.mxu0 0.0
        %3272 = vmatpush1.msra.mxu0 0.0
        %3273 = vmatprep.subr.mxu0 0.0
        %3274 = vmatpush1.msra.mxu0 0.0
        %3275 = vmatprep.mubr.f32.mxu0 0.0
        %3276 = vmatmul.mubr.f32.gmra.mrb[0].mxu0 %v3206
        %v3277 = vpop.f32.mrb[0].mxu0
        %v3278 = vadd.f32 %v3203, %v3277
        %v3279 = vpop.f32.mrb[0].mxu0
        %3280 = vmatprep.mubr.f32.mxu0 0.0
        %3281 = vmatmul.mubr.f32.gmra.mrb[0].mxu0 %v3209
        %v3282 = vpop.f32.mrb[0].mxu0
        %v3283 = vadd.f32 %v3203, %v3282
        %v3284 = vpop.f32.mrb[0].mxu0
        %3285 = vdwg.mxu0
        %3286 = vst.msk [vmem:[%s271] sm:$0xff] %vm280, %v3278
        %3287 = vst.msk [vmem:[%s271 + $0x8] sm:$0xff] %vm280, %v3283
        %s3288 = sand.u32 %s141, 1
        %s3289 = scalar_lea.sflag [#allocation4], %s3288
        %s3290 = sand.u32 %s141, 1
        %s3291 = smul.addr %s3290, 16
        %s3292 = scalar_lea.vmem [#allocation8], %s3291
        // Predicated region
        $region53: #{tpu_custom_call.1} parent=39 // pred_check
          %p3293 = pneg %p151
        $region54: #{tpu_custom_call.1} parent=39 // pred_check_branch
          %3295 = sbr.rel (%p3293) target = $region56
        $region55: #{tpu_custom_call.1} parent=39 // pred_region
          %s3296 = smul.u32 2, %s23
          %s3298 = ssub.s32 256, 256
          %3299 = vsyncadd %s3289, %s3298
          %s3300 = smul.addr %s3296, 128
          %s3301 = scalar_lea.hbm %s5, %s3300
          %s3302 = sshll.u32 %s3292, 4
          %s3303 = int_to_ptr.vmem [resolvable:$true] %s3302
          %3308 = dma.vmem_to_hbm [thread:$0]  %s3303, 256, %s3301, %s3289, 128, 128, 8
        $region56: #{tpu_custom_call.1} parent=39 // pred_fallthru
          _
      $region40: #{tpu_custom_call.1} parent=5 // pred_fallthru
        _
      %p3309 = scmp.le.s32.totalorder 2, %s18
      // Predicated region
      $region57: #{tpu_custom_call.1} parent=5 // pred_check
        %p3310 = pneg %p3309
      $region58: #{tpu_custom_call.1} parent=5 // pred_check_branch
        %3312 = sbr.rel (%p3310) target = $region60
      $region59: #{tpu_custom_call.1} parent=5 // pred_region
        %s3313 = ssub.s32 %s18, 2
        // Predicated region
        $region61: #{tpu_custom_call.1} parent=59 // pred_check
          %p3314 = pneg %p157
        $region62: #{tpu_custom_call.1} parent=59 // pred_check_branch
          %3316 = sbr.rel (%p3314) target = $region64
        $region63: #{tpu_custom_call.1} parent=59 // pred_region
          %s3317 = sand.u32 %s142, 1
          %s3318 = scalar_lea.sflag [#allocation4], %s3317
          %s3319 = sand.u32 %s142, 1
          %s3320 = smul.addr %s3319, 16
          %s3321 = scalar_lea.vmem [#allocation8], %s3320
          %3322 = dma.done %s3318, 256
        $region64: #{tpu_custom_call.1} parent=59 // pred_fallthru
          _
      $region60: #{tpu_custom_call.1} parent=5 // pred_fallthru
        _
    $region6: #{tpu_custom_call.1} parent=1 // loop_footer
      %s22 = sadd.s32 1, %s18
    $region7: #{tpu_custom_call.1} parent=1 // loop_footer_branch
      %17 = sbr.rel target = $region3
    $region8: #{tpu_custom_call.1} parent=1 // loop_exit
      _
    %3323 = vsyncpa [#allocation3], 1
    %s3324 = scalar_lea.sflag [#allocation3], 1
    %3325 = vsyncpa %s3324, 1
    %3326 = vsyncpa [#allocation6], 1
    %3327 = vsyncpa [#allocation4], 1
    %s3328 = scalar_lea.sflag [#allocation4], 1
    %3329 = vsyncpa %s3328, 1

</llo_original>
